<compile_context>
chip_gen: v5e
topology: v5e:2x2
jax: 0.10.0
libtpu: 0.0.40
codegen_flags: <defaults>
</compile_context>

<pallas_src>
import functools
import math

import jax
import jax.numpy as jnp
from jax.experimental import pallas as pl
from jax.experimental.pallas import tpu as pltpu


def _sigmoid(x):
    # 1/(1+exp(-x)) with the divide on the EUP slot (approx reciprocal).
    return pl.reciprocal(1.0 + jnp.exp(-x), approx=True)


def _swish(x):
    return x * _sigmoid(x)


def _layer_norm(x, gamma, beta, eps=1e-5):
    mu = jnp.mean(x, axis=-1, keepdims=True)
    var = jnp.mean(jnp.square(x - mu), axis=-1, keepdims=True)
    return (x - mu) * jax.lax.rsqrt(var + eps) * gamma + beta


def conformer_adapter_kernel(lens_ref, x_ref, *refs,
                             Bblk, T, D, Hff, Hc, K, H, A, num_prev):
    out_ref = refs[-1]
    (ff1_g, ff1_b, ff1_w1, ff1_b1, ff1_w2, ff1_b2,
     cv_g, cv_b, cv_pw1_w, cv_pw1_b, cv_dw_w, cv_dw_b,
     cv_bn_m, cv_bn_v, cv_bn_g, cv_bn_b, cv_pw2_w, cv_pw2_b,
     mh_g, mh_b, wq, bq, wk, bk, wv, bv, wo, bo,
     ad_wd, ad_bd, ad_wu, ad_bu,
     ff2_g, ff2_b, ff2_w1, ff2_b1, ff2_w2, ff2_b2,
     fn_g, fn_b) = refs[:-1]

    N = Bblk * T
    # (Bblk, T, D) block -> flattened (N, D) slab for all pointwise/matmul work.
    x = x_ref[...].astype(jnp.float32).reshape(N, D)

    def dense(h, w_ref, b_ref):
        # bf16 MXU operands (fast path on v6e/v7x, fine on v5e), f32 accumulate.
        return jnp.dot(h.astype(jnp.bfloat16), w_ref[...],
                       preferred_element_type=jnp.float32) + b_ref[...]

    def ff(h, g, b, w1, b1, w2, b2):
        h = _layer_norm(h, g[...], b[...])
        h = _swish(dense(h, w1, b1))
        return dense(h, w2, b2)

    # ---------------- FF module 1 (half-step residual) ----------------------
    res = x
    x = ff(x, ff1_g, ff1_b, ff1_w1, ff1_b1, ff1_w2, ff1_b2) * 0.5 + res

    # ---------------- Convolution module ------------------------------------
    res = x
    h = _layer_norm(x, cv_g[...], cv_b[...])
    h = dense(h, cv_pw1_w, cv_pw1_b)                       # (N, 2*Hc)
    h = h[:, :Hc] * _sigmoid(h[:, Hc:])                    # GLU over channels
    # Causal depthwise conv: pltpu.roll (XLU) on the whole flattened slab plus
    # an intra-sequence mask, instead of K (T,T) shift-matrix matmuls.  Rows
    # whose intra-sequence time index is < shift would otherwise pick up the
    # previous sequence's tail, so they are zeroed (== causal left padding).
    t_in_seq = jax.lax.broadcasted_iota(jnp.int32, (N, Hc), 0) % T
    dw_w = cv_dw_w[...]                                    # (K, Hc) f32
    acc = jnp.zeros((N, Hc), jnp.float32)
    for k in range(K):                                     # static, K small
        s = K - 1 - k
        if s == 0:
            shifted = h
        else:
            shifted = jnp.where(t_in_seq >= s, pltpu.roll(h, s, axis=0), 0.0)
        acc = acc + shifted * dw_w[k:k + 1, :]
    h = acc + cv_dw_b[...]
    # Eval-mode BatchNorm1d == per-channel affine with running statistics.
    # TODO(synk): training-mode batch-statistic updates are not implemented.
    h = (h - cv_bn_m[...]) * jax.lax.rsqrt(cv_bn_v[...] + 1e-5) * cv_bn_g[...] \
        + cv_bn_b[...]
    h = _swish(h)
    h = dense(h, cv_pw2_w, cv_pw2_b)                       # (N, D)
    x = h + res

    # ---------------- Multi-head self attention -----------------------------
    res = x
    hx = _layer_norm(x, mh_g[...], mh_b[...])
    q = dense(hx, wq, bq)
    kk = dense(hx, wk, bk)
    v = dense(hx, wv, bv)

    dh = D // H
    scale = 1.0 / math.sqrt(dh)
    row = jax.lax.broadcasted_iota(jnp.int32, (T, T), 0)
    col = jax.lax.broadcasted_iota(jnp.int32, (T, T), 1)
    # Causal window: current frame plus up to num_prev previous frames.
    window_ok = (col <= row) & ((row - col) <= num_prev)
    base = pl.program_id(0) * Bblk

    seq_outs = []
    for b in range(Bblk):                                  # static per-sequence loop
        length = lens_ref[base + b]
        # Additive mask built once per sequence (not per head).
        bias = jnp.where(window_ok & (col < length), 0.0, -1e30)
        rows = slice(b * T, (b + 1) * T)
        qb, kb, vb = q[rows, :], kk[rows, :], v[rows, :]
        head_outs = []
        for hh in range(H):                                # static head loop
            # TODO(synk): for production dh >= 128, batch all heads with one
            # 3-D einsum instead of lane-slicing per head.
            cols = slice(hh * dh, (hh + 1) * dh)
            qh = qb[:, cols].astype(jnp.bfloat16)
            kh = kb[:, cols].astype(jnp.bfloat16)
            s = jax.lax.dot_general(
                qh, kh, (((1,), (1,)), ((), ())),
                preferred_element_type=jnp.float32) * scale + bias
            m = jnp.max(s, axis=-1, keepdims=True)
            e = jnp.exp(s - m)
            p = e * pl.reciprocal(jnp.sum(e, axis=-1, keepdims=True), approx=True)
            head_outs.append(jnp.dot(p.astype(jnp.bfloat16),
                                     vb[:, cols].astype(jnp.bfloat16),
                                     preferred_element_type=jnp.float32))
        seq_outs.append(jnp.concatenate(head_outs, axis=-1))          # (T, D)
    o = jnp.concatenate(seq_outs, axis=0) if Bblk > 1 else seq_outs[0]
    # Output projection hoisted out of the head loop: one full-width matmul.
    mha_out = jnp.dot(o.astype(jnp.bfloat16), wo[...],
                      preferred_element_type=jnp.float32) + bo[...]

    # ---------------- Bottleneck adapter -------------------------------------
    a = jnp.maximum(dense(mha_out, ad_wd, ad_bd), 0.0)
    a = dense(a, ad_wu, ad_bu)
    x = a + mha_out                                        # adapter residual
    x = x + res                                            # MHA-block residual

    # ---------------- FF module 2 --------------------------------------------
    res = x
    x = ff(x, ff2_g, ff2_b, ff2_w1, ff2_b1, ff2_w2, ff2_b2) * 0.5 + res

    # ---------------- final timewise LayerNorm --------------------------------
    x = _layer_norm(x, fn_g[...], fn_b[...])
    out_ref[...] = x.reshape(Bblk, T, D).astype(out_ref.dtype)


def init_params(key, D, Hff, Hc, K, H, A):
    """Deterministic synthetic parameters (eval mode).  MXU weights in bf16."""
    keys = iter(jax.random.split(key, 32))

    def w(shape, scale=0.05, dtype=jnp.bfloat16):
        return (jax.random.normal(next(keys), shape, jnp.float32) * scale).astype(dtype)

    ones = lambda n: jnp.ones((1, n), jnp.float32)
    zeros = lambda n: jnp.zeros((1, n), jnp.float32)

    return [
        # FF module 1
        ones(D), zeros(D), w((D, Hff)), zeros(Hff), w((Hff, D)), zeros(D),
        # Conv module
        ones(D), zeros(D), w((D, 2 * Hc)), zeros(2 * Hc),
        w((K, Hc), dtype=jnp.float32), zeros(Hc),          # depthwise w / b (VPU)
        zeros(Hc), ones(Hc), ones(Hc), zeros(Hc),          # BN: mean, var, gamma, beta
        w((Hc, D)), zeros(D),
        # MHA module
        ones(D), zeros(D),
        w((D, D)), zeros(D), w((D, D)), zeros(D), w((D, D)), zeros(D), w((D, D)), zeros(D),
        # Adapter
        w((D, A)), zeros(A), w((A, D)), zeros(D),
        # FF module 2
        ones(D), zeros(D), w((D, Hff)), zeros(Hff), w((Hff, D)), zeros(D),
        # final LN
        ones(D), zeros(D),
    ]


def causal_conformer_adapter_block(x_bdt, x_lengths, params, *, ff_hidden_size,
                                   conv_hidden_size, conv_kernel_size,
                                   mha_num_heads, num_previous_frames,
                                   adapter_hidden_size, batch_block=8):
    B, D, T = x_bdt.shape
    Bblk = min(batch_block, B)
    B_pad = ((B + Bblk - 1) // Bblk) * Bblk

    # TODO(synk): the boundary (B,D,T)<->(B,T,D) transposes could be fused into
    # the kernel (in-VMEM transpose) to drop one HBM read+write pass each way.
    x_btd = jnp.transpose(x_bdt, (0, 2, 1)).astype(jnp.float32)   # (B, T, D)
    lens = x_lengths.astype(jnp.int32)
    if B_pad != B:
        x_btd = jnp.pad(x_btd, ((0, B_pad - B), (0, 0), (0, 0)))
        lens = jnp.pad(lens, (0, B_pad - B))

    kernel = functools.partial(
        conformer_adapter_kernel,
        Bblk=Bblk, T=T, D=D, Hff=ff_hidden_size, Hc=conv_hidden_size,
        K=conv_kernel_size, H=mha_num_heads, A=adapter_hidden_size,
        num_prev=num_previous_frames)

    x_spec = pl.BlockSpec((Bblk, T, D), lambda g, lens: (g, 0, 0))

    def w_spec(arr):
        idx = (0,) * arr.ndim
        return pl.BlockSpec(arr.shape, lambda g, lens, idx=idx: idx)

    in_specs = [x_spec] + [w_spec(p) for p in params]

    grid_spec = pltpu.PrefetchScalarGridSpec(
        num_scalar_prefetch=1,
        grid=(B_pad // Bblk,),
        in_specs=in_specs,
        out_specs=pl.BlockSpec((Bblk, T, D), lambda g, lens: (g, 0, 0)),
    )

    out_btd = pl.pallas_call(
        kernel,
        out_shape=jax.ShapeDtypeStruct((B_pad, T, D), jnp.float32),
        grid_spec=grid_spec,
        # Batch blocks are fully independent -> megacore sharding on v7x.
        compiler_params=pltpu.CompilerParams(dimension_semantics=("parallel",)),
    )(lens, x_btd, *params)

    return jnp.transpose(out_btd[:B], (0, 2, 1))                  # back to (B, D, T)


if __name__ == "__main__":
    B, D, T = 2, 32, 16            # batch, input_size, time
    ff_hidden = 64
    conv_hidden = 32
    conv_kernel = 3
    num_heads = 4
    num_prev = 8
    adapter_hidden = 16

    key = jax.random.PRNGKey(0)
    kx, kp = jax.random.split(key)
    x = jax.random.normal(kx, (B, D, T), jnp.float32)
    x_lengths = jnp.array([T, 11], dtype=jnp.int32)
    params = init_params(kp, D, ff_hidden, conv_hidden, conv_kernel,
                         num_heads, adapter_hidden)

    y = causal_conformer_adapter_block(
        x, x_lengths, params,
        ff_hidden_size=ff_hidden, conv_hidden_size=conv_hidden,
        conv_kernel_size=conv_kernel, mha_num_heads=num_heads,
        num_previous_frames=num_prev, adapter_hidden_size=adapter_hidden)
    y = jax.block_until_ready(y)

    assert y.shape == (B, D, T), y.shape
    assert bool(jnp.all(jnp.isfinite(y)))
    print("KERNEL_OK")
</pallas_src>

<mosaic_0001>
module attributes {stable_mosaic.version = 11 : i64} {
  func.func @conformer_adapter_kernel(%arg0: i32, %arg1: memref<2xi32, #tpu.memory_space<smem>>, %arg2: memref<2x16x32xf32, #tpu.memory_space<vmem>>, %arg3: memref<1x32xf32, #tpu.memory_space<vmem>>, %arg4: memref<1x32xf32, #tpu.memory_space<vmem>>, %arg5: memref<32x64xbf16, #tpu.memory_space<vmem>>, %arg6: memref<1x64xf32, #tpu.memory_space<vmem>>, %arg7: memref<64x32xbf16, #tpu.memory_space<vmem>>, %arg8: memref<1x32xf32, #tpu.memory_space<vmem>>, %arg9: memref<1x32xf32, #tpu.memory_space<vmem>>, %arg10: memref<1x32xf32, #tpu.memory_space<vmem>>, %arg11: memref<32x64xbf16, #tpu.memory_space<vmem>>, %arg12: memref<1x64xf32, #tpu.memory_space<vmem>>, %arg13: memref<3x32xf32, #tpu.memory_space<vmem>>, %arg14: memref<1x32xf32, #tpu.memory_space<vmem>>, %arg15: memref<1x32xf32, #tpu.memory_space<vmem>>, %arg16: memref<1x32xf32, #tpu.memory_space<vmem>>, %arg17: memref<1x32xf32, #tpu.memory_space<vmem>>, %arg18: memref<1x32xf32, #tpu.memory_space<vmem>>, %arg19: memref<32x32xbf16, #tpu.memory_space<vmem>>, %arg20: memref<1x32xf32, #tpu.memory_space<vmem>>, %arg21: memref<1x32xf32, #tpu.memory_space<vmem>>, %arg22: memref<1x32xf32, #tpu.memory_space<vmem>>, %arg23: memref<32x32xbf16, #tpu.memory_space<vmem>>, %arg24: memref<1x32xf32, #tpu.memory_space<vmem>>, %arg25: memref<32x32xbf16, #tpu.memory_space<vmem>>, %arg26: memref<1x32xf32, #tpu.memory_space<vmem>>, %arg27: memref<32x32xbf16, #tpu.memory_space<vmem>>, %arg28: memref<1x32xf32, #tpu.memory_space<vmem>>, %arg29: memref<32x32xbf16, #tpu.memory_space<vmem>>, %arg30: memref<1x32xf32, #tpu.memory_space<vmem>>, %arg31: memref<32x16xbf16, #tpu.memory_space<vmem>>, %arg32: memref<1x16xf32, #tpu.memory_space<vmem>>, %arg33: memref<16x32xbf16, #tpu.memory_space<vmem>>, %arg34: memref<1x32xf32, #tpu.memory_space<vmem>>, %arg35: memref<1x32xf32, #tpu.memory_space<vmem>>, %arg36: memref<1x32xf32, #tpu.memory_space<vmem>>, %arg37: memref<32x64xbf16, #tpu.memory_space<vmem>>, %arg38: memref<1x64xf32, #tpu.memory_space<vmem>>, %arg39: memref<64x32xbf16, #tpu.memory_space<vmem>>, %arg40: memref<1x32xf32, #tpu.memory_space<vmem>>, %arg41: memref<1x32xf32, #tpu.memory_space<vmem>>, %arg42: memref<1x32xf32, #tpu.memory_space<vmem>>, %arg43: memref<2x16x32xf32, #tpu.memory_space<vmem>>) attributes {dimension_semantics = [#tpu.dimension_semantics<parallel>], iteration_bounds = array<i64: 1>, scalar_prefetch = 1 : i64, scratch_operands = 0 : i64, tpu.core_type = #tpu.core_type<tc>, window_params = [{transform_indices = @transform_0, window_bounds = array<i64: 2, 16, 32>}, {pipeline_mode = #tpu.pipeline_mode<synchronous>, transform_indices = @transform_1, window_bounds = array<i64: 1, 32>}, {pipeline_mode = #tpu.pipeline_mode<synchronous>, transform_indices = @transform_2, window_bounds = array<i64: 1, 32>}, {pipeline_mode = #tpu.pipeline_mode<synchronous>, transform_indices = @transform_3, window_bounds = array<i64: 32, 64>}, {pipeline_mode = #tpu.pipeline_mode<synchronous>, transform_indices = @transform_4, window_bounds = array<i64: 1, 64>}, {pipeline_mode = #tpu.pipeline_mode<synchronous>, transform_indices = @transform_5, window_bounds = array<i64: 64, 32>}, {pipeline_mode = #tpu.pipeline_mode<synchronous>, transform_indices = @transform_6, window_bounds = array<i64: 1, 32>}, {pipeline_mode = #tpu.pipeline_mode<synchronous>, transform_indices = @transform_7, window_bounds = array<i64: 1, 32>}, {pipeline_mode = #tpu.pipeline_mode<synchronous>, transform_indices = @transform_8, window_bounds = array<i64: 1, 32>}, {pipeline_mode = #tpu.pipeline_mode<synchronous>, transform_indices = @transform_9, window_bounds = array<i64: 32, 64>}, {pipeline_mode = #tpu.pipeline_mode<synchronous>, transform_indices = @transform_10, window_bounds = array<i64: 1, 64>}, {pipeline_mode = #tpu.pipeline_mode<synchronous>, transform_indices = @transform_11, window_bounds = array<i64: 3, 32>}, {pipeline_mode = #tpu.pipeline_mode<synchronous>, transform_indices = @transform_12, window_bounds = array<i64: 1, 32>}, {pipeline_mode = #tpu.pipeline_mode<synchronous>, transform_indices = @transform_13, window_bounds = array<i64: 1, 32>}, {pipeline_mode = #tpu.pipeline_mode<synchronous>, transform_indices = @transform_14, window_bounds = array<i64: 1, 32>}, {pipeline_mode = #tpu.pipeline_mode<synchronous>, transform_indices = @transform_15, window_bounds = array<i64: 1, 32>}, {pipeline_mode = #tpu.pipeline_mode<synchronous>, transform_indices = @transform_16, window_bounds = array<i64: 1, 32>}, {pipeline_mode = #tpu.pipeline_mode<synchronous>, transform_indices = @transform_17, window_bounds = array<i64: 32, 32>}, {pipeline_mode = #tpu.pipeline_mode<synchronous>, transform_indices = @transform_18, window_bounds = array<i64: 1, 32>}, {pipeline_mode = #tpu.pipeline_mode<synchronous>, transform_indices = @transform_19, window_bounds = array<i64: 1, 32>}, {pipeline_mode = #tpu.pipeline_mode<synchronous>, transform_indices = @transform_20, window_bounds = array<i64: 1, 32>}, {pipeline_mode = #tpu.pipeline_mode<synchronous>, transform_indices = @transform_21, window_bounds = array<i64: 32, 32>}, {pipeline_mode = #tpu.pipeline_mode<synchronous>, transform_indices = @transform_22, window_bounds = array<i64: 1, 32>}, {pipeline_mode = #tpu.pipeline_mode<synchronous>, transform_indices = @transform_23, window_bounds = array<i64: 32, 32>}, {pipeline_mode = #tpu.pipeline_mode<synchronous>, transform_indices = @transform_24, window_bounds = array<i64: 1, 32>}, {pipeline_mode = #tpu.pipeline_mode<synchronous>, transform_indices = @transform_25, window_bounds = array<i64: 32, 32>}, {pipeline_mode = #tpu.pipeline_mode<synchronous>, transform_indices = @transform_26, window_bounds = array<i64: 1, 32>}, {pipeline_mode = #tpu.pipeline_mode<synchronous>, transform_indices = @transform_27, window_bounds = array<i64: 32, 32>}, {pipeline_mode = #tpu.pipeline_mode<synchronous>, transform_indices = @transform_28, window_bounds = array<i64: 1, 32>}, {pipeline_mode = #tpu.pipeline_mode<synchronous>, transform_indices = @transform_29, window_bounds = array<i64: 32, 16>}, {pipeline_mode = #tpu.pipeline_mode<synchronous>, transform_indices = @transform_30, window_bounds = array<i64: 1, 16>}, {pipeline_mode = #tpu.pipeline_mode<synchronous>, transform_indices = @transform_31, window_bounds = array<i64: 16, 32>}, {pipeline_mode = #tpu.pipeline_mode<synchronous>, transform_indices = @transform_32, window_bounds = array<i64: 1, 32>}, {pipeline_mode = #tpu.pipeline_mode<synchronous>, transform_indices = @transform_33, window_bounds = array<i64: 1, 32>}, {pipeline_mode = #tpu.pipeline_mode<synchronous>, transform_indices = @transform_34, window_bounds = array<i64: 1, 32>}, {pipeline_mode = #tpu.pipeline_mode<synchronous>, transform_indices = @transform_35, window_bounds = array<i64: 32, 64>}, {pipeline_mode = #tpu.pipeline_mode<synchronous>, transform_indices = @transform_36, window_bounds = array<i64: 1, 64>}, {pipeline_mode = #tpu.pipeline_mode<synchronous>, transform_indices = @transform_37, window_bounds = array<i64: 64, 32>}, {pipeline_mode = #tpu.pipeline_mode<synchronous>, transform_indices = @transform_38, window_bounds = array<i64: 1, 32>}, {pipeline_mode = #tpu.pipeline_mode<synchronous>, transform_indices = @transform_39, window_bounds = array<i64: 1, 32>}, {pipeline_mode = #tpu.pipeline_mode<synchronous>, transform_indices = @transform_40, window_bounds = array<i64: 1, 32>}, {transform_indices = @transform_41, window_bounds = array<i64: 2, 16, 32>}]} {
    %c0 = arith.constant 0 : index
    %c0_0 = arith.constant 0 : index
    %c0_1 = arith.constant 0 : index
    %0 = vector.load %arg2[%c0, %c0_0, %c0_1] : memref<2x16x32xf32, #tpu.memory_space<vmem>>, vector<2x16x32xf32>
    %1 = vector.shape_cast %0 : vector<2x16x32xf32> to vector<32x32xf32>
    %c0_2 = arith.constant 0 : index
    %c0_3 = arith.constant 0 : index
    %2 = vector.load %arg3[%c0_2, %c0_3] : memref<1x32xf32, #tpu.memory_space<vmem>>, vector<1x32xf32>
    %c0_4 = arith.constant 0 : index
    %c0_5 = arith.constant 0 : index
    %3 = vector.load %arg4[%c0_4, %c0_5] : memref<1x32xf32, #tpu.memory_space<vmem>>, vector<1x32xf32>
    %cst = arith.constant dense<0.000000e+00> : vector<32xf32>
    %4 = vector.multi_reduction <add>, %1, %cst [1] : vector<32x32xf32> to vector<32xf32>
    %5 = vector.shape_cast %4 : vector<32xf32> to vector<32x1xf32>
    %cst_6 = arith.constant 3.200000e+01 : f32
    %6 = vector.broadcast %cst_6 : f32 to vector<32x1xf32>
    %7 = arith.divf %5, %6 : vector<32x1xf32>
    %8 = vector.broadcast %7 : vector<32x1xf32> to vector<32x32xf32>
    %9 = arith.subf %1, %8 : vector<32x32xf32>
    %10 = arith.mulf %9, %9 : vector<32x32xf32>
    %cst_7 = arith.constant dense<0.000000e+00> : vector<32xf32>
    %11 = vector.multi_reduction <add>, %10, %cst_7 [1] : vector<32x32xf32> to vector<32xf32>
    %12 = vector.shape_cast %11 : vector<32xf32> to vector<32x1xf32>
    %cst_8 = arith.constant 3.200000e+01 : f32
    %13 = vector.broadcast %cst_8 : f32 to vector<32x1xf32>
    %14 = arith.divf %12, %13 : vector<32x1xf32>
    %15 = vector.broadcast %7 : vector<32x1xf32> to vector<32x32xf32>
    %16 = arith.subf %1, %15 : vector<32x32xf32>
    %cst_9 = arith.constant 9.99999974E-6 : f32
    %17 = vector.broadcast %cst_9 : f32 to vector<32x1xf32>
    %18 = arith.addf %14, %17 : vector<32x1xf32>
    %19 = math.rsqrt %18 : vector<32x1xf32>
    %20 = vector.broadcast %19 : vector<32x1xf32> to vector<32x32xf32>
    %21 = arith.mulf %16, %20 : vector<32x32xf32>
    %22 = vector.broadcast %2 : vector<1x32xf32> to vector<32x32xf32>
    %23 = arith.mulf %21, %22 : vector<32x32xf32>
    %24 = vector.broadcast %3 : vector<1x32xf32> to vector<32x32xf32>
    %25 = arith.addf %23, %24 : vector<32x32xf32>
    %26 = arith.truncf %25 : vector<32x32xf32> to vector<32x32xbf16>
    %c0_10 = arith.constant 0 : index
    %c0_11 = arith.constant 0 : index
    %27 = vector.load %arg5[%c0_10, %c0_11] : memref<32x64xbf16, #tpu.memory_space<vmem>>, vector<32x64xbf16>
    %cst_12 = arith.constant dense<0.000000e+00> : vector<32x64xf32>
    %28 = tpu.matmul %26, %27, %cst_12 {dimension_numbers = #tpu.dot_dimension_numbers<[1], [0], [0], [1], [0, 0, 1, 1], [], []>} : vector<32x32xbf16>, vector<32x64xbf16>, vector<32x64xf32> -> vector<32x64xf32>
    %c0_13 = arith.constant 0 : index
    %c0_14 = arith.constant 0 : index
    %29 = vector.load %arg6[%c0_13, %c0_14] : memref<1x64xf32, #tpu.memory_space<vmem>>, vector<1x64xf32>
    %30 = vector.broadcast %29 : vector<1x64xf32> to vector<32x64xf32>
    %31 = arith.addf %28, %30 : vector<32x64xf32>
    %cst_15 = arith.constant 0.000000e+00 : f32
    %32 = vector.broadcast %cst_15 : f32 to vector<32x64xf32>
    %33 = arith.subf %32, %31 : vector<32x64xf32>
    %34 = math.exp %33 : vector<32x64xf32>
    %cst_16 = arith.constant 1.000000e+00 : f32
    %35 = vector.broadcast %cst_16 : f32 to vector<32x64xf32>
    %36 = arith.addf %35, %34 : vector<32x64xf32>
    %37 = tpu.reciprocal %36 {approx = true} : vector<32x64xf32> -> vector<32x64xf32>
    %38 = arith.mulf %31, %37 : vector<32x64xf32>
    %39 = arith.truncf %38 : vector<32x64xf32> to vector<32x64xbf16>
    %c0_17 = arith.constant 0 : index
    %c0_18 = arith.constant 0 : index
    %40 = vector.load %arg7[%c0_17, %c0_18] : memref<64x32xbf16, #tpu.memory_space<vmem>>, vector<64x32xbf16>
    %cst_19 = arith.constant dense<0.000000e+00> : vector<32x32xf32>
    %41 = tpu.matmul %39, %40, %cst_19 {dimension_numbers = #tpu.dot_dimension_numbers<[1], [0], [0], [1], [0, 0, 1, 1], [], []>} : vector<32x64xbf16>, vector<64x32xbf16>, vector<32x32xf32> -> vector<32x32xf32>
    %c0_20 = arith.constant 0 : index
    %c0_21 = arith.constant 0 : index
    %42 = vector.load %arg8[%c0_20, %c0_21] : memref<1x32xf32, #tpu.memory_space<vmem>>, vector<1x32xf32>
    %43 = vector.broadcast %42 : vector<1x32xf32> to vector<32x32xf32>
    %44 = arith.addf %41, %43 : vector<32x32xf32>
    %cst_22 = arith.constant 5.000000e-01 : f32
    %45 = vector.broadcast %cst_22 : f32 to vector<32x32xf32>
    %46 = arith.mulf %44, %45 : vector<32x32xf32>
    %47 = arith.addf %46, %1 : vector<32x32xf32>
    %c0_23 = arith.constant 0 : index
    %c0_24 = arith.constant 0 : index
    %48 = vector.load %arg9[%c0_23, %c0_24] : memref<1x32xf32, #tpu.memory_space<vmem>>, vector<1x32xf32>
    %c0_25 = arith.constant 0 : index
    %c0_26 = arith.constant 0 : index
    %49 = vector.load %arg10[%c0_25, %c0_26] : memref<1x32xf32, #tpu.memory_space<vmem>>, vector<1x32xf32>
    %cst_27 = arith.constant dense<0.000000e+00> : vector<32xf32>
    %50 = vector.multi_reduction <add>, %47, %cst_27 [1] : vector<32x32xf32> to vector<32xf32>
    %51 = vector.shape_cast %50 : vector<32xf32> to vector<32x1xf32>
    %cst_28 = arith.constant 3.200000e+01 : f32
    %52 = vector.broadcast %cst_28 : f32 to vector<32x1xf32>
    %53 = arith.divf %51, %52 : vector<32x1xf32>
    %54 = vector.broadcast %53 : vector<32x1xf32> to vector<32x32xf32>
    %55 = arith.subf %47, %54 : vector<32x32xf32>
    %56 = arith.mulf %55, %55 : vector<32x32xf32>
    %cst_29 = arith.constant dense<0.000000e+00> : vector<32xf32>
    %57 = vector.multi_reduction <add>, %56, %cst_29 [1] : vector<32x32xf32> to vector<32xf32>
    %58 = vector.shape_cast %57 : vector<32xf32> to vector<32x1xf32>
    %cst_30 = arith.constant 3.200000e+01 : f32
    %59 = vector.broadcast %cst_30 : f32 to vector<32x1xf32>
    %60 = arith.divf %58, %59 : vector<32x1xf32>
    %61 = vector.broadcast %53 : vector<32x1xf32> to vector<32x32xf32>
    %62 = arith.subf %47, %61 : vector<32x32xf32>
    %cst_31 = arith.constant 9.99999974E-6 : f32
    %63 = vector.broadcast %cst_31 : f32 to vector<32x1xf32>
    %64 = arith.addf %60, %63 : vector<32x1xf32>
    %65 = math.rsqrt %64 : vector<32x1xf32>
    %66 = vector.broadcast %65 : vector<32x1xf32> to vector<32x32xf32>
    %67 = arith.mulf %62, %66 : vector<32x32xf32>
    %68 = vector.broadcast %48 : vector<1x32xf32> to vector<32x32xf32>
    %69 = arith.mulf %67, %68 : vector<32x32xf32>
    %70 = vector.broadcast %49 : vector<1x32xf32> to vector<32x32xf32>
    %71 = arith.addf %69, %70 : vector<32x32xf32>
    %72 = arith.truncf %71 : vector<32x32xf32> to vector<32x32xbf16>
    %c0_32 = arith.constant 0 : index
    %c0_33 = arith.constant 0 : index
    %73 = vector.load %arg11[%c0_32, %c0_33] : memref<32x64xbf16, #tpu.memory_space<vmem>>, vector<32x64xbf16>
    %cst_34 = arith.constant dense<0.000000e+00> : vector<32x64xf32>
    %74 = tpu.matmul %72, %73, %cst_34 {dimension_numbers = #tpu.dot_dimension_numbers<[1], [0], [0], [1], [0, 0, 1, 1], [], []>} : vector<32x32xbf16>, vector<32x64xbf16>, vector<32x64xf32> -> vector<32x64xf32>
    %c0_35 = arith.constant 0 : index
    %c0_36 = arith.constant 0 : index
    %75 = vector.load %arg12[%c0_35, %c0_36] : memref<1x64xf32, #tpu.memory_space<vmem>>, vector<1x64xf32>
    %76 = vector.broadcast %75 : vector<1x64xf32> to vector<32x64xf32>
    %77 = arith.addf %74, %76 : vector<32x64xf32>
    %78 = vector.extract_strided_slice %77 {offsets = [0, 0], sizes = [32, 32], strides = [1, 1]} : vector<32x64xf32> to vector<32x32xf32>
    %79 = vector.extract_strided_slice %77 {offsets = [0, 32], sizes = [32, 32], strides = [1, 1]} : vector<32x64xf32> to vector<32x32xf32>
    %cst_37 = arith.constant 0.000000e+00 : f32
    %80 = vector.broadcast %cst_37 : f32 to vector<32x32xf32>
    %81 = arith.subf %80, %79 : vector<32x32xf32>
    %82 = math.exp %81 : vector<32x32xf32>
    %cst_38 = arith.constant 1.000000e+00 : f32
    %83 = vector.broadcast %cst_38 : f32 to vector<32x32xf32>
    %84 = arith.addf %83, %82 : vector<32x32xf32>
    %85 = tpu.reciprocal %84 {approx = true} : vector<32x32xf32> -> vector<32x32xf32>
    %86 = arith.mulf %78, %85 : vector<32x32xf32>
    %87 = tpu.iota {dimensions = array<i32: 0>} : vector<32x32xi32>
    %c16_i32 = arith.constant 16 : i32
    %c0_i32 = arith.constant 0 : i32
    %88 = arith.cmpi eq, %c16_i32, %c0_i32 : i32
    %c1_i32 = arith.constant 1 : i32
    %89 = arith.select %88, %c1_i32, %c16_i32 : i32
    %90 = vector.broadcast %89 : i32 to vector<32x32xi32>
    %91 = arith.remsi %87, %90 : vector<32x32xi32>
    %c0_i32_39 = arith.constant 0 : i32
    %92 = vector.broadcast %c0_i32_39 : i32 to vector<32x32xi32>
    %93 = arith.cmpi ne, %91, %92 : vector<32x32xi32>
    %c0_i32_40 = arith.constant 0 : i32
    %94 = vector.broadcast %c0_i32_40 : i32 to vector<32x32xi32>
    %95 = arith.cmpi slt, %91, %94 : vector<32x32xi32>
    %c0_i32_41 = arith.constant 0 : i32
    %96 = arith.cmpi slt, %89, %c0_i32_41 : i32
    %97 = vector.broadcast %96 : i1 to vector<32x32xi1>
    %98 = vector.broadcast %97 : vector<32x32xi1> to vector<32x32xi1>
    %99 = arith.xori %95, %98 : vector<32x32xi1>
    %100 = arith.andi %99, %93 : vector<32x32xi1>
    %101 = vector.broadcast %89 : i32 to vector<32x32xi32>
    %102 = arith.addi %91, %101 : vector<32x32xi32>
    %103 = arith.select %100, %102, %91 : vector<32x32xi1>, vector<32x32xi32>
    %c0_42 = arith.constant 0 : index
    %c0_43 = arith.constant 0 : index
    %104 = vector.load %arg13[%c0_42, %c0_43] : memref<3x32xf32, #tpu.memory_space<vmem>>, vector<3x32xf32>
    %cst_44 = arith.constant 0.000000e+00 : f32
    %105 = vector.broadcast %cst_44 : f32 to vector<32x32xf32>
    %c2_i32 = arith.constant 2 : i32
    %106 = vector.broadcast %c2_i32 : i32 to vector<32x32xi32>
    %107 = arith.cmpi sge, %103, %106 : vector<32x32xi32>
    %c2_i32_45 = arith.constant 2 : i32
    %108 = tpu.dynamic_rotate %86 by %c2_i32_45 dim 0 : vector<32x32xf32>, i32 -> vector<32x32xf32>
    %cst_46 = arith.constant 0.000000e+00 : f32
    %109 = vector.broadcast %cst_46 : f32 to vector<32x32xf32>
    %110 = arith.select %107, %108, %109 : vector<32x32xi1>, vector<32x32xf32>
    %111 = vector.extract_strided_slice %104 {offsets = [0, 0], sizes = [1, 32], strides = [1, 1]} : vector<3x32xf32> to vector<1x32xf32>
    %112 = vector.broadcast %111 : vector<1x32xf32> to vector<32x32xf32>
    %113 = arith.mulf %110, %112 : vector<32x32xf32>
    %114 = arith.addf %105, %113 : vector<32x32xf32>
    %c1_i32_47 = arith.constant 1 : i32
    %115 = vector.broadcast %c1_i32_47 : i32 to vector<32x32xi32>
    %116 = arith.cmpi sge, %103, %115 : vector<32x32xi32>
    %c1_i32_48 = arith.constant 1 : i32
    %117 = tpu.dynamic_rotate %86 by %c1_i32_48 dim 0 : vector<32x32xf32>, i32 -> vector<32x32xf32>
    %cst_49 = arith.constant 0.000000e+00 : f32
    %118 = vector.broadcast %cst_49 : f32 to vector<32x32xf32>
    %119 = arith.select %116, %117, %118 : vector<32x32xi1>, vector<32x32xf32>
    %120 = vector.extract_strided_slice %104 {offsets = [1, 0], sizes = [1, 32], strides = [1, 1]} : vector<3x32xf32> to vector<1x32xf32>
    %121 = vector.broadcast %120 : vector<1x32xf32> to vector<32x32xf32>
    %122 = arith.mulf %119, %121 : vector<32x32xf32>
    %123 = arith.addf %114, %122 : vector<32x32xf32>
    %124 = vector.extract_strided_slice %104 {offsets = [2, 0], sizes = [1, 32], strides = [1, 1]} : vector<3x32xf32> to vector<1x32xf32>
    %125 = vector.broadcast %124 : vector<1x32xf32> to vector<32x32xf32>
    %126 = arith.mulf %86, %125 : vector<32x32xf32>
    %127 = arith.addf %123, %126 : vector<32x32xf32>
    %c0_50 = arith.constant 0 : index
    %c0_51 = arith.constant 0 : index
    %128 = vector.load %arg14[%c0_50, %c0_51] : memref<1x32xf32, #tpu.memory_space<vmem>>, vector<1x32xf32>
    %129 = vector.broadcast %128 : vector<1x32xf32> to vector<32x32xf32>
    %130 = arith.addf %127, %129 : vector<32x32xf32>
    %c0_52 = arith.constant 0 : index
    %c0_53 = arith.constant 0 : index
    %131 = vector.load %arg15[%c0_52, %c0_53] : memref<1x32xf32, #tpu.memory_space<vmem>>, vector<1x32xf32>
    %132 = vector.broadcast %131 : vector<1x32xf32> to vector<32x32xf32>
    %133 = arith.subf %130, %132 : vector<32x32xf32>
    %c0_54 = arith.constant 0 : index
    %c0_55 = arith.constant 0 : index
    %134 = vector.load %arg16[%c0_54, %c0_55] : memref<1x32xf32, #tpu.memory_space<vmem>>, vector<1x32xf32>
    %cst_56 = arith.constant 9.99999974E-6 : f32
    %135 = vector.broadcast %cst_56 : f32 to vector<1x32xf32>
    %136 = arith.addf %134, %135 : vector<1x32xf32>
    %137 = math.rsqrt %136 : vector<1x32xf32>
    %138 = vector.broadcast %137 : vector<1x32xf32> to vector<32x32xf32>
    %139 = arith.mulf %133, %138 : vector<32x32xf32>
    %c0_57 = arith.constant 0 : index
    %c0_58 = arith.constant 0 : index
    %140 = vector.load %arg17[%c0_57, %c0_58] : memref<1x32xf32, #tpu.memory_space<vmem>>, vector<1x32xf32>
    %141 = vector.broadcast %140 : vector<1x32xf32> to vector<32x32xf32>
    %142 = arith.mulf %139, %141 : vector<32x32xf32>
    %c0_59 = arith.constant 0 : index
    %c0_60 = arith.constant 0 : index
    %143 = vector.load %arg18[%c0_59, %c0_60] : memref<1x32xf32, #tpu.memory_space<vmem>>, vector<1x32xf32>
    %144 = vector.broadcast %143 : vector<1x32xf32> to vector<32x32xf32>
    %145 = arith.addf %142, %144 : vector<32x32xf32>
    %cst_61 = arith.constant 0.000000e+00 : f32
    %146 = vector.broadcast %cst_61 : f32 to vector<32x32xf32>
    %147 = arith.subf %146, %145 : vector<32x32xf32>
    %148 = math.exp %147 : vector<32x32xf32>
    %cst_62 = arith.constant 1.000000e+00 : f32
    %149 = vector.broadcast %cst_62 : f32 to vector<32x32xf32>
    %150 = arith.addf %149, %148 : vector<32x32xf32>
    %151 = tpu.reciprocal %150 {approx = true} : vector<32x32xf32> -> vector<32x32xf32>
    %152 = arith.mulf %145, %151 : vector<32x32xf32>
    %153 = arith.truncf %152 : vector<32x32xf32> to vector<32x32xbf16>
    %c0_63 = arith.constant 0 : index
    %c0_64 = arith.constant 0 : index
    %154 = vector.load %arg19[%c0_63, %c0_64] : memref<32x32xbf16, #tpu.memory_space<vmem>>, vector<32x32xbf16>
    %cst_65 = arith.constant dense<0.000000e+00> : vector<32x32xf32>
    %155 = tpu.matmul %153, %154, %cst_65 {dimension_numbers = #tpu.dot_dimension_numbers<[1], [0], [0], [1], [0, 0, 1, 1], [], []>} : vector<32x32xbf16>, vector<32x32xbf16>, vector<32x32xf32> -> vector<32x32xf32>
    %c0_66 = arith.constant 0 : index
    %c0_67 = arith.constant 0 : index
    %156 = vector.load %arg20[%c0_66, %c0_67] : memref<1x32xf32, #tpu.memory_space<vmem>>, vector<1x32xf32>
    %157 = vector.broadcast %156 : vector<1x32xf32> to vector<32x32xf32>
    %158 = arith.addf %155, %157 : vector<32x32xf32>
    %159 = arith.addf %158, %47 : vector<32x32xf32>
    %c0_68 = arith.constant 0 : index
    %c0_69 = arith.constant 0 : index
    %160 = vector.load %arg21[%c0_68, %c0_69] : memref<1x32xf32, #tpu.memory_space<vmem>>, vector<1x32xf32>
    %c0_70 = arith.constant 0 : index
    %c0_71 = arith.constant 0 : index
    %161 = vector.load %arg22[%c0_70, %c0_71] : memref<1x32xf32, #tpu.memory_space<vmem>>, vector<1x32xf32>
    %cst_72 = arith.constant dense<0.000000e+00> : vector<32xf32>
    %162 = vector.multi_reduction <add>, %159, %cst_72 [1] : vector<32x32xf32> to vector<32xf32>
    %163 = vector.shape_cast %162 : vector<32xf32> to vector<32x1xf32>
    %cst_73 = arith.constant 3.200000e+01 : f32
    %164 = vector.broadcast %cst_73 : f32 to vector<32x1xf32>
    %165 = arith.divf %163, %164 : vector<32x1xf32>
    %166 = vector.broadcast %165 : vector<32x1xf32> to vector<32x32xf32>
    %167 = arith.subf %159, %166 : vector<32x32xf32>
    %168 = arith.mulf %167, %167 : vector<32x32xf32>
    %cst_74 = arith.constant dense<0.000000e+00> : vector<32xf32>
    %169 = vector.multi_reduction <add>, %168, %cst_74 [1] : vector<32x32xf32> to vector<32xf32>
    %170 = vector.shape_cast %169 : vector<32xf32> to vector<32x1xf32>
    %cst_75 = arith.constant 3.200000e+01 : f32
    %171 = vector.broadcast %cst_75 : f32 to vector<32x1xf32>
    %172 = arith.divf %170, %171 : vector<32x1xf32>
    %173 = vector.broadcast %165 : vector<32x1xf32> to vector<32x32xf32>
    %174 = arith.subf %159, %173 : vector<32x32xf32>
    %cst_76 = arith.constant 9.99999974E-6 : f32
    %175 = vector.broadcast %cst_76 : f32 to vector<32x1xf32>
    %176 = arith.addf %172, %175 : vector<32x1xf32>
    %177 = math.rsqrt %176 : vector<32x1xf32>
    %178 = vector.broadcast %177 : vector<32x1xf32> to vector<32x32xf32>
    %179 = arith.mulf %174, %178 : vector<32x32xf32>
    %180 = vector.broadcast %160 : vector<1x32xf32> to vector<32x32xf32>
    %181 = arith.mulf %179, %180 : vector<32x32xf32>
    %182 = vector.broadcast %161 : vector<1x32xf32> to vector<32x32xf32>
    %183 = arith.addf %181, %182 : vector<32x32xf32>
    %184 = arith.truncf %183 : vector<32x32xf32> to vector<32x32xbf16>
    %c0_77 = arith.constant 0 : index
    %c0_78 = arith.constant 0 : index
    %185 = vector.load %arg23[%c0_77, %c0_78] : memref<32x32xbf16, #tpu.memory_space<vmem>>, vector<32x32xbf16>
    %cst_79 = arith.constant dense<0.000000e+00> : vector<32x32xf32>
    %186 = tpu.matmul %184, %185, %cst_79 {dimension_numbers = #tpu.dot_dimension_numbers<[1], [0], [0], [1], [0, 0, 1, 1], [], []>} : vector<32x32xbf16>, vector<32x32xbf16>, vector<32x32xf32> -> vector<32x32xf32>
    %c0_80 = arith.constant 0 : index
    %c0_81 = arith.constant 0 : index
    %187 = vector.load %arg24[%c0_80, %c0_81] : memref<1x32xf32, #tpu.memory_space<vmem>>, vector<1x32xf32>
    %188 = vector.broadcast %187 : vector<1x32xf32> to vector<32x32xf32>
    %189 = arith.addf %186, %188 : vector<32x32xf32>
    %190 = arith.truncf %183 : vector<32x32xf32> to vector<32x32xbf16>
    %c0_82 = arith.constant 0 : index
    %c0_83 = arith.constant 0 : index
    %191 = vector.load %arg25[%c0_82, %c0_83] : memref<32x32xbf16, #tpu.memory_space<vmem>>, vector<32x32xbf16>
    %cst_84 = arith.constant dense<0.000000e+00> : vector<32x32xf32>
    %192 = tpu.matmul %190, %191, %cst_84 {dimension_numbers = #tpu.dot_dimension_numbers<[1], [0], [0], [1], [0, 0, 1, 1], [], []>} : vector<32x32xbf16>, vector<32x32xbf16>, vector<32x32xf32> -> vector<32x32xf32>
    %c0_85 = arith.constant 0 : index
    %c0_86 = arith.constant 0 : index
    %193 = vector.load %arg26[%c0_85, %c0_86] : memref<1x32xf32, #tpu.memory_space<vmem>>, vector<1x32xf32>
    %194 = vector.broadcast %193 : vector<1x32xf32> to vector<32x32xf32>
    %195 = arith.addf %192, %194 : vector<32x32xf32>
    %196 = arith.truncf %183 : vector<32x32xf32> to vector<32x32xbf16>
    %c0_87 = arith.constant 0 : index
    %c0_88 = arith.constant 0 : index
    %197 = vector.load %arg27[%c0_87, %c0_88] : memref<32x32xbf16, #tpu.memory_space<vmem>>, vector<32x32xbf16>
    %cst_89 = arith.constant dense<0.000000e+00> : vector<32x32xf32>
    %198 = tpu.matmul %196, %197, %cst_89 {dimension_numbers = #tpu.dot_dimension_numbers<[1], [0], [0], [1], [0, 0, 1, 1], [], []>} : vector<32x32xbf16>, vector<32x32xbf16>, vector<32x32xf32> -> vector<32x32xf32>
    %c0_90 = arith.constant 0 : index
    %c0_91 = arith.constant 0 : index
    %199 = vector.load %arg28[%c0_90, %c0_91] : memref<1x32xf32, #tpu.memory_space<vmem>>, vector<1x32xf32>
    %200 = vector.broadcast %199 : vector<1x32xf32> to vector<32x32xf32>
    %201 = arith.addf %198, %200 : vector<32x32xf32>
    %202 = tpu.iota {dimensions = array<i32: 0>} : vector<16x16xi32>
    %203 = tpu.iota {dimensions = array<i32: 1>} : vector<16x16xi32>
    %204 = arith.cmpi sle, %203, %202 : vector<16x16xi32>
    %205 = arith.subi %202, %203 : vector<16x16xi32>
    %c8_i32 = arith.constant 8 : i32
    %206 = vector.broadcast %c8_i32 : i32 to vector<16x16xi32>
    %207 = arith.cmpi sle, %205, %206 : vector<16x16xi32>
    %208 = arith.andi %204, %207 : vector<16x16xi1>
    %c2_i32_92 = arith.constant 2 : i32
    %209 = arith.muli %arg0, %c2_i32_92 : i32
    %c0_i32_93 = arith.constant 0 : i32
    %210 = arith.addi %209, %c0_i32_93 : i32
    %211 = arith.index_cast %210 : i32 to index
    %212 = memref.load %arg1[%211] : memref<2xi32, #tpu.memory_space<smem>>
    %213 = vector.broadcast %212 : i32 to vector<16x16xi32>
    %214 = arith.cmpi slt, %203, %213 : vector<16x16xi32>
    %215 = arith.andi %208, %214 : vector<16x16xi1>
    %cst_94 = arith.constant 0.000000e+00 : f32
    %cst_95 = arith.constant -1.000000e+30 : f32
    %216 = vector.broadcast %cst_94 : f32 to vector<16x16xf32>
    %217 = vector.broadcast %cst_95 : f32 to vector<16x16xf32>
    %218 = arith.select %215, %216, %217 : vector<16x16xi1>, vector<16x16xf32>
    %219 = vector.extract_strided_slice %189 {offsets = [0, 0], sizes = [16, 32], strides = [1, 1]} : vector<32x32xf32> to vector<16x32xf32>
    %220 = vector.extract_strided_slice %195 {offsets = [0, 0], sizes = [16, 32], strides = [1, 1]} : vector<32x32xf32> to vector<16x32xf32>
    %221 = vector.extract_strided_slice %201 {offsets = [0, 0], sizes = [16, 32], strides = [1, 1]} : vector<32x32xf32> to vector<16x32xf32>
    %222 = vector.extract_strided_slice %219 {offsets = [0, 0], sizes = [16, 8], strides = [1, 1]} : vector<16x32xf32> to vector<16x8xf32>
    %223 = arith.truncf %222 : vector<16x8xf32> to vector<16x8xbf16>
    %224 = vector.extract_strided_slice %220 {offsets = [0, 0], sizes = [16, 8], strides = [1, 1]} : vector<16x32xf32> to vector<16x8xf32>
    %225 = arith.truncf %224 : vector<16x8xf32> to vector<16x8xbf16>
    %cst_96 = arith.constant dense<0.000000e+00> : vector<16x16xf32>
    %226 = tpu.matmul %223, %225, %cst_96 {dimension_numbers = #tpu.dot_dimension_numbers<[1], [1], [0], [0], [0, 0, 1, 0], [], []>} : vector<16x8xbf16>, vector<16x8xbf16>, vector<16x16xf32> -> vector<16x16xf32>
    %cst_97 = arith.constant 0.353553385 : f32
    %227 = vector.broadcast %cst_97 : f32 to vector<16x16xf32>
    %228 = arith.mulf %226, %227 : vector<16x16xf32>
    %229 = arith.addf %228, %218 : vector<16x16xf32>
    %cst_98 = arith.constant dense<0xFF800000> : vector<16xf32>
    %230 = vector.multi_reduction <maximumf>, %229, %cst_98 [1] : vector<16x16xf32> to vector<16xf32>
    %231 = vector.shape_cast %230 : vector<16xf32> to vector<16x1xf32>
    %232 = vector.broadcast %231 : vector<16x1xf32> to vector<16x16xf32>
    %233 = arith.subf %229, %232 : vector<16x16xf32>
    %234 = math.exp %233 : vector<16x16xf32>
    %cst_99 = arith.constant dense<0.000000e+00> : vector<16xf32>
    %235 = vector.multi_reduction <add>, %234, %cst_99 [1] : vector<16x16xf32> to vector<16xf32>
    %236 = vector.shape_cast %235 : vector<16xf32> to vector<16x1xf32>
    %237 = tpu.reciprocal %236 {approx = true} : vector<16x1xf32> -> vector<16x1xf32>
    %238 = vector.broadcast %237 : vector<16x1xf32> to vector<16x16xf32>
    %239 = arith.mulf %234, %238 : vector<16x16xf32>
    %240 = arith.truncf %239 : vector<16x16xf32> to vector<16x16xbf16>
    %241 = vector.extract_strided_slice %221 {offsets = [0, 0], sizes = [16, 8], strides = [1, 1]} : vector<16x32xf32> to vector<16x8xf32>
    %242 = arith.truncf %241 : vector<16x8xf32> to vector<16x8xbf16>
    %cst_100 = arith.constant dense<0.000000e+00> : vector<16x8xf32>
    %243 = tpu.matmul %240, %242, %cst_100 {dimension_numbers = #tpu.dot_dimension_numbers<[1], [0], [0], [1], [0, 0, 1, 1], [], []>} : vector<16x16xbf16>, vector<16x8xbf16>, vector<16x8xf32> -> vector<16x8xf32>
    %244 = vector.extract_strided_slice %219 {offsets = [0, 8], sizes = [16, 8], strides = [1, 1]} : vector<16x32xf32> to vector<16x8xf32>
    %245 = arith.truncf %244 : vector<16x8xf32> to vector<16x8xbf16>
    %246 = vector.extract_strided_slice %220 {offsets = [0, 8], sizes = [16, 8], strides = [1, 1]} : vector<16x32xf32> to vector<16x8xf32>
    %247 = arith.truncf %246 : vector<16x8xf32> to vector<16x8xbf16>
    %cst_101 = arith.constant dense<0.000000e+00> : vector<16x16xf32>
    %248 = tpu.matmul %245, %247, %cst_101 {dimension_numbers = #tpu.dot_dimension_numbers<[1], [1], [0], [0], [0, 0, 1, 0], [], []>} : vector<16x8xbf16>, vector<16x8xbf16>, vector<16x16xf32> -> vector<16x16xf32>
    %cst_102 = arith.constant 0.353553385 : f32
    %249 = vector.broadcast %cst_102 : f32 to vector<16x16xf32>
    %250 = arith.mulf %248, %249 : vector<16x16xf32>
    %251 = arith.addf %250, %218 : vector<16x16xf32>
    %cst_103 = arith.constant dense<0xFF800000> : vector<16xf32>
    %252 = vector.multi_reduction <maximumf>, %251, %cst_103 [1] : vector<16x16xf32> to vector<16xf32>
    %253 = vector.shape_cast %252 : vector<16xf32> to vector<16x1xf32>
    %254 = vector.broadcast %253 : vector<16x1xf32> to vector<16x16xf32>
    %255 = arith.subf %251, %254 : vector<16x16xf32>
    %256 = math.exp %255 : vector<16x16xf32>
    %cst_104 = arith.constant dense<0.000000e+00> : vector<16xf32>
    %257 = vector.multi_reduction <add>, %256, %cst_104 [1] : vector<16x16xf32> to vector<16xf32>
    %258 = vector.shape_cast %257 : vector<16xf32> to vector<16x1xf32>
    %259 = tpu.reciprocal %258 {approx = true} : vector<16x1xf32> -> vector<16x1xf32>
    %260 = vector.broadcast %259 : vector<16x1xf32> to vector<16x16xf32>
    %261 = arith.mulf %256, %260 : vector<16x16xf32>
    %262 = arith.truncf %261 : vector<16x16xf32> to vector<16x16xbf16>
    %263 = vector.extract_strided_slice %221 {offsets = [0, 8], sizes = [16, 8], strides = [1, 1]} : vector<16x32xf32> to vector<16x8xf32>
    %264 = arith.truncf %263 : vector<16x8xf32> to vector<16x8xbf16>
    %cst_105 = arith.constant dense<0.000000e+00> : vector<16x8xf32>
    %265 = tpu.matmul %262, %264, %cst_105 {dimension_numbers = #tpu.dot_dimension_numbers<[1], [0], [0], [1], [0, 0, 1, 1], [], []>} : vector<16x16xbf16>, vector<16x8xbf16>, vector<16x8xf32> -> vector<16x8xf32>
    %266 = vector.extract_strided_slice %219 {offsets = [0, 16], sizes = [16, 8], strides = [1, 1]} : vector<16x32xf32> to vector<16x8xf32>
    %267 = arith.truncf %266 : vector<16x8xf32> to vector<16x8xbf16>
    %268 = vector.extract_strided_slice %220 {offsets = [0, 16], sizes = [16, 8], strides = [1, 1]} : vector<16x32xf32> to vector<16x8xf32>
    %269 = arith.truncf %268 : vector<16x8xf32> to vector<16x8xbf16>
    %cst_106 = arith.constant dense<0.000000e+00> : vector<16x16xf32>
    %270 = tpu.matmul %267, %269, %cst_106 {dimension_numbers = #tpu.dot_dimension_numbers<[1], [1], [0], [0], [0, 0, 1, 0], [], []>} : vector<16x8xbf16>, vector<16x8xbf16>, vector<16x16xf32> -> vector<16x16xf32>
    %cst_107 = arith.constant 0.353553385 : f32
    %271 = vector.broadcast %cst_107 : f32 to vector<16x16xf32>
    %272 = arith.mulf %270, %271 : vector<16x16xf32>
    %273 = arith.addf %272, %218 : vector<16x16xf32>
    %cst_108 = arith.constant dense<0xFF800000> : vector<16xf32>
    %274 = vector.multi_reduction <maximumf>, %273, %cst_108 [1] : vector<16x16xf32> to vector<16xf32>
    %275 = vector.shape_cast %274 : vector<16xf32> to vector<16x1xf32>
    %276 = vector.broadcast %275 : vector<16x1xf32> to vector<16x16xf32>
    %277 = arith.subf %273, %276 : vector<16x16xf32>
    %278 = math.exp %277 : vector<16x16xf32>
    %cst_109 = arith.constant dense<0.000000e+00> : vector<16xf32>
    %279 = vector.multi_reduction <add>, %278, %cst_109 [1] : vector<16x16xf32> to vector<16xf32>
    %280 = vector.shape_cast %279 : vector<16xf32> to vector<16x1xf32>
    %281 = tpu.reciprocal %280 {approx = true} : vector<16x1xf32> -> vector<16x1xf32>
    %282 = vector.broadcast %281 : vector<16x1xf32> to vector<16x16xf32>
    %283 = arith.mulf %278, %282 : vector<16x16xf32>
    %284 = arith.truncf %283 : vector<16x16xf32> to vector<16x16xbf16>
    %285 = vector.extract_strided_slice %221 {offsets = [0, 16], sizes = [16, 8], strides = [1, 1]} : vector<16x32xf32> to vector<16x8xf32>
    %286 = arith.truncf %285 : vector<16x8xf32> to vector<16x8xbf16>
    %cst_110 = arith.constant dense<0.000000e+00> : vector<16x8xf32>
    %287 = tpu.matmul %284, %286, %cst_110 {dimension_numbers = #tpu.dot_dimension_numbers<[1], [0], [0], [1], [0, 0, 1, 1], [], []>} : vector<16x16xbf16>, vector<16x8xbf16>, vector<16x8xf32> -> vector<16x8xf32>
    %288 = vector.extract_strided_slice %219 {offsets = [0, 24], sizes = [16, 8], strides = [1, 1]} : vector<16x32xf32> to vector<16x8xf32>
    %289 = arith.truncf %288 : vector<16x8xf32> to vector<16x8xbf16>
    %290 = vector.extract_strided_slice %220 {offsets = [0, 24], sizes = [16, 8], strides = [1, 1]} : vector<16x32xf32> to vector<16x8xf32>
    %291 = arith.truncf %290 : vector<16x8xf32> to vector<16x8xbf16>
    %cst_111 = arith.constant dense<0.000000e+00> : vector<16x16xf32>
    %292 = tpu.matmul %289, %291, %cst_111 {dimension_numbers = #tpu.dot_dimension_numbers<[1], [1], [0], [0], [0, 0, 1, 0], [], []>} : vector<16x8xbf16>, vector<16x8xbf16>, vector<16x16xf32> -> vector<16x16xf32>
    %cst_112 = arith.constant 0.353553385 : f32
    %293 = vector.broadcast %cst_112 : f32 to vector<16x16xf32>
    %294 = arith.mulf %292, %293 : vector<16x16xf32>
    %295 = arith.addf %294, %218 : vector<16x16xf32>
    %cst_113 = arith.constant dense<0xFF800000> : vector<16xf32>
    %296 = vector.multi_reduction <maximumf>, %295, %cst_113 [1] : vector<16x16xf32> to vector<16xf32>
    %297 = vector.shape_cast %296 : vector<16xf32> to vector<16x1xf32>
    %298 = vector.broadcast %297 : vector<16x1xf32> to vector<16x16xf32>
    %299 = arith.subf %295, %298 : vector<16x16xf32>
    %300 = math.exp %299 : vector<16x16xf32>
    %cst_114 = arith.constant dense<0.000000e+00> : vector<16xf32>
    %301 = vector.multi_reduction <add>, %300, %cst_114 [1] : vector<16x16xf32> to vector<16xf32>
    %302 = vector.shape_cast %301 : vector<16xf32> to vector<16x1xf32>
    %303 = tpu.reciprocal %302 {approx = true} : vector<16x1xf32> -> vector<16x1xf32>
    %304 = vector.broadcast %303 : vector<16x1xf32> to vector<16x16xf32>
    %305 = arith.mulf %300, %304 : vector<16x16xf32>
    %306 = arith.truncf %305 : vector<16x16xf32> to vector<16x16xbf16>
    %307 = vector.extract_strided_slice %221 {offsets = [0, 24], sizes = [16, 8], strides = [1, 1]} : vector<16x32xf32> to vector<16x8xf32>
    %308 = arith.truncf %307 : vector<16x8xf32> to vector<16x8xbf16>
    %cst_115 = arith.constant dense<0.000000e+00> : vector<16x8xf32>
    %309 = tpu.matmul %306, %308, %cst_115 {dimension_numbers = #tpu.dot_dimension_numbers<[1], [0], [0], [1], [0, 0, 1, 1], [], []>} : vector<16x16xbf16>, vector<16x8xbf16>, vector<16x8xf32> -> vector<16x8xf32>
    %310 = tpu.concatenate %243, %265, %287, %309 in 1 : vector<16x8xf32>, vector<16x8xf32>, vector<16x8xf32>, vector<16x8xf32> -> vector<16x32xf32>
    %c1_i32_116 = arith.constant 1 : i32
    %311 = arith.addi %209, %c1_i32_116 : i32
    %312 = arith.index_cast %311 : i32 to index
    %313 = memref.load %arg1[%312] : memref<2xi32, #tpu.memory_space<smem>>
    %314 = vector.broadcast %313 : i32 to vector<16x16xi32>
    %315 = arith.cmpi slt, %203, %314 : vector<16x16xi32>
    %316 = arith.andi %208, %315 : vector<16x16xi1>
    %cst_117 = arith.constant 0.000000e+00 : f32
    %cst_118 = arith.constant -1.000000e+30 : f32
    %317 = vector.broadcast %cst_117 : f32 to vector<16x16xf32>
    %318 = vector.broadcast %cst_118 : f32 to vector<16x16xf32>
    %319 = arith.select %316, %317, %318 : vector<16x16xi1>, vector<16x16xf32>
    %320 = vector.extract_strided_slice %189 {offsets = [16, 0], sizes = [16, 32], strides = [1, 1]} : vector<32x32xf32> to vector<16x32xf32>
    %321 = vector.extract_strided_slice %195 {offsets = [16, 0], sizes = [16, 32], strides = [1, 1]} : vector<32x32xf32> to vector<16x32xf32>
    %322 = vector.extract_strided_slice %201 {offsets = [16, 0], sizes = [16, 32], strides = [1, 1]} : vector<32x32xf32> to vector<16x32xf32>
    %323 = vector.extract_strided_slice %320 {offsets = [0, 0], sizes = [16, 8], strides = [1, 1]} : vector<16x32xf32> to vector<16x8xf32>
    %324 = arith.truncf %323 : vector<16x8xf32> to vector<16x8xbf16>
    %325 = vector.extract_strided_slice %321 {offsets = [0, 0], sizes = [16, 8], strides = [1, 1]} : vector<16x32xf32> to vector<16x8xf32>
    %326 = arith.truncf %325 : vector<16x8xf32> to vector<16x8xbf16>
    %cst_119 = arith.constant dense<0.000000e+00> : vector<16x16xf32>
    %327 = tpu.matmul %324, %326, %cst_119 {dimension_numbers = #tpu.dot_dimension_numbers<[1], [1], [0], [0], [0, 0, 1, 0], [], []>} : vector<16x8xbf16>, vector<16x8xbf16>, vector<16x16xf32> -> vector<16x16xf32>
    %cst_120 = arith.constant 0.353553385 : f32
    %328 = vector.broadcast %cst_120 : f32 to vector<16x16xf32>
    %329 = arith.mulf %327, %328 : vector<16x16xf32>
    %330 = arith.addf %329, %319 : vector<16x16xf32>
    %cst_121 = arith.constant dense<0xFF800000> : vector<16xf32>
    %331 = vector.multi_reduction <maximumf>, %330, %cst_121 [1] : vector<16x16xf32> to vector<16xf32>
    %332 = vector.shape_cast %331 : vector<16xf32> to vector<16x1xf32>
    %333 = vector.broadcast %332 : vector<16x1xf32> to vector<16x16xf32>
    %334 = arith.subf %330, %333 : vector<16x16xf32>
    %335 = math.exp %334 : vector<16x16xf32>
    %cst_122 = arith.constant dense<0.000000e+00> : vector<16xf32>
    %336 = vector.multi_reduction <add>, %335, %cst_122 [1] : vector<16x16xf32> to vector<16xf32>
    %337 = vector.shape_cast %336 : vector<16xf32> to vector<16x1xf32>
    %338 = tpu.reciprocal %337 {approx = true} : vector<16x1xf32> -> vector<16x1xf32>
    %339 = vector.broadcast %338 : vector<16x1xf32> to vector<16x16xf32>
    %340 = arith.mulf %335, %339 : vector<16x16xf32>
    %341 = arith.truncf %340 : vector<16x16xf32> to vector<16x16xbf16>
    %342 = vector.extract_strided_slice %322 {offsets = [0, 0], sizes = [16, 8], strides = [1, 1]} : vector<16x32xf32> to vector<16x8xf32>
    %343 = arith.truncf %342 : vector<16x8xf32> to vector<16x8xbf16>
    %cst_123 = arith.constant dense<0.000000e+00> : vector<16x8xf32>
    %344 = tpu.matmul %341, %343, %cst_123 {dimension_numbers = #tpu.dot_dimension_numbers<[1], [0], [0], [1], [0, 0, 1, 1], [], []>} : vector<16x16xbf16>, vector<16x8xbf16>, vector<16x8xf32> -> vector<16x8xf32>
    %345 = vector.extract_strided_slice %320 {offsets = [0, 8], sizes = [16, 8], strides = [1, 1]} : vector<16x32xf32> to vector<16x8xf32>
    %346 = arith.truncf %345 : vector<16x8xf32> to vector<16x8xbf16>
    %347 = vector.extract_strided_slice %321 {offsets = [0, 8], sizes = [16, 8], strides = [1, 1]} : vector<16x32xf32> to vector<16x8xf32>
    %348 = arith.truncf %347 : vector<16x8xf32> to vector<16x8xbf16>
    %cst_124 = arith.constant dense<0.000000e+00> : vector<16x16xf32>
    %349 = tpu.matmul %346, %348, %cst_124 {dimension_numbers = #tpu.dot_dimension_numbers<[1], [1], [0], [0], [0, 0, 1, 0], [], []>} : vector<16x8xbf16>, vector<16x8xbf16>, vector<16x16xf32> -> vector<16x16xf32>
    %cst_125 = arith.constant 0.353553385 : f32
    %350 = vector.broadcast %cst_125 : f32 to vector<16x16xf32>
    %351 = arith.mulf %349, %350 : vector<16x16xf32>
    %352 = arith.addf %351, %319 : vector<16x16xf32>
    %cst_126 = arith.constant dense<0xFF800000> : vector<16xf32>
    %353 = vector.multi_reduction <maximumf>, %352, %cst_126 [1] : vector<16x16xf32> to vector<16xf32>
    %354 = vector.shape_cast %353 : vector<16xf32> to vector<16x1xf32>
    %355 = vector.broadcast %354 : vector<16x1xf32> to vector<16x16xf32>
    %356 = arith.subf %352, %355 : vector<16x16xf32>
    %357 = math.exp %356 : vector<16x16xf32>
    %cst_127 = arith.constant dense<0.000000e+00> : vector<16xf32>
    %358 = vector.multi_reduction <add>, %357, %cst_127 [1] : vector<16x16xf32> to vector<16xf32>
    %359 = vector.shape_cast %358 : vector<16xf32> to vector<16x1xf32>
    %360 = tpu.reciprocal %359 {approx = true} : vector<16x1xf32> -> vector<16x1xf32>
    %361 = vector.broadcast %360 : vector<16x1xf32> to vector<16x16xf32>
    %362 = arith.mulf %357, %361 : vector<16x16xf32>
    %363 = arith.truncf %362 : vector<16x16xf32> to vector<16x16xbf16>
    %364 = vector.extract_strided_slice %322 {offsets = [0, 8], sizes = [16, 8], strides = [1, 1]} : vector<16x32xf32> to vector<16x8xf32>
    %365 = arith.truncf %364 : vector<16x8xf32> to vector<16x8xbf16>
    %cst_128 = arith.constant dense<0.000000e+00> : vector<16x8xf32>
    %366 = tpu.matmul %363, %365, %cst_128 {dimension_numbers = #tpu.dot_dimension_numbers<[1], [0], [0], [1], [0, 0, 1, 1], [], []>} : vector<16x16xbf16>, vector<16x8xbf16>, vector<16x8xf32> -> vector<16x8xf32>
    %367 = vector.extract_strided_slice %320 {offsets = [0, 16], sizes = [16, 8], strides = [1, 1]} : vector<16x32xf32> to vector<16x8xf32>
    %368 = arith.truncf %367 : vector<16x8xf32> to vector<16x8xbf16>
    %369 = vector.extract_strided_slice %321 {offsets = [0, 16], sizes = [16, 8], strides = [1, 1]} : vector<16x32xf32> to vector<16x8xf32>
    %370 = arith.truncf %369 : vector<16x8xf32> to vector<16x8xbf16>
    %cst_129 = arith.constant dense<0.000000e+00> : vector<16x16xf32>
    %371 = tpu.matmul %368, %370, %cst_129 {dimension_numbers = #tpu.dot_dimension_numbers<[1], [1], [0], [0], [0, 0, 1, 0], [], []>} : vector<16x8xbf16>, vector<16x8xbf16>, vector<16x16xf32> -> vector<16x16xf32>
    %cst_130 = arith.constant 0.353553385 : f32
    %372 = vector.broadcast %cst_130 : f32 to vector<16x16xf32>
    %373 = arith.mulf %371, %372 : vector<16x16xf32>
    %374 = arith.addf %373, %319 : vector<16x16xf32>
    %cst_131 = arith.constant dense<0xFF800000> : vector<16xf32>
    %375 = vector.multi_reduction <maximumf>, %374, %cst_131 [1] : vector<16x16xf32> to vector<16xf32>
    %376 = vector.shape_cast %375 : vector<16xf32> to vector<16x1xf32>
    %377 = vector.broadcast %376 : vector<16x1xf32> to vector<16x16xf32>
    %378 = arith.subf %374, %377 : vector<16x16xf32>
    %379 = math.exp %378 : vector<16x16xf32>
    %cst_132 = arith.constant dense<0.000000e+00> : vector<16xf32>
    %380 = vector.multi_reduction <add>, %379, %cst_132 [1] : vector<16x16xf32> to vector<16xf32>
    %381 = vector.shape_cast %380 : vector<16xf32> to vector<16x1xf32>
    %382 = tpu.reciprocal %381 {approx = true} : vector<16x1xf32> -> vector<16x1xf32>
    %383 = vector.broadcast %382 : vector<16x1xf32> to vector<16x16xf32>
    %384 = arith.mulf %379, %383 : vector<16x16xf32>
    %385 = arith.truncf %384 : vector<16x16xf32> to vector<16x16xbf16>
    %386 = vector.extract_strided_slice %322 {offsets = [0, 16], sizes = [16, 8], strides = [1, 1]} : vector<16x32xf32> to vector<16x8xf32>
    %387 = arith.truncf %386 : vector<16x8xf32> to vector<16x8xbf16>
    %cst_133 = arith.constant dense<0.000000e+00> : vector<16x8xf32>
    %388 = tpu.matmul %385, %387, %cst_133 {dimension_numbers = #tpu.dot_dimension_numbers<[1], [0], [0], [1], [0, 0, 1, 1], [], []>} : vector<16x16xbf16>, vector<16x8xbf16>, vector<16x8xf32> -> vector<16x8xf32>
    %389 = vector.extract_strided_slice %320 {offsets = [0, 24], sizes = [16, 8], strides = [1, 1]} : vector<16x32xf32> to vector<16x8xf32>
    %390 = arith.truncf %389 : vector<16x8xf32> to vector<16x8xbf16>
    %391 = vector.extract_strided_slice %321 {offsets = [0, 24], sizes = [16, 8], strides = [1, 1]} : vector<16x32xf32> to vector<16x8xf32>
    %392 = arith.truncf %391 : vector<16x8xf32> to vector<16x8xbf16>
    %cst_134 = arith.constant dense<0.000000e+00> : vector<16x16xf32>
    %393 = tpu.matmul %390, %392, %cst_134 {dimension_numbers = #tpu.dot_dimension_numbers<[1], [1], [0], [0], [0, 0, 1, 0], [], []>} : vector<16x8xbf16>, vector<16x8xbf16>, vector<16x16xf32> -> vector<16x16xf32>
    %cst_135 = arith.constant 0.353553385 : f32
    %394 = vector.broadcast %cst_135 : f32 to vector<16x16xf32>
    %395 = arith.mulf %393, %394 : vector<16x16xf32>
    %396 = arith.addf %395, %319 : vector<16x16xf32>
    %cst_136 = arith.constant dense<0xFF800000> : vector<16xf32>
    %397 = vector.multi_reduction <maximumf>, %396, %cst_136 [1] : vector<16x16xf32> to vector<16xf32>
    %398 = vector.shape_cast %397 : vector<16xf32> to vector<16x1xf32>
    %399 = vector.broadcast %398 : vector<16x1xf32> to vector<16x16xf32>
    %400 = arith.subf %396, %399 : vector<16x16xf32>
    %401 = math.exp %400 : vector<16x16xf32>
    %cst_137 = arith.constant dense<0.000000e+00> : vector<16xf32>
    %402 = vector.multi_reduction <add>, %401, %cst_137 [1] : vector<16x16xf32> to vector<16xf32>
    %403 = vector.shape_cast %402 : vector<16xf32> to vector<16x1xf32>
    %404 = tpu.reciprocal %403 {approx = true} : vector<16x1xf32> -> vector<16x1xf32>
    %405 = vector.broadcast %404 : vector<16x1xf32> to vector<16x16xf32>
    %406 = arith.mulf %401, %405 : vector<16x16xf32>
    %407 = arith.truncf %406 : vector<16x16xf32> to vector<16x16xbf16>
    %408 = vector.extract_strided_slice %322 {offsets = [0, 24], sizes = [16, 8], strides = [1, 1]} : vector<16x32xf32> to vector<16x8xf32>
    %409 = arith.truncf %408 : vector<16x8xf32> to vector<16x8xbf16>
    %cst_138 = arith.constant dense<0.000000e+00> : vector<16x8xf32>
    %410 = tpu.matmul %407, %409, %cst_138 {dimension_numbers = #tpu.dot_dimension_numbers<[1], [0], [0], [1], [0, 0, 1, 1], [], []>} : vector<16x16xbf16>, vector<16x8xbf16>, vector<16x8xf32> -> vector<16x8xf32>
    %411 = tpu.concatenate %344, %366, %388, %410 in 1 : vector<16x8xf32>, vector<16x8xf32>, vector<16x8xf32>, vector<16x8xf32> -> vector<16x32xf32>
    %412 = tpu.concatenate %310, %411 in 0 : vector<16x32xf32>, vector<16x32xf32> -> vector<32x32xf32>
    %413 = arith.truncf %412 : vector<32x32xf32> to vector<32x32xbf16>
    %c0_139 = arith.constant 0 : index
    %c0_140 = arith.constant 0 : index
    %414 = vector.load %arg29[%c0_139, %c0_140] : memref<32x32xbf16, #tpu.memory_space<vmem>>, vector<32x32xbf16>
    %cst_141 = arith.constant dense<0.000000e+00> : vector<32x32xf32>
    %415 = tpu.matmul %413, %414, %cst_141 {dimension_numbers = #tpu.dot_dimension_numbers<[1], [0], [0], [1], [0, 0, 1, 1], [], []>} : vector<32x32xbf16>, vector<32x32xbf16>, vector<32x32xf32> -> vector<32x32xf32>
    %c0_142 = arith.constant 0 : index
    %c0_143 = arith.constant 0 : index
    %416 = vector.load %arg30[%c0_142, %c0_143] : memref<1x32xf32, #tpu.memory_space<vmem>>, vector<1x32xf32>
    %417 = vector.broadcast %416 : vector<1x32xf32> to vector<32x32xf32>
    %418 = arith.addf %415, %417 : vector<32x32xf32>
    %419 = arith.truncf %418 : vector<32x32xf32> to vector<32x32xbf16>
    %c0_144 = arith.constant 0 : index
    %c0_145 = arith.constant 0 : index
    %420 = vector.load %arg31[%c0_144, %c0_145] : memref<32x16xbf16, #tpu.memory_space<vmem>>, vector<32x16xbf16>
    %cst_146 = arith.constant dense<0.000000e+00> : vector<32x16xf32>
    %421 = tpu.matmul %419, %420, %cst_146 {dimension_numbers = #tpu.dot_dimension_numbers<[1], [0], [0], [1], [0, 0, 1, 1], [], []>} : vector<32x32xbf16>, vector<32x16xbf16>, vector<32x16xf32> -> vector<32x16xf32>
    %c0_147 = arith.constant 0 : index
    %c0_148 = arith.constant 0 : index
    %422 = vector.load %arg32[%c0_147, %c0_148] : memref<1x16xf32, #tpu.memory_space<vmem>>, vector<1x16xf32>
    %423 = vector.broadcast %422 : vector<1x16xf32> to vector<32x16xf32>
    %424 = arith.addf %421, %423 : vector<32x16xf32>
    %cst_149 = arith.constant 0.000000e+00 : f32
    %425 = vector.broadcast %cst_149 : f32 to vector<32x16xf32>
    %426 = arith.maximumf %424, %425 : vector<32x16xf32>
    %427 = arith.truncf %426 : vector<32x16xf32> to vector<32x16xbf16>
    %c0_150 = arith.constant 0 : index
    %c0_151 = arith.constant 0 : index
    %428 = vector.load %arg33[%c0_150, %c0_151] : memref<16x32xbf16, #tpu.memory_space<vmem>>, vector<16x32xbf16>
    %cst_152 = arith.constant dense<0.000000e+00> : vector<32x32xf32>
    %429 = tpu.matmul %427, %428, %cst_152 {dimension_numbers = #tpu.dot_dimension_numbers<[1], [0], [0], [1], [0, 0, 1, 1], [], []>} : vector<32x16xbf16>, vector<16x32xbf16>, vector<32x32xf32> -> vector<32x32xf32>
    %c0_153 = arith.constant 0 : index
    %c0_154 = arith.constant 0 : index
    %430 = vector.load %arg34[%c0_153, %c0_154] : memref<1x32xf32, #tpu.memory_space<vmem>>, vector<1x32xf32>
    %431 = vector.broadcast %430 : vector<1x32xf32> to vector<32x32xf32>
    %432 = arith.addf %429, %431 : vector<32x32xf32>
    %433 = arith.addf %432, %418 : vector<32x32xf32>
    %434 = arith.addf %433, %159 : vector<32x32xf32>
    %c0_155 = arith.constant 0 : index
    %c0_156 = arith.constant 0 : index
    %435 = vector.load %arg35[%c0_155, %c0_156] : memref<1x32xf32, #tpu.memory_space<vmem>>, vector<1x32xf32>
    %c0_157 = arith.constant 0 : index
    %c0_158 = arith.constant 0 : index
    %436 = vector.load %arg36[%c0_157, %c0_158] : memref<1x32xf32, #tpu.memory_space<vmem>>, vector<1x32xf32>
    %cst_159 = arith.constant dense<0.000000e+00> : vector<32xf32>
    %437 = vector.multi_reduction <add>, %434, %cst_159 [1] : vector<32x32xf32> to vector<32xf32>
    %438 = vector.shape_cast %437 : vector<32xf32> to vector<32x1xf32>
    %cst_160 = arith.constant 3.200000e+01 : f32
    %439 = vector.broadcast %cst_160 : f32 to vector<32x1xf32>
    %440 = arith.divf %438, %439 : vector<32x1xf32>
    %441 = vector.broadcast %440 : vector<32x1xf32> to vector<32x32xf32>
    %442 = arith.subf %434, %441 : vector<32x32xf32>
    %443 = arith.mulf %442, %442 : vector<32x32xf32>
    %cst_161 = arith.constant dense<0.000000e+00> : vector<32xf32>
    %444 = vector.multi_reduction <add>, %443, %cst_161 [1] : vector<32x32xf32> to vector<32xf32>
    %445 = vector.shape_cast %444 : vector<32xf32> to vector<32x1xf32>
    %cst_162 = arith.constant 3.200000e+01 : f32
    %446 = vector.broadcast %cst_162 : f32 to vector<32x1xf32>
    %447 = arith.divf %445, %446 : vector<32x1xf32>
    %448 = vector.broadcast %440 : vector<32x1xf32> to vector<32x32xf32>
    %449 = arith.subf %434, %448 : vector<32x32xf32>
    %cst_163 = arith.constant 9.99999974E-6 : f32
    %450 = vector.broadcast %cst_163 : f32 to vector<32x1xf32>
    %451 = arith.addf %447, %450 : vector<32x1xf32>
    %452 = math.rsqrt %451 : vector<32x1xf32>
    %453 = vector.broadcast %452 : vector<32x1xf32> to vector<32x32xf32>
    %454 = arith.mulf %449, %453 : vector<32x32xf32>
    %455 = vector.broadcast %435 : vector<1x32xf32> to vector<32x32xf32>
    %456 = arith.mulf %454, %455 : vector<32x32xf32>
    %457 = vector.broadcast %436 : vector<1x32xf32> to vector<32x32xf32>
    %458 = arith.addf %456, %457 : vector<32x32xf32>
    %459 = arith.truncf %458 : vector<32x32xf32> to vector<32x32xbf16>
    %c0_164 = arith.constant 0 : index
    %c0_165 = arith.constant 0 : index
    %460 = vector.load %arg37[%c0_164, %c0_165] : memref<32x64xbf16, #tpu.memory_space<vmem>>, vector<32x64xbf16>
    %cst_166 = arith.constant dense<0.000000e+00> : vector<32x64xf32>
    %461 = tpu.matmul %459, %460, %cst_166 {dimension_numbers = #tpu.dot_dimension_numbers<[1], [0], [0], [1], [0, 0, 1, 1], [], []>} : vector<32x32xbf16>, vector<32x64xbf16>, vector<32x64xf32> -> vector<32x64xf32>
    %c0_167 = arith.constant 0 : index
    %c0_168 = arith.constant 0 : index
    %462 = vector.load %arg38[%c0_167, %c0_168] : memref<1x64xf32, #tpu.memory_space<vmem>>, vector<1x64xf32>
    %463 = vector.broadcast %462 : vector<1x64xf32> to vector<32x64xf32>
    %464 = arith.addf %461, %463 : vector<32x64xf32>
    %cst_169 = arith.constant 0.000000e+00 : f32
    %465 = vector.broadcast %cst_169 : f32 to vector<32x64xf32>
    %466 = arith.subf %465, %464 : vector<32x64xf32>
    %467 = math.exp %466 : vector<32x64xf32>
    %cst_170 = arith.constant 1.000000e+00 : f32
    %468 = vector.broadcast %cst_170 : f32 to vector<32x64xf32>
    %469 = arith.addf %468, %467 : vector<32x64xf32>
    %470 = tpu.reciprocal %469 {approx = true} : vector<32x64xf32> -> vector<32x64xf32>
    %471 = arith.mulf %464, %470 : vector<32x64xf32>
    %472 = arith.truncf %471 : vector<32x64xf32> to vector<32x64xbf16>
    %c0_171 = arith.constant 0 : index
    %c0_172 = arith.constant 0 : index
    %473 = vector.load %arg39[%c0_171, %c0_172] : memref<64x32xbf16, #tpu.memory_space<vmem>>, vector<64x32xbf16>
    %cst_173 = arith.constant dense<0.000000e+00> : vector<32x32xf32>
    %474 = tpu.matmul %472, %473, %cst_173 {dimension_numbers = #tpu.dot_dimension_numbers<[1], [0], [0], [1], [0, 0, 1, 1], [], []>} : vector<32x64xbf16>, vector<64x32xbf16>, vector<32x32xf32> -> vector<32x32xf32>
    %c0_174 = arith.constant 0 : index
    %c0_175 = arith.constant 0 : index
    %475 = vector.load %arg40[%c0_174, %c0_175] : memref<1x32xf32, #tpu.memory_space<vmem>>, vector<1x32xf32>
    %476 = vector.broadcast %475 : vector<1x32xf32> to vector<32x32xf32>
    %477 = arith.addf %474, %476 : vector<32x32xf32>
    %cst_176 = arith.constant 5.000000e-01 : f32
    %478 = vector.broadcast %cst_176 : f32 to vector<32x32xf32>
    %479 = arith.mulf %477, %478 : vector<32x32xf32>
    %480 = arith.addf %479, %434 : vector<32x32xf32>
    %c0_177 = arith.constant 0 : index
    %c0_178 = arith.constant 0 : index
    %481 = vector.load %arg41[%c0_177, %c0_178] : memref<1x32xf32, #tpu.memory_space<vmem>>, vector<1x32xf32>
    %c0_179 = arith.constant 0 : index
    %c0_180 = arith.constant 0 : index
    %482 = vector.load %arg42[%c0_179, %c0_180] : memref<1x32xf32, #tpu.memory_space<vmem>>, vector<1x32xf32>
    %cst_181 = arith.constant dense<0.000000e+00> : vector<32xf32>
    %483 = vector.multi_reduction <add>, %480, %cst_181 [1] : vector<32x32xf32> to vector<32xf32>
    %484 = vector.shape_cast %483 : vector<32xf32> to vector<32x1xf32>
    %cst_182 = arith.constant 3.200000e+01 : f32
    %485 = vector.broadcast %cst_182 : f32 to vector<32x1xf32>
    %486 = arith.divf %484, %485 : vector<32x1xf32>
    %487 = vector.broadcast %486 : vector<32x1xf32> to vector<32x32xf32>
    %488 = arith.subf %480, %487 : vector<32x32xf32>
    %489 = arith.mulf %488, %488 : vector<32x32xf32>
    %cst_183 = arith.constant dense<0.000000e+00> : vector<32xf32>
    %490 = vector.multi_reduction <add>, %489, %cst_183 [1] : vector<32x32xf32> to vector<32xf32>
    %491 = vector.shape_cast %490 : vector<32xf32> to vector<32x1xf32>
    %cst_184 = arith.constant 3.200000e+01 : f32
    %492 = vector.broadcast %cst_184 : f32 to vector<32x1xf32>
    %493 = arith.divf %491, %492 : vector<32x1xf32>
    %494 = vector.broadcast %486 : vector<32x1xf32> to vector<32x32xf32>
    %495 = arith.subf %480, %494 : vector<32x32xf32>
    %cst_185 = arith.constant 9.99999974E-6 : f32
    %496 = vector.broadcast %cst_185 : f32 to vector<32x1xf32>
    %497 = arith.addf %493, %496 : vector<32x1xf32>
    %498 = math.rsqrt %497 : vector<32x1xf32>
    %499 = vector.broadcast %498 : vector<32x1xf32> to vector<32x32xf32>
    %500 = arith.mulf %495, %499 : vector<32x32xf32>
    %501 = vector.broadcast %481 : vector<1x32xf32> to vector<32x32xf32>
    %502 = arith.mulf %500, %501 : vector<32x32xf32>
    %503 = vector.broadcast %482 : vector<1x32xf32> to vector<32x32xf32>
    %504 = arith.addf %502, %503 : vector<32x32xf32>
    %505 = vector.shape_cast %504 : vector<32x32xf32> to vector<2x16x32xf32>
    %c0_186 = arith.constant 0 : index
    %c0_187 = arith.constant 0 : index
    %c0_188 = arith.constant 0 : index
    %506 = vector.load %arg43[%c0_186, %c0_187, %c0_188] : memref<2x16x32xf32, #tpu.memory_space<vmem>>, vector<2x16x32xf32>
    tpu.vector_store %arg43[%c0_186, %c0_187, %c0_188], %505 {strides = array<i32>} : memref<2x16x32xf32, #tpu.memory_space<vmem>>, vector<2x16x32xf32>,
    return
  }
  func.func @transform_0(%arg0: i32, %arg1: memref<2xi32, #tpu.memory_space<smem>>) -> (i32, i32, i32) {
    %c0_i32 = arith.constant 0 : i32
    %c0_i32_0 = arith.constant 0 : i32
    %c0_i32_1 = arith.constant 0 : i32
    return %arg0, %c0_i32, %c0_i32_0 : i32, i32, i32
  }
  func.func @transform_1(%arg0: i32, %arg1: memref<2xi32, #tpu.memory_space<smem>>) -> (i32, i32) {
    %c0_i32 = arith.constant 0 : i32
    %c0_i32_0 = arith.constant 0 : i32
    %c0_i32_1 = arith.constant 0 : i32
    return %c0_i32, %c0_i32_0 : i32, i32
  }
  func.func @transform_2(%arg0: i32, %arg1: memref<2xi32, #tpu.memory_space<smem>>) -> (i32, i32) {
    %c0_i32 = arith.constant 0 : i32
    %c0_i32_0 = arith.constant 0 : i32
    %c0_i32_1 = arith.constant 0 : i32
    return %c0_i32, %c0_i32_0 : i32, i32
  }
  func.func @transform_3(%arg0: i32, %arg1: memref<2xi32, #tpu.memory_space<smem>>) -> (i32, i32) {
    %c0_i32 = arith.constant 0 : i32
    %c0_i32_0 = arith.constant 0 : i32
    %c0_i32_1 = arith.constant 0 : i32
    return %c0_i32, %c0_i32_0 : i32, i32
  }
  func.func @transform_4(%arg0: i32, %arg1: memref<2xi32, #tpu.memory_space<smem>>) -> (i32, i32) {
    %c0_i32 = arith.constant 0 : i32
    %c0_i32_0 = arith.constant 0 : i32
    %c0_i32_1 = arith.constant 0 : i32
    return %c0_i32, %c0_i32_0 : i32, i32
  }
  func.func @transform_5(%arg0: i32, %arg1: memref<2xi32, #tpu.memory_space<smem>>) -> (i32, i32) {
    %c0_i32 = arith.constant 0 : i32
    %c0_i32_0 = arith.constant 0 : i32
    %c0_i32_1 = arith.constant 0 : i32
    return %c0_i32, %c0_i32_0 : i32, i32
  }
  func.func @transform_6(%arg0: i32, %arg1: memref<2xi32, #tpu.memory_space<smem>>) -> (i32, i32) {
    %c0_i32 = arith.constant 0 : i32
    %c0_i32_0 = arith.constant 0 : i32
    %c0_i32_1 = arith.constant 0 : i32
    return %c0_i32, %c0_i32_0 : i32, i32
  }
  func.func @transform_7(%arg0: i32, %arg1: memref<2xi32, #tpu.memory_space<smem>>) -> (i32, i32) {
    %c0_i32 = arith.constant 0 : i32
    %c0_i32_0 = arith.constant 0 : i32
    %c0_i32_1 = arith.constant 0 : i32
    return %c0_i32, %c0_i32_0 : i32, i32
  }
  func.func @transform_8(%arg0: i32, %arg1: memref<2xi32, #tpu.memory_space<smem>>) -> (i32, i32) {
    %c0_i32 = arith.constant 0 : i32
    %c0_i32_0 = arith.constant 0 : i32
    %c0_i32_1 = arith.constant 0 : i32
    return %c0_i32, %c0_i32_0 : i32, i32
  }
  func.func @transform_9(%arg0: i32, %arg1: memref<2xi32, #tpu.memory_space<smem>>) -> (i32, i32) {
    %c0_i32 = arith.constant 0 : i32
    %c0_i32_0 = arith.constant 0 : i32
    %c0_i32_1 = arith.constant 0 : i32
    return %c0_i32, %c0_i32_0 : i32, i32
  }
  func.func @transform_10(%arg0: i32, %arg1: memref<2xi32, #tpu.memory_space<smem>>) -> (i32, i32) {
    %c0_i32 = arith.constant 0 : i32
    %c0_i32_0 = arith.constant 0 : i32
    %c0_i32_1 = arith.constant 0 : i32
    return %c0_i32, %c0_i32_0 : i32, i32
  }
  func.func @transform_11(%arg0: i32, %arg1: memref<2xi32, #tpu.memory_space<smem>>) -> (i32, i32) {
    %c0_i32 = arith.constant 0 : i32
    %c0_i32_0 = arith.constant 0 : i32
    %c0_i32_1 = arith.constant 0 : i32
    return %c0_i32, %c0_i32_0 : i32, i32
  }
  func.func @transform_12(%arg0: i32, %arg1: memref<2xi32, #tpu.memory_space<smem>>) -> (i32, i32) {
    %c0_i32 = arith.constant 0 : i32
    %c0_i32_0 = arith.constant 0 : i32
    %c0_i32_1 = arith.constant 0 : i32
    return %c0_i32, %c0_i32_0 : i32, i32
  }
  func.func @transform_13(%arg0: i32, %arg1: memref<2xi32, #tpu.memory_space<smem>>) -> (i32, i32) {
    %c0_i32 = arith.constant 0 : i32
    %c0_i32_0 = arith.constant 0 : i32
    %c0_i32_1 = arith.constant 0 : i32
    return %c0_i32, %c0_i32_0 : i32, i32
  }
  func.func @transform_14(%arg0: i32, %arg1: memref<2xi32, #tpu.memory_space<smem>>) -> (i32, i32) {
    %c0_i32 = arith.constant 0 : i32
    %c0_i32_0 = arith.constant 0 : i32
    %c0_i32_1 = arith.constant 0 : i32
    return %c0_i32, %c0_i32_0 : i32, i32
  }
  func.func @transform_15(%arg0: i32, %arg1: memref<2xi32, #tpu.memory_space<smem>>) -> (i32, i32) {
    %c0_i32 = arith.constant 0 : i32
    %c0_i32_0 = arith.constant 0 : i32
    %c0_i32_1 = arith.constant 0 : i32
    return %c0_i32, %c0_i32_0 : i32, i32
  }
  func.func @transform_16(%arg0: i32, %arg1: memref<2xi32, #tpu.memory_space<smem>>) -> (i32, i32) {
    %c0_i32 = arith.constant 0 : i32
    %c0_i32_0 = arith.constant 0 : i32
    %c0_i32_1 = arith.constant 0 : i32
    return %c0_i32, %c0_i32_0 : i32, i32
  }
  func.func @transform_17(%arg0: i32, %arg1: memref<2xi32, #tpu.memory_space<smem>>) -> (i32, i32) {
    %c0_i32 = arith.constant 0 : i32
    %c0_i32_0 = arith.constant 0 : i32
    %c0_i32_1 = arith.constant 0 : i32
    return %c0_i32, %c0_i32_0 : i32, i32
  }
  func.func @transform_18(%arg0: i32, %arg1: memref<2xi32, #tpu.memory_space<smem>>) -> (i32, i32) {
    %c0_i32 = arith.constant 0 : i32
    %c0_i32_0 = arith.constant 0 : i32
    %c0_i32_1 = arith.constant 0 : i32
    return %c0_i32, %c0_i32_0 : i32, i32
  }
  func.func @transform_19(%arg0: i32, %arg1: memref<2xi32, #tpu.memory_space<smem>>) -> (i32, i32) {
    %c0_i32 = arith.constant 0 : i32
    %c0_i32_0 = arith.constant 0 : i32
    %c0_i32_1 = arith.constant 0 : i32
    return %c0_i32, %c0_i32_0 : i32, i32
  }
  func.func @transform_20(%arg0: i32, %arg1: memref<2xi32, #tpu.memory_space<smem>>) -> (i32, i32) {
    %c0_i32 = arith.constant 0 : i32
    %c0_i32_0 = arith.constant 0 : i32
    %c0_i32_1 = arith.constant 0 : i32
    return %c0_i32, %c0_i32_0 : i32, i32
  }
  func.func @transform_21(%arg0: i32, %arg1: memref<2xi32, #tpu.memory_space<smem>>) -> (i32, i32) {
    %c0_i32 = arith.constant 0 : i32
    %c0_i32_0 = arith.constant 0 : i32
    %c0_i32_1 = arith.constant 0 : i32
    return %c0_i32, %c0_i32_0 : i32, i32
  }
  func.func @transform_22(%arg0: i32, %arg1: memref<2xi32, #tpu.memory_space<smem>>) -> (i32, i32) {
    %c0_i32 = arith.constant 0 : i32
    %c0_i32_0 = arith.constant 0 : i32
    %c0_i32_1 = arith.constant 0 : i32
    return %c0_i32, %c0_i32_0 : i32, i32
  }
  func.func @transform_23(%arg0: i32, %arg1: memref<2xi32, #tpu.memory_space<smem>>) -> (i32, i32) {
    %c0_i32 = arith.constant 0 : i32
    %c0_i32_0 = arith.constant 0 : i32
    %c0_i32_1 = arith.constant 0 : i32
    return %c0_i32, %c0_i32_0 : i32, i32
  }
  func.func @transform_24(%arg0: i32, %arg1: memref<2xi32, #tpu.memory_space<smem>>) -> (i32, i32) {
    %c0_i32 = arith.constant 0 : i32
    %c0_i32_0 = arith.constant 0 : i32
    %c0_i32_1 = arith.constant 0 : i32
    return %c0_i32, %c0_i32_0 : i32, i32
  }
  func.func @transform_25(%arg0: i32, %arg1: memref<2xi32, #tpu.memory_space<smem>>) -> (i32, i32) {
    %c0_i32 = arith.constant 0 : i32
    %c0_i32_0 = arith.constant 0 : i32
    %c0_i32_1 = arith.constant 0 : i32
    return %c0_i32, %c0_i32_0 : i32, i32
  }
  func.func @transform_26(%arg0: i32, %arg1: memref<2xi32, #tpu.memory_space<smem>>) -> (i32, i32) {
    %c0_i32 = arith.constant 0 : i32
    %c0_i32_0 = arith.constant 0 : i32
    %c0_i32_1 = arith.constant 0 : i32
    return %c0_i32, %c0_i32_0 : i32, i32
  }
  func.func @transform_27(%arg0: i32, %arg1: memref<2xi32, #tpu.memory_space<smem>>) -> (i32, i32) {
    %c0_i32 = arith.constant 0 : i32
    %c0_i32_0 = arith.constant 0 : i32
    %c0_i32_1 = arith.constant 0 : i32
    return %c0_i32, %c0_i32_0 : i32, i32
  }
  func.func @transform_28(%arg0: i32, %arg1: memref<2xi32, #tpu.memory_space<smem>>) -> (i32, i32) {
    %c0_i32 = arith.constant 0 : i32
    %c0_i32_0 = arith.constant 0 : i32
    %c0_i32_1 = arith.constant 0 : i32
    return %c0_i32, %c0_i32_0 : i32, i32
  }
  func.func @transform_29(%arg0: i32, %arg1: memref<2xi32, #tpu.memory_space<smem>>) -> (i32, i32) {
    %c0_i32 = arith.constant 0 : i32
    %c0_i32_0 = arith.constant 0 : i32
    %c0_i32_1 = arith.constant 0 : i32
    return %c0_i32, %c0_i32_0 : i32, i32
  }
  func.func @transform_30(%arg0: i32, %arg1: memref<2xi32, #tpu.memory_space<smem>>) -> (i32, i32) {
    %c0_i32 = arith.constant 0 : i32
    %c0_i32_0 = arith.constant 0 : i32
    %c0_i32_1 = arith.constant 0 : i32
    return %c0_i32, %c0_i32_0 : i32, i32
  }
  func.func @transform_31(%arg0: i32, %arg1: memref<2xi32, #tpu.memory_space<smem>>) -> (i32, i32) {
    %c0_i32 = arith.constant 0 : i32
    %c0_i32_0 = arith.constant 0 : i32
    %c0_i32_1 = arith.constant 0 : i32
    return %c0_i32, %c0_i32_0 : i32, i32
  }
  func.func @transform_32(%arg0: i32, %arg1: memref<2xi32, #tpu.memory_space<smem>>) -> (i32, i32) {
    %c0_i32 = arith.constant 0 : i32
    %c0_i32_0 = arith.constant 0 : i32
    %c0_i32_1 = arith.constant 0 : i32
    return %c0_i32, %c0_i32_0 : i32, i32
  }
  func.func @transform_33(%arg0: i32, %arg1: memref<2xi32, #tpu.memory_space<smem>>) -> (i32, i32) {
    %c0_i32 = arith.constant 0 : i32
    %c0_i32_0 = arith.constant 0 : i32
    %c0_i32_1 = arith.constant 0 : i32
    return %c0_i32, %c0_i32_0 : i32, i32
  }
  func.func @transform_34(%arg0: i32, %arg1: memref<2xi32, #tpu.memory_space<smem>>) -> (i32, i32) {
    %c0_i32 = arith.constant 0 : i32
    %c0_i32_0 = arith.constant 0 : i32
    %c0_i32_1 = arith.constant 0 : i32
    return %c0_i32, %c0_i32_0 : i32, i32
  }
  func.func @transform_35(%arg0: i32, %arg1: memref<2xi32, #tpu.memory_space<smem>>) -> (i32, i32) {
    %c0_i32 = arith.constant 0 : i32
    %c0_i32_0 = arith.constant 0 : i32
    %c0_i32_1 = arith.constant 0 : i32
    return %c0_i32, %c0_i32_0 : i32, i32
  }
  func.func @transform_36(%arg0: i32, %arg1: memref<2xi32, #tpu.memory_space<smem>>) -> (i32, i32) {
    %c0_i32 = arith.constant 0 : i32
    %c0_i32_0 = arith.constant 0 : i32
    %c0_i32_1 = arith.constant 0 : i32
    return %c0_i32, %c0_i32_0 : i32, i32
  }
  func.func @transform_37(%arg0: i32, %arg1: memref<2xi32, #tpu.memory_space<smem>>) -> (i32, i32) {
    %c0_i32 = arith.constant 0 : i32
    %c0_i32_0 = arith.constant 0 : i32
    %c0_i32_1 = arith.constant 0 : i32
    return %c0_i32, %c0_i32_0 : i32, i32
  }
  func.func @transform_38(%arg0: i32, %arg1: memref<2xi32, #tpu.memory_space<smem>>) -> (i32, i32) {
    %c0_i32 = arith.constant 0 : i32
    %c0_i32_0 = arith.constant 0 : i32
    %c0_i32_1 = arith.constant 0 : i32
    return %c0_i32, %c0_i32_0 : i32, i32
  }
  func.func @transform_39(%arg0: i32, %arg1: memref<2xi32, #tpu.memory_space<smem>>) -> (i32, i32) {
    %c0_i32 = arith.constant 0 : i32
    %c0_i32_0 = arith.constant 0 : i32
    %c0_i32_1 = arith.constant 0 : i32
    return %c0_i32, %c0_i32_0 : i32, i32
  }
  func.func @transform_40(%arg0: i32, %arg1: memref<2xi32, #tpu.memory_space<smem>>) -> (i32, i32) {
    %c0_i32 = arith.constant 0 : i32
    %c0_i32_0 = arith.constant 0 : i32
    %c0_i32_1 = arith.constant 0 : i32
    return %c0_i32, %c0_i32_0 : i32, i32
  }
  func.func @transform_41(%arg0: i32, %arg1: memref<2xi32, #tpu.memory_space<smem>>) -> (i32, i32, i32) {
    %c0_i32 = arith.constant 0 : i32
    %c0_i32_0 = arith.constant 0 : i32
    %c0_i32_1 = arith.constant 0 : i32
    return %arg0, %c0_i32, %c0_i32_0 : i32, i32, i32
  }
}

</mosaic_0001>

<llo_original>
// kernel: tpu_custom_call.1
$region0: #{tpu_custom_call.1}
  #allocation0 [shape = 'u32[]', space=smem, size = 0x4, offset = 0x4, fixed_abs, tag = 'smem constant byte address 0x4 - core index']
  #allocation1 [shape = 'u32[72,128]{1,0:T(1,128)}', space=vmem, size = 0x9000, scoped, tag = 'internal scratch']
  #allocation2 [shape = 's32[1]{0}', space=sflag, size = 0x4, scoped, tag = 'scoped memory for tpu_custom_call.1']
  #allocation3 [shape = 'u8[512]{0}', space=smem, size = 0x200, scoped, tag = 'prefetched SMEM operand 0']
  %s0 = inlined_call_operand.smem [shape: u32[43], index: -1, kind: input, shape index: {}]
  %s1 = sld [smem:[%s0]]
  %s2 = scalar_lea.smem %s0, 1
  %s3 = sld [smem:[%s2]]
  %s4 = scalar_lea.smem %s0, 2
  %s5 = sld [smem:[%s4]]
  %s6 = scalar_lea.smem %s0, 3
  %s7 = sld [smem:[%s6]]
  %s8 = scalar_lea.smem %s0, 4
  %s9 = sld [smem:[%s8]]
  %s10 = scalar_lea.smem %s0, 5
  %s11 = sld [smem:[%s10]]
  %s12 = scalar_lea.smem %s0, 6
  %s13 = sld [smem:[%s12]]
  %s14 = scalar_lea.smem %s0, 7
  %s15 = sld [smem:[%s14]]
  %s16 = scalar_lea.smem %s0, 8
  %s17 = sld [smem:[%s16]]
  %s18 = scalar_lea.smem %s0, 9
  %s19 = sld [smem:[%s18]]
  %s20 = scalar_lea.smem %s0, 10
  %s21 = sld [smem:[%s20]]
  %s22 = scalar_lea.smem %s0, 11
  %s23 = sld [smem:[%s22]]
  %s24 = scalar_lea.smem %s0, 12
  %s25 = sld [smem:[%s24]]
  %s26 = scalar_lea.smem %s0, 13
  %s27 = sld [smem:[%s26]]
  %s28 = scalar_lea.smem %s0, 14
  %s29 = sld [smem:[%s28]]
  %s30 = scalar_lea.smem %s0, 15
  %s31 = sld [smem:[%s30]]
  %s32 = scalar_lea.smem %s0, 16
  %s33 = sld [smem:[%s32]]
  %s34 = scalar_lea.smem %s0, 17
  %s35 = sld [smem:[%s34]]
  %s36 = scalar_lea.smem %s0, 18
  %s37 = sld [smem:[%s36]]
  %s38 = scalar_lea.smem %s0, 19
  %s39 = sld [smem:[%s38]]
  %s40 = scalar_lea.smem %s0, 20
  %s41 = sld [smem:[%s40]]
  %s42 = scalar_lea.smem %s0, 21
  %s43 = sld [smem:[%s42]]
  %s44 = scalar_lea.smem %s0, 22
  %s45 = sld [smem:[%s44]]
  %s46 = scalar_lea.smem %s0, 23
  %s47 = sld [smem:[%s46]]
  %s48 = scalar_lea.smem %s0, 24
  %s49 = sld [smem:[%s48]]
  %s50 = scalar_lea.smem %s0, 25
  %s51 = sld [smem:[%s50]]
  %s52 = scalar_lea.smem %s0, 26
  %s53 = sld [smem:[%s52]]
  %s54 = scalar_lea.smem %s0, 27
  %s55 = sld [smem:[%s54]]
  %s56 = scalar_lea.smem %s0, 28
  %s57 = sld [smem:[%s56]]
  %s58 = scalar_lea.smem %s0, 29
  %s59 = sld [smem:[%s58]]
  %s60 = scalar_lea.smem %s0, 30
  %s61 = sld [smem:[%s60]]
  %s62 = scalar_lea.smem %s0, 31
  %s63 = sld [smem:[%s62]]
  %s64 = scalar_lea.smem %s0, 32
  %s65 = sld [smem:[%s64]]
  %s66 = scalar_lea.smem %s0, 33
  %s67 = sld [smem:[%s66]]
  %s68 = scalar_lea.smem %s0, 34
  %s69 = sld [smem:[%s68]]
  %s70 = scalar_lea.smem %s0, 35
  %s71 = sld [smem:[%s70]]
  %s72 = scalar_lea.smem %s0, 36
  %s73 = sld [smem:[%s72]]
  %s74 = scalar_lea.smem %s0, 37
  %s75 = sld [smem:[%s74]]
  %s76 = scalar_lea.smem %s0, 38
  %s77 = sld [smem:[%s76]]
  %s78 = scalar_lea.smem %s0, 39
  %s79 = sld [smem:[%s78]]
  %s80 = scalar_lea.smem %s0, 40
  %s81 = sld [smem:[%s80]]
  %s82 = scalar_lea.smem %s0, 41
  %s83 = sld [smem:[%s82]]
  %s84 = scalar_lea.smem %s0, 42
  %s85 = sld [smem:[%s84]]
  %s86 = sld [smem:[#allocation0]]
  $region286: #{tpu_custom_call.1} parent=0
    _
  %s88 = ssub.s32 1, %s86
  %s89 = scalar_select 0, %s88, %s86
  %s91 = sshll.u32 %s1, 4
  %s92 = int_to_ptr.hbm [resolvable:$true] %s91
  %94 = dma.hbm_to_smem %s92, 16, [#allocation3], [#allocation2]
  %96 = dma.done [#allocation2], 16
  %97 = sfence
  $region1: #{tpu_custom_call.1} parent=0
    #allocation4 [shape = 'u8[512]{0}', space=vmem, size = 0x400, scoped, tag = 'input window, operand 2, single buffered']
    #allocation5 [shape = 's32[1]{0}', space=sflag, size = 0x4, scoped, tag = 'scoped memory for tpu_custom_call.1']
    #allocation6 [shape = 's32[1]{0}', space=sflag, size = 0x4, scoped, tag = 'scoped memory for tpu_custom_call.1']
    #allocation7 [shape = 'u8[512]{0}', space=vmem, size = 0x400, scoped, tag = 'input window, operand 3, single buffered']
    #allocation8 [shape = 's32[1]{0}', space=sflag, size = 0x4, scoped, tag = 'scoped memory for tpu_custom_call.1']
    #allocation9 [shape = 'u8[512]{0}', space=vmem, size = 0x400, scoped, tag = 'input window, operand 5, single buffered']
    #allocation10 [shape = 'u8[512]{0}', space=vmem, size = 0x400, scoped, tag = 'input window, operand 7, single buffered']
    #allocation11 [shape = 's32[1]{0}', space=sflag, size = 0x4, scoped, tag = 'scoped memory for tpu_custom_call.1']
    #allocation12 [shape = 'u8[512]{0}', space=vmem, size = 0x400, scoped, tag = 'input window, operand 8, single buffered']
    #allocation13 [shape = 'u8[512]{0}', space=vmem, size = 0x400, scoped, tag = 'input window, operand 9, single buffered']
    #allocation14 [shape = 's32[1]{0}', space=sflag, size = 0x4, scoped, tag = 'scoped memory for tpu_custom_call.1']
    #allocation15 [shape = 'u8[512]{0}', space=vmem, size = 0x400, scoped, tag = 'input window, operand 11, single buffered']
    #allocation16 [shape = 'u8[2048]{0}', space=vmem, size = 0x800, scoped, tag = 'input window, operand 12, single buffered']
    #allocation17 [shape = 's32[1]{0}', space=sflag, size = 0x4, scoped, tag = 'scoped memory for tpu_custom_call.1']
    #allocation18 [shape = 'u8[512]{0}', space=vmem, size = 0x400, scoped, tag = 'input window, operand 13, single buffered']
    #allocation19 [shape = 'u8[512]{0}', space=vmem, size = 0x400, scoped, tag = 'input window, operand 14, single buffered']
    #allocation20 [shape = 's32[1]{0}', space=sflag, size = 0x4, scoped, tag = 'scoped memory for tpu_custom_call.1']
    #allocation21 [shape = 'u8[512]{0}', space=vmem, size = 0x400, scoped, tag = 'input window, operand 15, single buffered']
    #allocation22 [shape = 'u8[512]{0}', space=vmem, size = 0x400, scoped, tag = 'input window, operand 16, single buffered']
    #allocation23 [shape = 's32[1]{0}', space=sflag, size = 0x4, scoped, tag = 'scoped memory for tpu_custom_call.1']
    #allocation24 [shape = 'u8[512]{0}', space=vmem, size = 0x400, scoped, tag = 'input window, operand 17, single buffered']
    #allocation25 [shape = 'u8[512]{0}', space=vmem, size = 0x400, scoped, tag = 'input window, operand 19, single buffered']
    #allocation26 [shape = 's32[1]{0}', space=sflag, size = 0x4, scoped, tag = 'scoped memory for tpu_custom_call.1']
    #allocation27 [shape = 'u8[512]{0}', space=vmem, size = 0x400, scoped, tag = 'input window, operand 20, single buffered']
    #allocation28 [shape = 'u8[512]{0}', space=vmem, size = 0x400, scoped, tag = 'input window, operand 21, single buffered']
    #allocation29 [shape = 's32[1]{0}', space=sflag, size = 0x4, scoped, tag = 'scoped memory for tpu_custom_call.1']
    #allocation30 [shape = 'u8[512]{0}', space=vmem, size = 0x400, scoped, tag = 'input window, operand 23, single buffered']
    #allocation31 [shape = 'u8[8192]{0}', space=vmem, size = 0x2000, scoped, tag = 'input window, operand 24, single buffered']
    #allocation32 [shape = 's32[1]{0}', space=sflag, size = 0x4, scoped, tag = 'scoped memory for tpu_custom_call.1']
    #allocation33 [shape = 'u8[512]{0}', space=vmem, size = 0x400, scoped, tag = 'input window, operand 25, single buffered']
    #allocation34 [shape = 'u8[8192]{0}', space=vmem, size = 0x2000, scoped, tag = 'input window, operand 26, single buffered']
    #allocation35 [shape = 's32[1]{0}', space=sflag, size = 0x4, scoped, tag = 'scoped memory for tpu_custom_call.1']
    #allocation36 [shape = 'u8[512]{0}', space=vmem, size = 0x400, scoped, tag = 'input window, operand 27, single buffered']
    #allocation37 [shape = 'u8[8192]{0}', space=vmem, size = 0x2000, scoped, tag = 'input window, operand 28, single buffered']
    #allocation38 [shape = 's32[1]{0}', space=sflag, size = 0x4, scoped, tag = 'scoped memory for tpu_custom_call.1']
    #allocation39 [shape = 'u8[512]{0}', space=vmem, size = 0x400, scoped, tag = 'input window, operand 29, single buffered']
    #allocation40 [shape = 'u8[512]{0}', space=vmem, size = 0x400, scoped, tag = 'input window, operand 31, single buffered']
    #allocation41 [shape = 's32[1]{0}', space=sflag, size = 0x4, scoped, tag = 'scoped memory for tpu_custom_call.1']
    #allocation42 [shape = 'u8[4096]{0}', space=vmem, size = 0x1000, scoped, tag = 'input window, operand 32, single buffered']
    #allocation43 [shape = 'u8[512]{0}', space=vmem, size = 0x400, scoped, tag = 'input window, operand 33, single buffered']
    #allocation44 [shape = 's32[1]{0}', space=sflag, size = 0x4, scoped, tag = 'scoped memory for tpu_custom_call.1']
    #allocation45 [shape = 'u8[512]{0}', space=vmem, size = 0x400, scoped, tag = 'input window, operand 34, single buffered']
    #allocation46 [shape = 'u8[512]{0}', space=vmem, size = 0x400, scoped, tag = 'input window, operand 35, single buffered']
    #allocation47 [shape = 's32[1]{0}', space=sflag, size = 0x4, scoped, tag = 'scoped memory for tpu_custom_call.1']
    #allocation48 [shape = 'u8[16384]{0}', space=vmem, size = 0x4000, scoped, tag = 'output window, operand 0, single buffered']
    %98 = vsyncpa [#allocation5], 0
    %99 = vsyncpa [#allocation8], 0
    %100 = vsyncpa [#allocation11], 0
    %101 = vsyncpa [#allocation14], 0
    %102 = vsyncpa [#allocation17], 0
    %103 = vsyncpa [#allocation20], 0
    %104 = vsyncpa [#allocation23], 0
    %105 = vsyncpa [#allocation26], 0
    %106 = vsyncpa [#allocation29], 0
    %107 = vsyncpa [#allocation32], 0
    %108 = vsyncpa [#allocation35], 0
    %109 = vsyncpa [#allocation38], 0
    %110 = vsyncpa [#allocation41], 0
    %111 = vsyncpa [#allocation44], 0
    %112 = vsyncpa [#allocation47], 0
    %113 = vsyncpa [#allocation6], 0
    // Predicated region
    $region2: #{tpu_custom_call.1} parent=1 // pred_check
      _
    $region3: #{tpu_custom_call.1} parent=1 // pred_check_branch
      %115 = sbr.rel (0) target = $region5
    $region4: #{tpu_custom_call.1} parent=1 // pred_region
      _
    $region5: #{tpu_custom_call.1} parent=1 // pred_fallthru
      _
    // Predicated region
    $region6: #{tpu_custom_call.1} parent=1 // pred_check
      _
    $region7: #{tpu_custom_call.1} parent=1 // pred_check_branch
      %117 = sbr.rel (0) target = $region9
    $region8: #{tpu_custom_call.1} parent=1 // pred_region
      %119 = vsyncadd [#allocation5], 0
      %s121 = sshll.u32 %s5, 4
      %s122 = int_to_ptr.hbm [resolvable:$true] %s121
      %s123 = sshll.u32 [#allocation4], 4
      %s124 = int_to_ptr.vmem [resolvable:$true] %s123
      %126 = dma.hbm_to_vmem [thread:$0]  %s122, 16, %s124, [#allocation5]
    $region9: #{tpu_custom_call.1} parent=1 // pred_fallthru
      _
    // Predicated region
    $region10: #{tpu_custom_call.1} parent=1 // pred_check
      _
    $region11: #{tpu_custom_call.1} parent=1 // pred_check_branch
      %128 = sbr.rel (0) target = $region13
    $region12: #{tpu_custom_call.1} parent=1 // pred_region
      %130 = vsyncadd [#allocation8], 0
      %s132 = sshll.u32 %s7, 4
      %s133 = int_to_ptr.hbm [resolvable:$true] %s132
      %s134 = sshll.u32 [#allocation7], 4
      %s135 = int_to_ptr.vmem [resolvable:$true] %s134
      %137 = dma.hbm_to_vmem [thread:$0]  %s133, 16, %s135, [#allocation8]
    $region13: #{tpu_custom_call.1} parent=1 // pred_fallthru
      _
    // Predicated region
    $region14: #{tpu_custom_call.1} parent=1 // pred_check
      _
    $region15: #{tpu_custom_call.1} parent=1 // pred_check_branch
      %139 = sbr.rel (0) target = $region17
    $region16: #{tpu_custom_call.1} parent=1 // pred_region
      _
    $region17: #{tpu_custom_call.1} parent=1 // pred_fallthru
      _
    // Predicated region
    $region18: #{tpu_custom_call.1} parent=1 // pred_check
      _
    $region19: #{tpu_custom_call.1} parent=1 // pred_check_branch
      %141 = sbr.rel (0) target = $region21
    $region20: #{tpu_custom_call.1} parent=1 // pred_region
      %143 = vsyncadd [#allocation8], 0
      %s145 = sshll.u32 %s11, 4
      %s146 = int_to_ptr.hbm [resolvable:$true] %s145
      %s147 = sshll.u32 [#allocation9], 4
      %s148 = int_to_ptr.vmem [resolvable:$true] %s147
      %150 = dma.hbm_to_vmem [thread:$0]  %s146, 16, %s148, [#allocation8]
    $region21: #{tpu_custom_call.1} parent=1 // pred_fallthru
      _
    // Predicated region
    $region22: #{tpu_custom_call.1} parent=1 // pred_check
      _
    $region23: #{tpu_custom_call.1} parent=1 // pred_check_branch
      %152 = sbr.rel (0) target = $region25
    $region24: #{tpu_custom_call.1} parent=1 // pred_region
      _
    $region25: #{tpu_custom_call.1} parent=1 // pred_fallthru
      _
    // Predicated region
    $region26: #{tpu_custom_call.1} parent=1 // pred_check
      _
    $region27: #{tpu_custom_call.1} parent=1 // pred_check_branch
      %154 = sbr.rel (0) target = $region29
    $region28: #{tpu_custom_call.1} parent=1 // pred_region
      %156 = vsyncadd [#allocation11], 0
      %s158 = sshll.u32 %s15, 4
      %s159 = int_to_ptr.hbm [resolvable:$true] %s158
      %s160 = sshll.u32 [#allocation10], 4
      %s161 = int_to_ptr.vmem [resolvable:$true] %s160
      %163 = dma.hbm_to_vmem [thread:$0]  %s159, 16, %s161, [#allocation11]
    $region29: #{tpu_custom_call.1} parent=1 // pred_fallthru
      _
    // Predicated region
    $region30: #{tpu_custom_call.1} parent=1 // pred_check
      _
    $region31: #{tpu_custom_call.1} parent=1 // pred_check_branch
      %165 = sbr.rel (0) target = $region33
    $region32: #{tpu_custom_call.1} parent=1 // pred_region
      %167 = vsyncadd [#allocation11], 0
      %s169 = sshll.u32 %s17, 4
      %s170 = int_to_ptr.hbm [resolvable:$true] %s169
      %s171 = sshll.u32 [#allocation12], 4
      %s172 = int_to_ptr.vmem [resolvable:$true] %s171
      %174 = dma.hbm_to_vmem [thread:$0]  %s170, 16, %s172, [#allocation11]
    $region33: #{tpu_custom_call.1} parent=1 // pred_fallthru
      _
    // Predicated region
    $region34: #{tpu_custom_call.1} parent=1 // pred_check
      _
    $region35: #{tpu_custom_call.1} parent=1 // pred_check_branch
      %176 = sbr.rel (0) target = $region37
    $region36: #{tpu_custom_call.1} parent=1 // pred_region
      %178 = vsyncadd [#allocation14], 0
      %s180 = sshll.u32 %s19, 4
      %s181 = int_to_ptr.hbm [resolvable:$true] %s180
      %s182 = sshll.u32 [#allocation13], 4
      %s183 = int_to_ptr.vmem [resolvable:$true] %s182
      %185 = dma.hbm_to_vmem [thread:$0]  %s181, 16, %s183, [#allocation14]
    $region37: #{tpu_custom_call.1} parent=1 // pred_fallthru
      _
    // Predicated region
    $region38: #{tpu_custom_call.1} parent=1 // pred_check
      _
    $region39: #{tpu_custom_call.1} parent=1 // pred_check_branch
      %187 = sbr.rel (0) target = $region41
    $region40: #{tpu_custom_call.1} parent=1 // pred_region
      _
    $region41: #{tpu_custom_call.1} parent=1 // pred_fallthru
      _
    // Predicated region
    $region42: #{tpu_custom_call.1} parent=1 // pred_check
      _
    $region43: #{tpu_custom_call.1} parent=1 // pred_check_branch
      %189 = sbr.rel (0) target = $region45
    $region44: #{tpu_custom_call.1} parent=1 // pred_region
      %191 = vsyncadd [#allocation14], 0
      %s193 = sshll.u32 %s23, 4
      %s194 = int_to_ptr.hbm [resolvable:$true] %s193
      %s195 = sshll.u32 [#allocation15], 4
      %s196 = int_to_ptr.vmem [resolvable:$true] %s195
      %198 = dma.hbm_to_vmem [thread:$0]  %s194, 16, %s196, [#allocation14]
    $region45: #{tpu_custom_call.1} parent=1 // pred_fallthru
      _
    // Predicated region
    $region46: #{tpu_custom_call.1} parent=1 // pred_check
      _
    $region47: #{tpu_custom_call.1} parent=1 // pred_check_branch
      %200 = sbr.rel (0) target = $region49
    $region48: #{tpu_custom_call.1} parent=1 // pred_region
      %202 = vsyncadd [#allocation17], 0
      %s204 = sshll.u32 %s25, 4
      %s205 = int_to_ptr.hbm [resolvable:$true] %s204
      %s206 = sshll.u32 [#allocation16], 4
      %s207 = int_to_ptr.vmem [resolvable:$true] %s206
      %209 = dma.hbm_to_vmem [thread:$0]  %s205, 64, %s207, [#allocation17]
    $region49: #{tpu_custom_call.1} parent=1 // pred_fallthru
      _
    // Predicated region
    $region50: #{tpu_custom_call.1} parent=1 // pred_check
      _
    $region51: #{tpu_custom_call.1} parent=1 // pred_check_branch
      %211 = sbr.rel (0) target = $region53
    $region52: #{tpu_custom_call.1} parent=1 // pred_region
      %213 = vsyncadd [#allocation17], 0
      %s215 = sshll.u32 %s27, 4
      %s216 = int_to_ptr.hbm [resolvable:$true] %s215
      %s217 = sshll.u32 [#allocation18], 4
      %s218 = int_to_ptr.vmem [resolvable:$true] %s217
      %220 = dma.hbm_to_vmem [thread:$0]  %s216, 16, %s218, [#allocation17]
    $region53: #{tpu_custom_call.1} parent=1 // pred_fallthru
      _
    // Predicated region
    $region54: #{tpu_custom_call.1} parent=1 // pred_check
      _
    $region55: #{tpu_custom_call.1} parent=1 // pred_check_branch
      %222 = sbr.rel (0) target = $region57
    $region56: #{tpu_custom_call.1} parent=1 // pred_region
      %224 = vsyncadd [#allocation20], 0
      %s226 = sshll.u32 %s29, 4
      %s227 = int_to_ptr.hbm [resolvable:$true] %s226
      %s228 = sshll.u32 [#allocation19], 4
      %s229 = int_to_ptr.vmem [resolvable:$true] %s228
      %231 = dma.hbm_to_vmem [thread:$0]  %s227, 16, %s229, [#allocation20]
    $region57: #{tpu_custom_call.1} parent=1 // pred_fallthru
      _
    // Predicated region
    $region58: #{tpu_custom_call.1} parent=1 // pred_check
      _
    $region59: #{tpu_custom_call.1} parent=1 // pred_check_branch
      %233 = sbr.rel (0) target = $region61
    $region60: #{tpu_custom_call.1} parent=1 // pred_region
      %235 = vsyncadd [#allocation20], 0
      %s237 = sshll.u32 %s31, 4
      %s238 = int_to_ptr.hbm [resolvable:$true] %s237
      %s239 = sshll.u32 [#allocation21], 4
      %s240 = int_to_ptr.vmem [resolvable:$true] %s239
      %242 = dma.hbm_to_vmem [thread:$0]  %s238, 16, %s240, [#allocation20]
    $region61: #{tpu_custom_call.1} parent=1 // pred_fallthru
      _
    // Predicated region
    $region62: #{tpu_custom_call.1} parent=1 // pred_check
      _
    $region63: #{tpu_custom_call.1} parent=1 // pred_check_branch
      %244 = sbr.rel (0) target = $region65
    $region64: #{tpu_custom_call.1} parent=1 // pred_region
      %246 = vsyncadd [#allocation23], 0
      %s248 = sshll.u32 %s33, 4
      %s249 = int_to_ptr.hbm [resolvable:$true] %s248
      %s250 = sshll.u32 [#allocation22], 4
      %s251 = int_to_ptr.vmem [resolvable:$true] %s250
      %253 = dma.hbm_to_vmem [thread:$0]  %s249, 16, %s251, [#allocation23]
    $region65: #{tpu_custom_call.1} parent=1 // pred_fallthru
      _
    // Predicated region
    $region66: #{tpu_custom_call.1} parent=1 // pred_check
      _
    $region67: #{tpu_custom_call.1} parent=1 // pred_check_branch
      %255 = sbr.rel (0) target = $region69
    $region68: #{tpu_custom_call.1} parent=1 // pred_region
      %257 = vsyncadd [#allocation23], 0
      %s259 = sshll.u32 %s35, 4
      %s260 = int_to_ptr.hbm [resolvable:$true] %s259
      %s261 = sshll.u32 [#allocation24], 4
      %s262 = int_to_ptr.vmem [resolvable:$true] %s261
      %264 = dma.hbm_to_vmem [thread:$0]  %s260, 16, %s262, [#allocation23]
    $region69: #{tpu_custom_call.1} parent=1 // pred_fallthru
      _
    // Predicated region
    $region70: #{tpu_custom_call.1} parent=1 // pred_check
      _
    $region71: #{tpu_custom_call.1} parent=1 // pred_check_branch
      %266 = sbr.rel (0) target = $region73
    $region72: #{tpu_custom_call.1} parent=1 // pred_region
      _
    $region73: #{tpu_custom_call.1} parent=1 // pred_fallthru
      _
    // Predicated region
    $region74: #{tpu_custom_call.1} parent=1 // pred_check
      _
    $region75: #{tpu_custom_call.1} parent=1 // pred_check_branch
      %268 = sbr.rel (0) target = $region77
    $region76: #{tpu_custom_call.1} parent=1 // pred_region
      %270 = vsyncadd [#allocation26], 0
      %s272 = sshll.u32 %s39, 4
      %s273 = int_to_ptr.hbm [resolvable:$true] %s272
      %s274 = sshll.u32 [#allocation25], 4
      %s275 = int_to_ptr.vmem [resolvable:$true] %s274
      %277 = dma.hbm_to_vmem [thread:$0]  %s273, 16, %s275, [#allocation26]
    $region77: #{tpu_custom_call.1} parent=1 // pred_fallthru
      _
    // Predicated region
    $region78: #{tpu_custom_call.1} parent=1 // pred_check
      _
    $region79: #{tpu_custom_call.1} parent=1 // pred_check_branch
      %279 = sbr.rel (0) target = $region81
    $region80: #{tpu_custom_call.1} parent=1 // pred_region
      %281 = vsyncadd [#allocation26], 0
      %s283 = sshll.u32 %s41, 4
      %s284 = int_to_ptr.hbm [resolvable:$true] %s283
      %s285 = sshll.u32 [#allocation27], 4
      %s286 = int_to_ptr.vmem [resolvable:$true] %s285
      %288 = dma.hbm_to_vmem [thread:$0]  %s284, 16, %s286, [#allocation26]
    $region81: #{tpu_custom_call.1} parent=1 // pred_fallthru
      _
    // Predicated region
    $region82: #{tpu_custom_call.1} parent=1 // pred_check
      _
    $region83: #{tpu_custom_call.1} parent=1 // pred_check_branch
      %290 = sbr.rel (0) target = $region85
    $region84: #{tpu_custom_call.1} parent=1 // pred_region
      %292 = vsyncadd [#allocation29], 0
      %s294 = sshll.u32 %s43, 4
      %s295 = int_to_ptr.hbm [resolvable:$true] %s294
      %s296 = sshll.u32 [#allocation28], 4
      %s297 = int_to_ptr.vmem [resolvable:$true] %s296
      %299 = dma.hbm_to_vmem [thread:$0]  %s295, 16, %s297, [#allocation29]
    $region85: #{tpu_custom_call.1} parent=1 // pred_fallthru
      _
    // Predicated region
    $region86: #{tpu_custom_call.1} parent=1 // pred_check
      _
    $region87: #{tpu_custom_call.1} parent=1 // pred_check_branch
      %301 = sbr.rel (0) target = $region89
    $region88: #{tpu_custom_call.1} parent=1 // pred_region
      _
    $region89: #{tpu_custom_call.1} parent=1 // pred_fallthru
      _
    // Predicated region
    $region90: #{tpu_custom_call.1} parent=1 // pred_check
      _
    $region91: #{tpu_custom_call.1} parent=1 // pred_check_branch
      %303 = sbr.rel (0) target = $region93
    $region92: #{tpu_custom_call.1} parent=1 // pred_region
      %305 = vsyncadd [#allocation29], 0
      %s307 = sshll.u32 %s47, 4
      %s308 = int_to_ptr.hbm [resolvable:$true] %s307
      %s309 = sshll.u32 [#allocation30], 4
      %s310 = int_to_ptr.vmem [resolvable:$true] %s309
      %312 = dma.hbm_to_vmem [thread:$0]  %s308, 16, %s310, [#allocation29]
    $region93: #{tpu_custom_call.1} parent=1 // pred_fallthru
      _
    // Predicated region
    $region94: #{tpu_custom_call.1} parent=1 // pred_check
      _
    $region95: #{tpu_custom_call.1} parent=1 // pred_check_branch
      %314 = sbr.rel (0) target = $region97
    $region96: #{tpu_custom_call.1} parent=1 // pred_region
      %316 = vsyncadd [#allocation32], 0
      %s317 = sshll.u32 %s49, 4
      %s318 = int_to_ptr.hbm [resolvable:$true] %s317
      %s319 = sshll.u32 [#allocation31], 4
      %s320 = int_to_ptr.vmem [resolvable:$true] %s319
      %325 = dma.hbm_to_vmem [thread:$0]  %s318, 256, %s320, [#allocation32], 64, 64, 4
    $region97: #{tpu_custom_call.1} parent=1 // pred_fallthru
      _
    // Predicated region
    $region98: #{tpu_custom_call.1} parent=1 // pred_check
      _
    $region99: #{tpu_custom_call.1} parent=1 // pred_check_branch
      %327 = sbr.rel (0) target = $region101
    $region100: #{tpu_custom_call.1} parent=1 // pred_region
      %329 = vsyncadd [#allocation32], 0
      %s331 = sshll.u32 %s51, 4
      %s332 = int_to_ptr.hbm [resolvable:$true] %s331
      %s333 = sshll.u32 [#allocation33], 4
      %s334 = int_to_ptr.vmem [resolvable:$true] %s333
      %336 = dma.hbm_to_vmem [thread:$0]  %s332, 16, %s334, [#allocation32]
    $region101: #{tpu_custom_call.1} parent=1 // pred_fallthru
      _
    // Predicated region
    $region102: #{tpu_custom_call.1} parent=1 // pred_check
      _
    $region103: #{tpu_custom_call.1} parent=1 // pred_check_branch
      %338 = sbr.rel (0) target = $region105
    $region104: #{tpu_custom_call.1} parent=1 // pred_region
      %340 = vsyncadd [#allocation35], 0
      %s341 = sshll.u32 %s53, 4
      %s342 = int_to_ptr.hbm [resolvable:$true] %s341
      %s343 = sshll.u32 [#allocation34], 4
      %s344 = int_to_ptr.vmem [resolvable:$true] %s343
      %349 = dma.hbm_to_vmem [thread:$0]  %s342, 256, %s344, [#allocation35], 64, 64, 4
    $region105: #{tpu_custom_call.1} parent=1 // pred_fallthru
      _
    // Predicated region
    $region106: #{tpu_custom_call.1} parent=1 // pred_check
      _
    $region107: #{tpu_custom_call.1} parent=1 // pred_check_branch
      %351 = sbr.rel (0) target = $region109
    $region108: #{tpu_custom_call.1} parent=1 // pred_region
      %353 = vsyncadd [#allocation35], 0
      %s355 = sshll.u32 %s55, 4
      %s356 = int_to_ptr.hbm [resolvable:$true] %s355
      %s357 = sshll.u32 [#allocation36], 4
      %s358 = int_to_ptr.vmem [resolvable:$true] %s357
      %360 = dma.hbm_to_vmem [thread:$0]  %s356, 16, %s358, [#allocation35]
    $region109: #{tpu_custom_call.1} parent=1 // pred_fallthru
      _
    // Predicated region
    $region110: #{tpu_custom_call.1} parent=1 // pred_check
      _
    $region111: #{tpu_custom_call.1} parent=1 // pred_check_branch
      %362 = sbr.rel (0) target = $region113
    $region112: #{tpu_custom_call.1} parent=1 // pred_region
      %364 = vsyncadd [#allocation38], 0
      %s365 = sshll.u32 %s57, 4
      %s366 = int_to_ptr.hbm [resolvable:$true] %s365
      %s367 = sshll.u32 [#allocation37], 4
      %s368 = int_to_ptr.vmem [resolvable:$true] %s367
      %373 = dma.hbm_to_vmem [thread:$0]  %s366, 256, %s368, [#allocation38], 64, 64, 4
    $region113: #{tpu_custom_call.1} parent=1 // pred_fallthru
      _
    // Predicated region
    $region114: #{tpu_custom_call.1} parent=1 // pred_check
      _
    $region115: #{tpu_custom_call.1} parent=1 // pred_check_branch
      %375 = sbr.rel (0) target = $region117
    $region116: #{tpu_custom_call.1} parent=1 // pred_region
      %377 = vsyncadd [#allocation38], 0
      %s379 = sshll.u32 %s59, 4
      %s380 = int_to_ptr.hbm [resolvable:$true] %s379
      %s381 = sshll.u32 [#allocation39], 4
      %s382 = int_to_ptr.vmem [resolvable:$true] %s381
      %384 = dma.hbm_to_vmem [thread:$0]  %s380, 16, %s382, [#allocation38]
    $region117: #{tpu_custom_call.1} parent=1 // pred_fallthru
      _
    // Predicated region
    $region118: #{tpu_custom_call.1} parent=1 // pred_check
      _
    $region119: #{tpu_custom_call.1} parent=1 // pred_check_branch
      %386 = sbr.rel (0) target = $region121
    $region120: #{tpu_custom_call.1} parent=1 // pred_region
      _
    $region121: #{tpu_custom_call.1} parent=1 // pred_fallthru
      _
    // Predicated region
    $region122: #{tpu_custom_call.1} parent=1 // pred_check
      _
    $region123: #{tpu_custom_call.1} parent=1 // pred_check_branch
      %388 = sbr.rel (0) target = $region125
    $region124: #{tpu_custom_call.1} parent=1 // pred_region
      %390 = vsyncadd [#allocation41], 0
      %s392 = sshll.u32 %s63, 4
      %s393 = int_to_ptr.hbm [resolvable:$true] %s392
      %s394 = sshll.u32 [#allocation40], 4
      %s395 = int_to_ptr.vmem [resolvable:$true] %s394
      %397 = dma.hbm_to_vmem [thread:$0]  %s393, 16, %s395, [#allocation41]
    $region125: #{tpu_custom_call.1} parent=1 // pred_fallthru
      _
    // Predicated region
    $region126: #{tpu_custom_call.1} parent=1 // pred_check
      _
    $region127: #{tpu_custom_call.1} parent=1 // pred_check_branch
      %399 = sbr.rel (0) target = $region129
    $region128: #{tpu_custom_call.1} parent=1 // pred_region
      %401 = vsyncadd [#allocation41], 0
      %s402 = sshll.u32 %s65, 4
      %s403 = int_to_ptr.hbm [resolvable:$true] %s402
      %s404 = sshll.u32 [#allocation42], 4
      %s405 = int_to_ptr.vmem [resolvable:$true] %s404
      %410 = dma.hbm_to_vmem [thread:$0]  %s403, 128, %s405, [#allocation41], 64, 64, 4
    $region129: #{tpu_custom_call.1} parent=1 // pred_fallthru
      _
    // Predicated region
    $region130: #{tpu_custom_call.1} parent=1 // pred_check
      _
    $region131: #{tpu_custom_call.1} parent=1 // pred_check_branch
      %412 = sbr.rel (0) target = $region133
    $region132: #{tpu_custom_call.1} parent=1 // pred_region
      %414 = vsyncadd [#allocation44], 0
      %s416 = sshll.u32 %s67, 4
      %s417 = int_to_ptr.hbm [resolvable:$true] %s416
      %s418 = sshll.u32 [#allocation43], 4
      %s419 = int_to_ptr.vmem [resolvable:$true] %s418
      %421 = dma.hbm_to_vmem [thread:$0]  %s417, 16, %s419, [#allocation44]
    $region133: #{tpu_custom_call.1} parent=1 // pred_fallthru
      _
    // Predicated region
    $region134: #{tpu_custom_call.1} parent=1 // pred_check
      _
    $region135: #{tpu_custom_call.1} parent=1 // pred_check_branch
      %423 = sbr.rel (0) target = $region137
    $region136: #{tpu_custom_call.1} parent=1 // pred_region
      %425 = vsyncadd [#allocation44], 0
      %s427 = sshll.u32 %s69, 4
      %s428 = int_to_ptr.hbm [resolvable:$true] %s427
      %s429 = sshll.u32 [#allocation45], 4
      %s430 = int_to_ptr.vmem [resolvable:$true] %s429
      %432 = dma.hbm_to_vmem [thread:$0]  %s428, 16, %s430, [#allocation44]
    $region137: #{tpu_custom_call.1} parent=1 // pred_fallthru
      _
    // Predicated region
    $region138: #{tpu_custom_call.1} parent=1 // pred_check
      _
    $region139: #{tpu_custom_call.1} parent=1 // pred_check_branch
      %434 = sbr.rel (0) target = $region141
    $region140: #{tpu_custom_call.1} parent=1 // pred_region
      %436 = vsyncadd [#allocation47], 0
      %s438 = sshll.u32 %s71, 4
      %s439 = int_to_ptr.hbm [resolvable:$true] %s438
      %s440 = sshll.u32 [#allocation46], 4
      %s441 = int_to_ptr.vmem [resolvable:$true] %s440
      %443 = dma.hbm_to_vmem [thread:$0]  %s439, 16, %s441, [#allocation47]
    $region141: #{tpu_custom_call.1} parent=1 // pred_fallthru
      _
    // Predicated region
    $region142: #{tpu_custom_call.1} parent=1 // pred_check
      _
    $region143: #{tpu_custom_call.1} parent=1 // pred_check_branch
      %445 = sbr.rel (0) target = $region145
    $region144: #{tpu_custom_call.1} parent=1 // pred_region
      _
    $region145: #{tpu_custom_call.1} parent=1 // pred_fallthru
      _
    // Predicated region
    $region146: #{tpu_custom_call.1} parent=1 // pred_check
      _
    $region147: #{tpu_custom_call.1} parent=1 // pred_check_branch
      %447 = sbr.rel (0) target = $region149
    $region148: #{tpu_custom_call.1} parent=1 // pred_region
      _
    $region149: #{tpu_custom_call.1} parent=1 // pred_fallthru
      _
    // Predicated region
    $region150: #{tpu_custom_call.1} parent=1 // pred_check
      _
    $region151: #{tpu_custom_call.1} parent=1 // pred_check_branch
      %449 = sbr.rel (0) target = $region153
    $region152: #{tpu_custom_call.1} parent=1 // pred_region
      _
    $region153: #{tpu_custom_call.1} parent=1 // pred_fallthru
      _
    // Predicated region
    $region154: #{tpu_custom_call.1} parent=1 // pred_check
      _
    $region155: #{tpu_custom_call.1} parent=1 // pred_check_branch
      %451 = sbr.rel (0) target = $region157
    $region156: #{tpu_custom_call.1} parent=1 // pred_region
      _
    $region157: #{tpu_custom_call.1} parent=1 // pred_fallthru
      _
    // Predicated region
    $region158: #{tpu_custom_call.1} parent=1 // pred_check
      _
    $region159: #{tpu_custom_call.1} parent=1 // pred_check_branch
      %453 = sbr.rel (0) target = $region161
    $region160: #{tpu_custom_call.1} parent=1 // pred_region
      _
    $region161: #{tpu_custom_call.1} parent=1 // pred_fallthru
      _
    // Predicated region
    $region162: #{tpu_custom_call.1} parent=1 // pred_check
      _
    $region163: #{tpu_custom_call.1} parent=1 // pred_check_branch
      %455 = sbr.rel (0) target = $region165
    $region164: #{tpu_custom_call.1} parent=1 // pred_region
      _
    $region165: #{tpu_custom_call.1} parent=1 // pred_fallthru
      _
    // Predicated region
    $region166: #{tpu_custom_call.1} parent=1 // pred_check
      _
    $region167: #{tpu_custom_call.1} parent=1 // pred_check_branch
      %457 = sbr.rel (0) target = $region169
    $region168: #{tpu_custom_call.1} parent=1 // pred_region
      %459 = dma.done [#allocation5], 16
    $region169: #{tpu_custom_call.1} parent=1 // pred_fallthru
      _
    // Predicated region
    $region170: #{tpu_custom_call.1} parent=1 // pred_check
      _
    $region171: #{tpu_custom_call.1} parent=1 // pred_check_branch
      %461 = sbr.rel (0) target = $region173
    $region172: #{tpu_custom_call.1} parent=1 // pred_region
      %463 = dma.done [#allocation8], 16
    $region173: #{tpu_custom_call.1} parent=1 // pred_fallthru
      _
    // Predicated region
    $region174: #{tpu_custom_call.1} parent=1 // pred_check
      _
    $region175: #{tpu_custom_call.1} parent=1 // pred_check_branch
      %465 = sbr.rel (0) target = $region177
    $region176: #{tpu_custom_call.1} parent=1 // pred_region
      %467 = dma.done [#allocation8], 16
    $region177: #{tpu_custom_call.1} parent=1 // pred_fallthru
      _
    // Predicated region
    $region178: #{tpu_custom_call.1} parent=1 // pred_check
      _
    $region179: #{tpu_custom_call.1} parent=1 // pred_check_branch
      %469 = sbr.rel (0) target = $region181
    $region180: #{tpu_custom_call.1} parent=1 // pred_region
      %471 = dma.done [#allocation11], 16
    $region181: #{tpu_custom_call.1} parent=1 // pred_fallthru
      _
    // Predicated region
    $region182: #{tpu_custom_call.1} parent=1 // pred_check
      _
    $region183: #{tpu_custom_call.1} parent=1 // pred_check_branch
      %473 = sbr.rel (0) target = $region185
    $region184: #{tpu_custom_call.1} parent=1 // pred_region
      %475 = dma.done [#allocation11], 16
    $region185: #{tpu_custom_call.1} parent=1 // pred_fallthru
      _
    // Predicated region
    $region186: #{tpu_custom_call.1} parent=1 // pred_check
      _
    $region187: #{tpu_custom_call.1} parent=1 // pred_check_branch
      %477 = sbr.rel (0) target = $region189
    $region188: #{tpu_custom_call.1} parent=1 // pred_region
      %479 = dma.done [#allocation14], 16
    $region189: #{tpu_custom_call.1} parent=1 // pred_fallthru
      _
    // Predicated region
    $region190: #{tpu_custom_call.1} parent=1 // pred_check
      _
    $region191: #{tpu_custom_call.1} parent=1 // pred_check_branch
      %481 = sbr.rel (0) target = $region193
    $region192: #{tpu_custom_call.1} parent=1 // pred_region
      %483 = dma.done [#allocation14], 16
    $region193: #{tpu_custom_call.1} parent=1 // pred_fallthru
      _
    // Predicated region
    $region194: #{tpu_custom_call.1} parent=1 // pred_check
      _
    $region195: #{tpu_custom_call.1} parent=1 // pred_check_branch
      %485 = sbr.rel (0) target = $region197
    $region196: #{tpu_custom_call.1} parent=1 // pred_region
      %487 = dma.done [#allocation17], 64
    $region197: #{tpu_custom_call.1} parent=1 // pred_fallthru
      _
    // Predicated region
    $region198: #{tpu_custom_call.1} parent=1 // pred_check
      _
    $region199: #{tpu_custom_call.1} parent=1 // pred_check_branch
      %489 = sbr.rel (0) target = $region201
    $region200: #{tpu_custom_call.1} parent=1 // pred_region
      %491 = dma.done [#allocation17], 16
    $region201: #{tpu_custom_call.1} parent=1 // pred_fallthru
      _
    // Predicated region
    $region202: #{tpu_custom_call.1} parent=1 // pred_check
      _
    $region203: #{tpu_custom_call.1} parent=1 // pred_check_branch
      %493 = sbr.rel (0) target = $region205
    $region204: #{tpu_custom_call.1} parent=1 // pred_region
      %495 = dma.done [#allocation20], 16
    $region205: #{tpu_custom_call.1} parent=1 // pred_fallthru
      _
    // Predicated region
    $region206: #{tpu_custom_call.1} parent=1 // pred_check
      _
    $region207: #{tpu_custom_call.1} parent=1 // pred_check_branch
      %497 = sbr.rel (0) target = $region209
    $region208: #{tpu_custom_call.1} parent=1 // pred_region
      %499 = dma.done [#allocation20], 16
    $region209: #{tpu_custom_call.1} parent=1 // pred_fallthru
      _
    // Predicated region
    $region210: #{tpu_custom_call.1} parent=1 // pred_check
      _
    $region211: #{tpu_custom_call.1} parent=1 // pred_check_branch
      %501 = sbr.rel (0) target = $region213
    $region212: #{tpu_custom_call.1} parent=1 // pred_region
      %503 = dma.done [#allocation23], 16
    $region213: #{tpu_custom_call.1} parent=1 // pred_fallthru
      _
    // Predicated region
    $region214: #{tpu_custom_call.1} parent=1 // pred_check
      _
    $region215: #{tpu_custom_call.1} parent=1 // pred_check_branch
      %505 = sbr.rel (0) target = $region217
    $region216: #{tpu_custom_call.1} parent=1 // pred_region
      %507 = dma.done [#allocation23], 16
    $region217: #{tpu_custom_call.1} parent=1 // pred_fallthru
      _
    // Predicated region
    $region218: #{tpu_custom_call.1} parent=1 // pred_check
      _
    $region219: #{tpu_custom_call.1} parent=1 // pred_check_branch
      %509 = sbr.rel (0) target = $region221
    $region220: #{tpu_custom_call.1} parent=1 // pred_region
      %511 = dma.done [#allocation26], 16
    $region221: #{tpu_custom_call.1} parent=1 // pred_fallthru
      _
    // Predicated region
    $region222: #{tpu_custom_call.1} parent=1 // pred_check
      _
    $region223: #{tpu_custom_call.1} parent=1 // pred_check_branch
      %513 = sbr.rel (0) target = $region225
    $region224: #{tpu_custom_call.1} parent=1 // pred_region
      %515 = dma.done [#allocation26], 16
    $region225: #{tpu_custom_call.1} parent=1 // pred_fallthru
      _
    // Predicated region
    $region226: #{tpu_custom_call.1} parent=1 // pred_check
      _
    $region227: #{tpu_custom_call.1} parent=1 // pred_check_branch
      %517 = sbr.rel (0) target = $region229
    $region228: #{tpu_custom_call.1} parent=1 // pred_region
      %519 = dma.done [#allocation29], 16
    $region229: #{tpu_custom_call.1} parent=1 // pred_fallthru
      _
    // Predicated region
    $region230: #{tpu_custom_call.1} parent=1 // pred_check
      _
    $region231: #{tpu_custom_call.1} parent=1 // pred_check_branch
      %521 = sbr.rel (0) target = $region233
    $region232: #{tpu_custom_call.1} parent=1 // pred_region
      %523 = dma.done [#allocation29], 16
    $region233: #{tpu_custom_call.1} parent=1 // pred_fallthru
      _
    // Predicated region
    $region234: #{tpu_custom_call.1} parent=1 // pred_check
      _
    $region235: #{tpu_custom_call.1} parent=1 // pred_check_branch
      %525 = sbr.rel (0) target = $region237
    $region236: #{tpu_custom_call.1} parent=1 // pred_region
      %527 = dma.done [#allocation32], 256
    $region237: #{tpu_custom_call.1} parent=1 // pred_fallthru
      _
    // Predicated region
    $region238: #{tpu_custom_call.1} parent=1 // pred_check
      _
    $region239: #{tpu_custom_call.1} parent=1 // pred_check_branch
      %529 = sbr.rel (0) target = $region241
    $region240: #{tpu_custom_call.1} parent=1 // pred_region
      %531 = dma.done [#allocation32], 16
    $region241: #{tpu_custom_call.1} parent=1 // pred_fallthru
      _
    // Predicated region
    $region242: #{tpu_custom_call.1} parent=1 // pred_check
      _
    $region243: #{tpu_custom_call.1} parent=1 // pred_check_branch
      %533 = sbr.rel (0) target = $region245
    $region244: #{tpu_custom_call.1} parent=1 // pred_region
      %535 = dma.done [#allocation35], 256
    $region245: #{tpu_custom_call.1} parent=1 // pred_fallthru
      _
    // Predicated region
    $region246: #{tpu_custom_call.1} parent=1 // pred_check
      _
    $region247: #{tpu_custom_call.1} parent=1 // pred_check_branch
      %537 = sbr.rel (0) target = $region249
    $region248: #{tpu_custom_call.1} parent=1 // pred_region
      %539 = dma.done [#allocation35], 16
    $region249: #{tpu_custom_call.1} parent=1 // pred_fallthru
      _
    // Predicated region
    $region250: #{tpu_custom_call.1} parent=1 // pred_check
      _
    $region251: #{tpu_custom_call.1} parent=1 // pred_check_branch
      %541 = sbr.rel (0) target = $region253
    $region252: #{tpu_custom_call.1} parent=1 // pred_region
      %543 = dma.done [#allocation38], 256
    $region253: #{tpu_custom_call.1} parent=1 // pred_fallthru
      _
    // Predicated region
    $region254: #{tpu_custom_call.1} parent=1 // pred_check
      _
    $region255: #{tpu_custom_call.1} parent=1 // pred_check_branch
      %545 = sbr.rel (0) target = $region257
    $region256: #{tpu_custom_call.1} parent=1 // pred_region
      %547 = dma.done [#allocation38], 16
    $region257: #{tpu_custom_call.1} parent=1 // pred_fallthru
      _
    // Predicated region
    $region258: #{tpu_custom_call.1} parent=1 // pred_check
      _
    $region259: #{tpu_custom_call.1} parent=1 // pred_check_branch
      %549 = sbr.rel (0) target = $region261
    $region260: #{tpu_custom_call.1} parent=1 // pred_region
      %551 = dma.done [#allocation41], 16
    $region261: #{tpu_custom_call.1} parent=1 // pred_fallthru
      _
    // Predicated region
    $region262: #{tpu_custom_call.1} parent=1 // pred_check
      _
    $region263: #{tpu_custom_call.1} parent=1 // pred_check_branch
      %553 = sbr.rel (0) target = $region265
    $region264: #{tpu_custom_call.1} parent=1 // pred_region
      %555 = dma.done [#allocation41], 128
    $region265: #{tpu_custom_call.1} parent=1 // pred_fallthru
      _
    // Predicated region
    $region266: #{tpu_custom_call.1} parent=1 // pred_check
      _
    $region267: #{tpu_custom_call.1} parent=1 // pred_check_branch
      %557 = sbr.rel (0) target = $region269
    $region268: #{tpu_custom_call.1} parent=1 // pred_region
      %559 = dma.done [#allocation44], 16
    $region269: #{tpu_custom_call.1} parent=1 // pred_fallthru
      _
    // Predicated region
    $region270: #{tpu_custom_call.1} parent=1 // pred_check
      _
    $region271: #{tpu_custom_call.1} parent=1 // pred_check_branch
      %561 = sbr.rel (0) target = $region273
    $region272: #{tpu_custom_call.1} parent=1 // pred_region
      %563 = dma.done [#allocation44], 16
    $region273: #{tpu_custom_call.1} parent=1 // pred_fallthru
      _
    // Predicated region
    $region274: #{tpu_custom_call.1} parent=1 // pred_check
      _
    $region275: #{tpu_custom_call.1} parent=1 // pred_check_branch
      %565 = sbr.rel (0) target = $region277
    $region276: #{tpu_custom_call.1} parent=1 // pred_region
      %567 = dma.done [#allocation47], 16
    $region277: #{tpu_custom_call.1} parent=1 // pred_fallthru
      _
    %v569 = vld [vmem:[%s3] sm:$0xff]
    %v570 = vld [vmem:[%s3 + $0x8] sm:$0xff]
    %v571 = vld [vmem:[%s3 + $0x10] sm:$0xff]
    %v572 = vld [vmem:[%s3 + $0x18] sm:$0xff]
    %v573 = vld [vmem:[#allocation4] sm:$0x1]
    %v574 = vld [vmem:[#allocation7] sm:$0x1]
    %vm575 = vcmask 261120
    %v576 = vsel %vm575, %v569, 0.0
    %577 = vadd.xlane.f32.xlu0 %v576
    %v578 = vpop.xlane.xlu0 %577
    %v579 = vsel %vm575, %v570, 0.0
    %580 = vadd.xlane.f32.xlu0 %v579
    %v581 = vpop.xlane.xlu0 %580
    %v582 = vsel %vm575, %v571, 0.0
    %583 = vadd.xlane.f32.xlu0 %v582
    %v584 = vpop.xlane.xlu0 %583
    %v585 = vsel %vm575, %v572, 0.0
    %586 = vadd.xlane.f32.xlu0 %v585
    %v587 = vpop.xlane.xlu0 %586
    %v588 = vrcp.pop 32.0
    %v589 = vmul.f32 32.0, %v588
    %v590 = vsub.f32 1.0, %v589
    %v591 = vmul.f32 %v588, %v590
    %v592 = vadd.f32 %v588, %v591
    %vm593 = vweird.f32 %v588
    %v594 = vsel %vm593, %v588, %v592
    %v595 = vmul.f32 %v578, %v594
    %v596 = vmul.f32 %v581, %v594
    %v597 = vmul.f32 %v584, %v594
    %v598 = vmul.f32 %v587, %v594
    %v599 = vsub.f32 %v569, %v595
    %v600 = vsub.f32 %v570, %v596
    %v601 = vsub.f32 %v571, %v597
    %v602 = vsub.f32 %v572, %v598
    %v603 = vmul.f32 %v599, %v599
    %v604 = vmul.f32 %v600, %v600
    %v605 = vmul.f32 %v601, %v601
    %v606 = vmul.f32 %v602, %v602
    %v607 = vsel %vm575, %v603, 0.0
    %608 = vadd.xlane.f32.xlu0 %v607
    %v609 = vpop.xlane.xlu0 %608
    %v610 = vsel %vm575, %v604, 0.0
    %611 = vadd.xlane.f32.xlu0 %v610
    %v612 = vpop.xlane.xlu0 %611
    %v613 = vsel %vm575, %v605, 0.0
    %614 = vadd.xlane.f32.xlu0 %v613
    %v615 = vpop.xlane.xlu0 %614
    %v616 = vsel %vm575, %v606, 0.0
    %617 = vadd.xlane.f32.xlu0 %v616
    %v618 = vpop.xlane.xlu0 %617
    %v619 = vmul.f32 %v609, %v594
    %v620 = vmul.f32 %v612, %v594
    %v621 = vmul.f32 %v615, %v594
    %v622 = vmul.f32 %v618, %v594
    %v623 = vadd.f32 %v619, 1e-05
    %v624 = vadd.f32 %v620, 1e-05
    %v625 = vadd.f32 %v621, 1e-05
    %v626 = vadd.f32 %v622, 1e-05
    %v627 = vrsqrt.pop %v623
    %v628 = vmul.f32 %v627, %v623
    %v629 = vmul.f32 %v628, %v627
    %v630 = vmul.f32 0.5, %v629
    %v631 = vsub.f32 1.5, %v630
    %v632 = vmul.f32 %v627, %v631
    %vm633 = vweird.f32 %v623
    %vm634 = vweird.f32 %v627
    %vm635 = vmor %vm633, %vm634
    %v636 = vsel %vm635, %v627, %v632
    %v637 = vrsqrt.pop %v624
    %v638 = vmul.f32 %v637, %v624
    %v639 = vmul.f32 %v638, %v637
    %v640 = vmul.f32 0.5, %v639
    %v641 = vsub.f32 1.5, %v640
    %v642 = vmul.f32 %v637, %v641
    %vm643 = vweird.f32 %v624
    %vm644 = vweird.f32 %v637
    %vm645 = vmor %vm643, %vm644
    %v646 = vsel %vm645, %v637, %v642
    %v647 = vrsqrt.pop %v625
    %v648 = vmul.f32 %v647, %v625
    %v649 = vmul.f32 %v648, %v647
    %v650 = vmul.f32 0.5, %v649
    %v651 = vsub.f32 1.5, %v650
    %v652 = vmul.f32 %v647, %v651
    %vm653 = vweird.f32 %v625
    %vm654 = vweird.f32 %v647
    %vm655 = vmor %vm653, %vm654
    %v656 = vsel %vm655, %v647, %v652
    %v657 = vrsqrt.pop %v626
    %v658 = vmul.f32 %v657, %v626
    %v659 = vmul.f32 %v658, %v657
    %v660 = vmul.f32 0.5, %v659
    %v661 = vsub.f32 1.5, %v660
    %v662 = vmul.f32 %v657, %v661
    %vm663 = vweird.f32 %v626
    %vm664 = vweird.f32 %v657
    %vm665 = vmor %vm663, %vm664
    %v666 = vsel %vm665, %v657, %v662
    %v667 = vmul.f32 %v599, %v636
    %v668 = vmul.f32 %v600, %v646
    %v669 = vmul.f32 %v601, %v656
    %v670 = vmul.f32 %v602, %v666
    %v672 = vperm.slane %v573, 0
    %v674 = vmul.f32 %v667, %v672
    %v675 = vmul.f32 %v668, %v672
    %v676 = vmul.f32 %v669, %v672
    %v677 = vmul.f32 %v670, %v672
    %v679 = vperm.slane %v574, 0
    %v681 = vadd.f32 %v674, %v679
    %v682 = vadd.f32 %v675, %v679
    %v683 = vadd.f32 %v676, %v679
    %v684 = vadd.f32 %v677, %v679
    %v685 = vpack.c.bf16 %v682, %v681
    %v686 = vpack.c.bf16 %v684, %v683
    %v687 = vld [vmem:[%s9] sm:$0xf]
    %v688 = vld [vmem:[%s9 + $0x4] sm:$0xf]
    %v689 = vld [vmem:[%s9 + $0x8] sm:$0xf]
    %v690 = vld [vmem:[%s9 + $0xc] sm:$0xf]
    %v691 = vld [vmem:[#allocation9] sm:$0x1]
    %v693 = vperm.slane %v691, 0
    %v699 = vunpack.c.l.b16 %v687
    %v700 = vunpack.c.l.b16 %v688
    %v701 = vunpack.c.l.b16 %v689
    %v702 = vunpack.c.l.b16 %v690
    %v703 = vpack.c.b16 %v700, %v699
    %v704 = vpack.c.b16 %v702, %v701
    %v708 = vsel %vm575, %v685, 0
    %v711 = vsel %vm575, %v686, 0
    %713 = vmatpush.bf16.msra.mxu0 0
    %714 = vmatpush.bf16.msra.mxu0 0
    %715 = vmatpush.bf16.msra.mxu0 0
    %716 = vmatpush.bf16.msra.mxu0 0
    %717 = vmatpush.bf16.msra.mxu0 0
    %718 = vmatpush.bf16.msra.mxu0 0
    %719 = vmatpush.bf16.msra.mxu0 %v704
    %720 = vmatpush.bf16.msra.mxu0 %v703
    %721 = vmatmul.bf16.gmra.mxu0 %v708
    %v722 = vpop.f32.mrf.mxu0
    %v723 = vadd.f32 %v693, %v722
    %v724 = vpop.f32.mrf.mxu0
    %v725 = vadd.f32 %v693, %v724
    %726 = vmatmul.bf16.gmra.mxu0 %v711
    %v727 = vpop.f32.mrf.mxu0
    %v728 = vadd.f32 %v693, %v727
    %v729 = vpop.f32.mrf.mxu0
    %v730 = vadd.f32 %v693, %v729
    %731 = vdwg.mxu0
    %v732 = vsub.f32 0.0, %v723
    %v733 = vsub.f32 0.0, %v725
    %v734 = vsub.f32 0.0, %v728
    %v735 = vsub.f32 0.0, %v730
    %v736 = vmul.f32 %v732, 1.442695
    %v737 = vpow.pop %v736
    %v738 = vmul.f32 %v733, 1.442695
    %v739 = vpow.pop %v738
    %v740 = vmul.f32 %v734, 1.442695
    %v741 = vpow.pop %v740
    %v742 = vmul.f32 %v735, 1.442695
    %v743 = vpow.pop %v742
    %v744 = vadd.f32 %v737, 1.0
    %v745 = vadd.f32 %v739, 1.0
    %v746 = vadd.f32 %v741, 1.0
    %v747 = vadd.f32 %v743, 1.0
    %v748 = vrcp.pop %v744
    %v749 = vrcp.pop %v745
    %v750 = vrcp.pop %v746
    %v751 = vrcp.pop %v747
    %v752 = vmul.f32 %v723, %v748
    %v753 = vmul.f32 %v725, %v749
    %v754 = vmul.f32 %v728, %v750
    %v755 = vmul.f32 %v730, %v751
    %v756 = vpack.c.bf16 %v753, %v752
    %v757 = vpack.c.bf16 %v755, %v754
    %v758 = vld [vmem:[%s13] sm:$0xf]
    %v759 = vld [vmem:[%s13 + $0x4] sm:$0xf]
    %v760 = vld [vmem:[%s13 + $0x8] sm:$0xf]
    %v761 = vld [vmem:[%s13 + $0xc] sm:$0xf]
    %v762 = vld [vmem:[%s13 + $0x10] sm:$0xf]
    %v763 = vld [vmem:[%s13 + $0x14] sm:$0xf]
    %v764 = vld [vmem:[%s13 + $0x18] sm:$0xf]
    %v765 = vld [vmem:[%s13 + $0x1c] sm:$0xf]
    %v766 = vld [vmem:[#allocation10] sm:$0x1]
    %v768 = vperm.slane %v766, 0
    %v778 = vunpack.c.l.b16 %v758
    %v779 = vunpack.c.l.b16 %v759
    %v780 = vunpack.c.l.b16 %v760
    %v781 = vunpack.c.l.b16 %v761
    %v782 = vunpack.c.l.b16 %v762
    %v783 = vunpack.c.l.b16 %v763
    %v784 = vunpack.c.l.b16 %v764
    %v785 = vunpack.c.l.b16 %v765
    %v786 = vpack.c.b16 %v779, %v778
    %v787 = vpack.c.b16 %v781, %v780
    %v788 = vpack.c.b16 %v783, %v782
    %v789 = vpack.c.b16 %v785, %v784
    %vm794 = vcmask 523264
    %v796 = vsel %vm794, %v756, 0
    %v799 = vsel %vm794, %v757, 0
    %801 = vmatpush.bf16.msra.mxu0 0
    %802 = vmatpush.bf16.msra.mxu0 0
    %803 = vmatpush.bf16.msra.mxu0 0
    %804 = vmatpush.bf16.msra.mxu0 0
    %805 = vmatpush.bf16.msra.mxu0 %v789
    %806 = vmatpush.bf16.msra.mxu0 %v788
    %807 = vmatpush.bf16.msra.mxu0 %v787
    %808 = vmatpush.bf16.msra.mxu0 %v786
    %809 = vmatmul.bf16.gmra.mxu0 %v796
    %v810 = vpop.f32.mrf.mxu0
    %v811 = vadd.f32 %v768, %v810
    %v812 = vpop.f32.mrf.mxu0
    %v813 = vadd.f32 %v768, %v812
    %814 = vmatmul.bf16.gmra.mxu0 %v799
    %v815 = vpop.f32.mrf.mxu0
    %v816 = vadd.f32 %v768, %v815
    %v817 = vpop.f32.mrf.mxu0
    %v818 = vadd.f32 %v768, %v817
    %819 = vdwg.mxu0
    %v820 = vmul.f32 %v811, 0.5
    %v821 = vmul.f32 %v813, 0.5
    %v822 = vmul.f32 %v816, 0.5
    %v823 = vmul.f32 %v818, 0.5
    %v824 = vadd.f32 %v820, %v569
    %v825 = vadd.f32 %v821, %v570
    %v826 = vadd.f32 %v822, %v571
    %v827 = vadd.f32 %v823, %v572
    %v828 = vld [vmem:[#allocation12] sm:$0x1]
    %v829 = vld [vmem:[#allocation13] sm:$0x1]
    %v830 = vsel %vm575, %v824, 0.0
    %831 = vadd.xlane.f32.xlu0 %v830
    %v832 = vpop.xlane.xlu0 %831
    %v833 = vsel %vm575, %v825, 0.0
    %834 = vadd.xlane.f32.xlu0 %v833
    %v835 = vpop.xlane.xlu0 %834
    %v836 = vsel %vm575, %v826, 0.0
    %837 = vadd.xlane.f32.xlu0 %v836
    %v838 = vpop.xlane.xlu0 %837
    %v839 = vsel %vm575, %v827, 0.0
    %840 = vadd.xlane.f32.xlu0 %v839
    %v841 = vpop.xlane.xlu0 %840
    %v842 = vmul.f32 %v832, %v594
    %v843 = vmul.f32 %v835, %v594
    %v844 = vmul.f32 %v838, %v594
    %v845 = vmul.f32 %v841, %v594
    %v846 = vsub.f32 %v824, %v842
    %v847 = vsub.f32 %v825, %v843
    %v848 = vsub.f32 %v826, %v844
    %v849 = vsub.f32 %v827, %v845
    %v850 = vmul.f32 %v846, %v846
    %v851 = vmul.f32 %v847, %v847
    %v852 = vmul.f32 %v848, %v848
    %v853 = vmul.f32 %v849, %v849
    %v854 = vsel %vm575, %v850, 0.0
    %855 = vadd.xlane.f32.xlu0 %v854
    %v856 = vpop.xlane.xlu0 %855
    %v857 = vsel %vm575, %v851, 0.0
    %858 = vadd.xlane.f32.xlu0 %v857
    %v859 = vpop.xlane.xlu0 %858
    %v860 = vsel %vm575, %v852, 0.0
    %861 = vadd.xlane.f32.xlu0 %v860
    %v862 = vpop.xlane.xlu0 %861
    %v863 = vsel %vm575, %v853, 0.0
    %864 = vadd.xlane.f32.xlu0 %v863
    %v865 = vpop.xlane.xlu0 %864
    %v866 = vmul.f32 %v856, %v594
    %v867 = vmul.f32 %v859, %v594
    %v868 = vmul.f32 %v862, %v594
    %v869 = vmul.f32 %v865, %v594
    %v870 = vadd.f32 %v866, 1e-05
    %v871 = vadd.f32 %v867, 1e-05
    %v872 = vadd.f32 %v868, 1e-05
    %v873 = vadd.f32 %v869, 1e-05
    %v874 = vrsqrt.pop %v870
    %v875 = vmul.f32 %v874, %v870
    %v876 = vmul.f32 %v875, %v874
    %v877 = vmul.f32 0.5, %v876
    %v878 = vsub.f32 1.5, %v877
    %v879 = vmul.f32 %v874, %v878
    %vm880 = vweird.f32 %v870
    %vm881 = vweird.f32 %v874
    %vm882 = vmor %vm880, %vm881
    %v883 = vsel %vm882, %v874, %v879
    %v884 = vrsqrt.pop %v871
    %v885 = vmul.f32 %v884, %v871
    %v886 = vmul.f32 %v885, %v884
    %v887 = vmul.f32 0.5, %v886
    %v888 = vsub.f32 1.5, %v887
    %v889 = vmul.f32 %v884, %v888
    %vm890 = vweird.f32 %v871
    %vm891 = vweird.f32 %v884
    %vm892 = vmor %vm890, %vm891
    %v893 = vsel %vm892, %v884, %v889
    %v894 = vrsqrt.pop %v872
    %v895 = vmul.f32 %v894, %v872
    %v896 = vmul.f32 %v895, %v894
    %v897 = vmul.f32 0.5, %v896
    %v898 = vsub.f32 1.5, %v897
    %v899 = vmul.f32 %v894, %v898
    %vm900 = vweird.f32 %v872
    %vm901 = vweird.f32 %v894
    %vm902 = vmor %vm900, %vm901
    %v903 = vsel %vm902, %v894, %v899
    %v904 = vrsqrt.pop %v873
    %v905 = vmul.f32 %v904, %v873
    %v906 = vmul.f32 %v905, %v904
    %v907 = vmul.f32 0.5, %v906
    %v908 = vsub.f32 1.5, %v907
    %v909 = vmul.f32 %v904, %v908
    %vm910 = vweird.f32 %v873
    %vm911 = vweird.f32 %v904
    %vm912 = vmor %vm910, %vm911
    %v913 = vsel %vm912, %v904, %v909
    %v914 = vmul.f32 %v846, %v883
    %v915 = vmul.f32 %v847, %v893
    %v916 = vmul.f32 %v848, %v903
    %v917 = vmul.f32 %v849, %v913
    %v919 = vperm.slane %v828, 0
    %v921 = vmul.f32 %v914, %v919
    %v922 = vmul.f32 %v915, %v919
    %v923 = vmul.f32 %v916, %v919
    %v924 = vmul.f32 %v917, %v919
    %v926 = vperm.slane %v829, 0
    %v928 = vadd.f32 %v921, %v926
    %v929 = vadd.f32 %v922, %v926
    %v930 = vadd.f32 %v923, %v926
    %v931 = vadd.f32 %v924, %v926
    %v932 = vpack.c.bf16 %v929, %v928
    %v933 = vpack.c.bf16 %v931, %v930
    %v934 = vld [vmem:[%s21] sm:$0xf]
    %v935 = vld [vmem:[%s21 + $0x4] sm:$0xf]
    %v936 = vld [vmem:[%s21 + $0x8] sm:$0xf]
    %v937 = vld [vmem:[%s21 + $0xc] sm:$0xf]
    %v938 = vld [vmem:[#allocation15] sm:$0x1]
    %v940 = vperm.slane %v938, 0
    %v946 = vunpack.c.l.b16 %v934
    %v947 = vunpack.c.l.b16 %v935
    %v948 = vunpack.c.l.b16 %v936
    %v949 = vunpack.c.l.b16 %v937
    %v950 = vpack.c.b16 %v947, %v946
    %v951 = vpack.c.b16 %v949, %v948
    %v955 = vsel %vm575, %v932, 0
    %v958 = vsel %vm575, %v933, 0
    %960 = vmatpush.bf16.msra.mxu0 0
    %961 = vmatpush.bf16.msra.mxu0 0
    %962 = vmatpush.bf16.msra.mxu0 0
    %963 = vmatpush.bf16.msra.mxu0 0
    %964 = vmatpush.bf16.msra.mxu0 0
    %965 = vmatpush.bf16.msra.mxu0 0
    %966 = vmatpush.bf16.msra.mxu0 %v951
    %967 = vmatpush.bf16.msra.mxu0 %v950
    %968 = vmatmul.bf16.gmra.mxu0 %v955
    %v969 = vpop.f32.mrf.mxu0
    %v970 = vadd.f32 %v940, %v969
    %v971 = vpop.f32.mrf.mxu0
    %v972 = vadd.f32 %v940, %v971
    %973 = vmatmul.bf16.gmra.mxu0 %v958
    %v974 = vpop.f32.mrf.mxu0
    %v975 = vadd.f32 %v940, %v974
    %v976 = vpop.f32.mrf.mxu0
    %v977 = vadd.f32 %v940, %v976
    %978 = vdwg.mxu0
    %v979 = vsub.f32 0.0, %v970
    %v980 = vsub.f32 0.0, %v972
    %v981 = vsub.f32 0.0, %v975
    %v982 = vsub.f32 0.0, %v977
    %v983 = vmul.f32 %v979, 1.442695
    %v984 = vpow.pop %v983
    %v985 = vmul.f32 %v980, 1.442695
    %v986 = vpow.pop %v985
    %v987 = vmul.f32 %v981, 1.442695
    %v988 = vpow.pop %v987
    %v989 = vmul.f32 %v982, 1.442695
    %v990 = vpow.pop %v989
    %v991 = vadd.f32 %v984, 1.0
    %v992 = vadd.f32 %v986, 1.0
    %v993 = vadd.f32 %v988, 1.0
    %v994 = vadd.f32 %v990, 1.0
    %v995 = vrcp.pop %v991
    %v996 = vrcp.pop %v992
    %v997 = vrcp.pop %v993
    %v998 = vrcp.pop %v994
    %1003 = vrot.lane.b32.xlu0 %v995, 96
    %v1004 = vpop.permute.xlu0 %1003
    %1005 = vrot.lane.b32.xlu0 %v996, 96
    %v1006 = vpop.permute.xlu0 %1005
    %1007 = vrot.lane.b32.xlu0 %v997, 96
    %v1008 = vpop.permute.xlu0 %1007
    %1009 = vrot.lane.b32.xlu0 %v998, 96
    %v1010 = vpop.permute.xlu0 %1009
    %v1015 = vmul.f32 %v970, %v1004
    %v1016 = vmul.f32 %v972, %v1006
    %v1017 = vmul.f32 %v975, %v1008
    %v1018 = vmul.f32 %v977, %v1010
    %v1019 = vlaneseq
    %v1020 = vshrl.u32 %v1019, 7
    %v1021 = vadd.s32 %v1020, 8
    %v1022 = vadd.s32 %v1020, 16
    %v1023 = vadd.s32 %v1020, 24
    %vm1024 = vcmp.lt.s32.totalorder %v1020, 0
    %v1025 = vsub.s32 0, %v1020
    %v1026 = vsel %vm1024, %v1025, %v1020
    %v1027 = vshrl.u32 %v1026, 4
    %v1028 = vand.u32 %v1026, 15
    %v1029 = vsub.s32 0, %v1028
    %v1030 = vsel %vm1024, %v1029, %v1028
    %vm1031 = vcmp.lt.s32.totalorder %v1021, 0
    %v1032 = vsub.s32 0, %v1021
    %v1033 = vsel %vm1031, %v1032, %v1021
    %v1034 = vshrl.u32 %v1033, 4
    %v1035 = vand.u32 %v1033, 15
    %v1036 = vsub.s32 0, %v1035
    %v1037 = vsel %vm1031, %v1036, %v1035
    %vm1038 = vcmp.lt.s32.totalorder %v1022, 0
    %v1039 = vsub.s32 0, %v1022
    %v1040 = vsel %vm1038, %v1039, %v1022
    %v1041 = vshrl.u32 %v1040, 4
    %v1042 = vand.u32 %v1040, 15
    %v1043 = vsub.s32 0, %v1042
    %v1044 = vsel %vm1038, %v1043, %v1042
    %vm1045 = vcmp.lt.s32.totalorder %v1023, 0
    %v1046 = vsub.s32 0, %v1023
    %v1047 = vsel %vm1045, %v1046, %v1023
    %v1048 = vshrl.u32 %v1047, 4
    %v1049 = vand.u32 %v1047, 15
    %v1050 = vsub.s32 0, %v1049
    %v1051 = vsel %vm1045, %v1050, %v1049
    %vm1052 = vcmp.ne.s32.totalorder %v1030, 0
    %vm1053 = vcmp.ne.s32.totalorder %v1037, 0
    %vm1054 = vcmp.ne.s32.totalorder %v1044, 0
    %vm1055 = vcmp.ne.s32.totalorder %v1051, 0
    %vm1056 = vcmp.lt.s32.totalorder %v1030, 0
    %vm1057 = vcmp.lt.s32.totalorder %v1037, 0
    %vm1058 = vcmp.lt.s32.totalorder %v1044, 0
    %vm1059 = vcmp.lt.s32.totalorder %v1051, 0
    %vm1060 = vmand %vm1056, %vm1052
    %vm1061 = vmand %vm1057, %vm1053
    %vm1062 = vmand %vm1058, %vm1054
    %vm1063 = vmand %vm1059, %vm1055
    %v1064 = vadd.s32 %v1030, 16
    %v1065 = vadd.s32 %v1037, 16
    %v1066 = vadd.s32 %v1044, 16
    %v1067 = vadd.s32 %v1051, 16
    %v1068 = vsel %vm1060, %v1064, %v1030
    %v1069 = vsel %vm1061, %v1065, %v1037
    %v1070 = vsel %vm1062, %v1066, %v1044
    %v1071 = vsel %vm1063, %v1067, %v1051
    %v1072 = vld [vmem:[#allocation16] sm:$0x7]
    %vm1073 = vcmp.ge.s32.totalorder %v1068, 2
    %vm1074 = vcmp.ge.s32.totalorder %v1069, 2
    %vm1075 = vcmp.ge.s32.totalorder %v1070, 2
    %vm1076 = vcmp.ge.s32.totalorder %v1071, 2
    %v1077 = vrot.slane %v1015, 6
    %v1078 = vrot.slane %v1016, 6
    %v1079 = vrot.slane %v1017, 6
    %v1080 = vrot.slane %v1018, 6
    %vm1081 = vcmp.lt.s32.totalorder %v1020, 2
    %v1082 = vsel %vm1081, %v1079, %v1080
    %v1083 = vsel %vm1081, %v1078, %v1079
    %v1084 = vsel %vm1081, %v1077, %v1078
    %v1085 = vsel %vm1081, %v1080, %v1077
    %v1086 = vsel %vm1073, %v1085, 0.0
    %v1087 = vsel %vm1074, %v1084, 0.0
    %v1088 = vsel %vm1075, %v1083, 0.0
    %v1089 = vsel %vm1076, %v1082, 0.0
    %v1090 = vperm.slane %v1072, 0
    %v1091 = vmul.f32 %v1086, %v1090
    %v1092 = vmul.f32 %v1087, %v1090
    %v1093 = vmul.f32 %v1088, %v1090
    %v1094 = vmul.f32 %v1089, %v1090
    %v1095 = vadd.f32 %v1091, 0.0
    %v1096 = vadd.f32 %v1092, 0.0
    %v1097 = vadd.f32 %v1093, 0.0
    %v1098 = vadd.f32 %v1094, 0.0
    %vm1099 = vcmp.ge.s32.totalorder %v1068, 1
    %vm1100 = vcmp.ge.s32.totalorder %v1069, 1
    %vm1101 = vcmp.ge.s32.totalorder %v1070, 1
    %vm1102 = vcmp.ge.s32.totalorder %v1071, 1
    %v1103 = vrot.slane %v1015, 7
    %v1104 = vrot.slane %v1016, 7
    %v1105 = vrot.slane %v1017, 7
    %v1106 = vrot.slane %v1018, 7
    %vm1107 = vcmp.lt.s32.totalorder %v1020, 1
    %v1108 = vsel %vm1107, %v1105, %v1106
    %v1109 = vsel %vm1107, %v1104, %v1105
    %v1110 = vsel %vm1107, %v1103, %v1104
    %v1111 = vsel %vm1107, %v1106, %v1103
    %v1112 = vsel %vm1099, %v1111, 0.0
    %v1113 = vsel %vm1100, %v1110, 0.0
    %v1114 = vsel %vm1101, %v1109, 0.0
    %v1115 = vsel %vm1102, %v1108, 0.0
    %v1116 = vperm.slane %v1072, 1
    %v1117 = vmul.f32 %v1112, %v1116
    %v1118 = vmul.f32 %v1113, %v1116
    %v1119 = vmul.f32 %v1114, %v1116
    %v1120 = vmul.f32 %v1115, %v1116
    %v1121 = vadd.f32 %v1095, %v1117
    %v1122 = vadd.f32 %v1096, %v1118
    %v1123 = vadd.f32 %v1097, %v1119
    %v1124 = vadd.f32 %v1098, %v1120
    %v1125 = vperm.slane %v1072, 2
    %v1126 = vmul.f32 %v1015, %v1125
    %v1127 = vmul.f32 %v1016, %v1125
    %v1128 = vmul.f32 %v1017, %v1125
    %v1129 = vmul.f32 %v1018, %v1125
    %v1130 = vadd.f32 %v1121, %v1126
    %v1131 = vadd.f32 %v1122, %v1127
    %v1132 = vadd.f32 %v1123, %v1128
    %v1133 = vadd.f32 %v1124, %v1129
    %v1134 = vld [vmem:[#allocation18] sm:$0x1]
    %v1136 = vperm.slane %v1134, 0
    %v1138 = vadd.f32 %v1130, %v1136
    %v1139 = vadd.f32 %v1131, %v1136
    %v1140 = vadd.f32 %v1132, %v1136
    %v1141 = vadd.f32 %v1133, %v1136
    %v1142 = vld [vmem:[#allocation19] sm:$0x1]
    %v1144 = vperm.slane %v1142, 0
    %v1146 = vsub.f32 %v1138, %v1144
    %v1147 = vsub.f32 %v1139, %v1144
    %v1148 = vsub.f32 %v1140, %v1144
    %v1149 = vsub.f32 %v1141, %v1144
    %v1150 = vld [vmem:[#allocation21] sm:$0x1]
    %v1151 = vadd.f32 %v1150, 1e-05
    %v1152 = vrsqrt.pop %v1151
    %v1153 = vmul.f32 %v1152, %v1151
    %v1154 = vmul.f32 %v1153, %v1152
    %v1155 = vmul.f32 0.5, %v1154
    %v1156 = vsub.f32 1.5, %v1155
    %v1157 = vmul.f32 %v1152, %v1156
    %vm1158 = vweird.f32 %v1151
    %vm1159 = vweird.f32 %v1152
    %vm1160 = vmor %vm1158, %vm1159
    %v1161 = vsel %vm1160, %v1152, %v1157
    %v1163 = vperm.slane %v1161, 0
    %v1165 = vmul.f32 %v1146, %v1163
    %v1166 = vmul.f32 %v1147, %v1163
    %v1167 = vmul.f32 %v1148, %v1163
    %v1168 = vmul.f32 %v1149, %v1163
    %v1169 = vld [vmem:[#allocation22] sm:$0x1]
    %v1171 = vperm.slane %v1169, 0
    %v1173 = vmul.f32 %v1165, %v1171
    %v1174 = vmul.f32 %v1166, %v1171
    %v1175 = vmul.f32 %v1167, %v1171
    %v1176 = vmul.f32 %v1168, %v1171
    %v1177 = vld [vmem:[#allocation24] sm:$0x1]
    %v1179 = vperm.slane %v1177, 0
    %v1181 = vadd.f32 %v1173, %v1179
    %v1182 = vadd.f32 %v1174, %v1179
    %v1183 = vadd.f32 %v1175, %v1179
    %v1184 = vadd.f32 %v1176, %v1179
    %v1185 = vsub.f32 0.0, %v1181
    %v1186 = vsub.f32 0.0, %v1182
    %v1187 = vsub.f32 0.0, %v1183
    %v1188 = vsub.f32 0.0, %v1184
    %v1189 = vmul.f32 %v1185, 1.442695
    %v1190 = vpow.pop %v1189
    %v1191 = vmul.f32 %v1186, 1.442695
    %v1192 = vpow.pop %v1191
    %v1193 = vmul.f32 %v1187, 1.442695
    %v1194 = vpow.pop %v1193
    %v1195 = vmul.f32 %v1188, 1.442695
    %v1196 = vpow.pop %v1195
    %v1197 = vadd.f32 %v1190, 1.0
    %v1198 = vadd.f32 %v1192, 1.0
    %v1199 = vadd.f32 %v1194, 1.0
    %v1200 = vadd.f32 %v1196, 1.0
    %v1201 = vrcp.pop %v1197
    %v1202 = vrcp.pop %v1198
    %v1203 = vrcp.pop %v1199
    %v1204 = vrcp.pop %v1200
    %v1205 = vmul.f32 %v1181, %v1201
    %v1206 = vmul.f32 %v1182, %v1202
    %v1207 = vmul.f32 %v1183, %v1203
    %v1208 = vmul.f32 %v1184, %v1204
    %v1209 = vpack.c.bf16 %v1206, %v1205
    %v1210 = vpack.c.bf16 %v1208, %v1207
    %v1211 = vld [vmem:[%s37] sm:$0xf]
    %v1212 = vld [vmem:[%s37 + $0x4] sm:$0xf]
    %v1213 = vld [vmem:[%s37 + $0x8] sm:$0xf]
    %v1214 = vld [vmem:[%s37 + $0xc] sm:$0xf]
    %v1215 = vld [vmem:[#allocation25] sm:$0x1]
    %v1217 = vperm.slane %v1215, 0
    %v1223 = vunpack.c.l.b16 %v1211
    %v1224 = vunpack.c.l.b16 %v1212
    %v1225 = vunpack.c.l.b16 %v1213
    %v1226 = vunpack.c.l.b16 %v1214
    %v1227 = vpack.c.b16 %v1224, %v1223
    %v1228 = vpack.c.b16 %v1226, %v1225
    %v1232 = vsel %vm575, %v1209, 0
    %v1235 = vsel %vm575, %v1210, 0
    %1237 = vmatpush.bf16.msra.mxu0 0
    %1238 = vmatpush.bf16.msra.mxu0 0
    %1239 = vmatpush.bf16.msra.mxu0 0
    %1240 = vmatpush.bf16.msra.mxu0 0
    %1241 = vmatpush.bf16.msra.mxu0 0
    %1242 = vmatpush.bf16.msra.mxu0 0
    %1243 = vmatpush.bf16.msra.mxu0 %v1228
    %1244 = vmatpush.bf16.msra.mxu0 %v1227
    %1245 = vmatmul.bf16.gmra.mxu0 %v1232
    %v1246 = vpop.f32.mrf.mxu0
    %v1247 = vadd.f32 %v1217, %v1246
    %v1248 = vpop.f32.mrf.mxu0
    %v1249 = vadd.f32 %v1217, %v1248
    %1250 = vmatmul.bf16.gmra.mxu0 %v1235
    %v1251 = vpop.f32.mrf.mxu0
    %v1252 = vadd.f32 %v1217, %v1251
    %v1253 = vpop.f32.mrf.mxu0
    %v1254 = vadd.f32 %v1217, %v1253
    %1255 = vdwg.mxu0
    %v1256 = vadd.f32 %v1247, %v824
    %v1257 = vadd.f32 %v1249, %v825
    %v1258 = vadd.f32 %v1252, %v826
    %v1259 = vadd.f32 %v1254, %v827
    %v1260 = vld [vmem:[#allocation27] sm:$0x1]
    %v1261 = vld [vmem:[#allocation28] sm:$0x1]
    %v1262 = vsel %vm575, %v1256, 0.0
    %1263 = vadd.xlane.f32.xlu0 %v1262
    %v1264 = vpop.xlane.xlu0 %1263
    %v1265 = vsel %vm575, %v1257, 0.0
    %1266 = vadd.xlane.f32.xlu0 %v1265
    %v1267 = vpop.xlane.xlu0 %1266
    %v1268 = vsel %vm575, %v1258, 0.0
    %1269 = vadd.xlane.f32.xlu0 %v1268
    %v1270 = vpop.xlane.xlu0 %1269
    %v1271 = vsel %vm575, %v1259, 0.0
    %1272 = vadd.xlane.f32.xlu0 %v1271
    %v1273 = vpop.xlane.xlu0 %1272
    %v1274 = vmul.f32 %v1264, %v594
    %v1275 = vmul.f32 %v1267, %v594
    %v1276 = vmul.f32 %v1270, %v594
    %v1277 = vmul.f32 %v1273, %v594
    %v1278 = vsub.f32 %v1256, %v1274
    %v1279 = vsub.f32 %v1257, %v1275
    %v1280 = vsub.f32 %v1258, %v1276
    %v1281 = vsub.f32 %v1259, %v1277
    %v1282 = vmul.f32 %v1278, %v1278
    %v1283 = vmul.f32 %v1279, %v1279
    %v1284 = vmul.f32 %v1280, %v1280
    %v1285 = vmul.f32 %v1281, %v1281
    %v1286 = vsel %vm575, %v1282, 0.0
    %1287 = vadd.xlane.f32.xlu0 %v1286
    %v1288 = vpop.xlane.xlu0 %1287
    %v1289 = vsel %vm575, %v1283, 0.0
    %1290 = vadd.xlane.f32.xlu0 %v1289
    %v1291 = vpop.xlane.xlu0 %1290
    %v1292 = vsel %vm575, %v1284, 0.0
    %1293 = vadd.xlane.f32.xlu0 %v1292
    %v1294 = vpop.xlane.xlu0 %1293
    %v1295 = vsel %vm575, %v1285, 0.0
    %1296 = vadd.xlane.f32.xlu0 %v1295
    %v1297 = vpop.xlane.xlu0 %1296
    %v1298 = vmul.f32 %v1288, %v594
    %v1299 = vmul.f32 %v1291, %v594
    %v1300 = vmul.f32 %v1294, %v594
    %v1301 = vmul.f32 %v1297, %v594
    %v1302 = vadd.f32 %v1298, 1e-05
    %v1303 = vadd.f32 %v1299, 1e-05
    %v1304 = vadd.f32 %v1300, 1e-05
    %v1305 = vadd.f32 %v1301, 1e-05
    %v1306 = vrsqrt.pop %v1302
    %v1307 = vmul.f32 %v1306, %v1302
    %v1308 = vmul.f32 %v1307, %v1306
    %v1309 = vmul.f32 0.5, %v1308
    %v1310 = vsub.f32 1.5, %v1309
    %v1311 = vmul.f32 %v1306, %v1310
    %vm1312 = vweird.f32 %v1302
    %vm1313 = vweird.f32 %v1306
    %vm1314 = vmor %vm1312, %vm1313
    %v1315 = vsel %vm1314, %v1306, %v1311
    %v1316 = vrsqrt.pop %v1303
    %v1317 = vmul.f32 %v1316, %v1303
    %v1318 = vmul.f32 %v1317, %v1316
    %v1319 = vmul.f32 0.5, %v1318
    %v1320 = vsub.f32 1.5, %v1319
    %v1321 = vmul.f32 %v1316, %v1320
    %vm1322 = vweird.f32 %v1303
    %vm1323 = vweird.f32 %v1316
    %vm1324 = vmor %vm1322, %vm1323
    %v1325 = vsel %vm1324, %v1316, %v1321
    %v1326 = vrsqrt.pop %v1304
    %v1327 = vmul.f32 %v1326, %v1304
    %v1328 = vmul.f32 %v1327, %v1326
    %v1329 = vmul.f32 0.5, %v1328
    %v1330 = vsub.f32 1.5, %v1329
    %v1331 = vmul.f32 %v1326, %v1330
    %vm1332 = vweird.f32 %v1304
    %vm1333 = vweird.f32 %v1326
    %vm1334 = vmor %vm1332, %vm1333
    %v1335 = vsel %vm1334, %v1326, %v1331
    %v1336 = vrsqrt.pop %v1305
    %v1337 = vmul.f32 %v1336, %v1305
    %v1338 = vmul.f32 %v1337, %v1336
    %v1339 = vmul.f32 0.5, %v1338
    %v1340 = vsub.f32 1.5, %v1339
    %v1341 = vmul.f32 %v1336, %v1340
    %vm1342 = vweird.f32 %v1305
    %vm1343 = vweird.f32 %v1336
    %vm1344 = vmor %vm1342, %vm1343
    %v1345 = vsel %vm1344, %v1336, %v1341
    %v1346 = vmul.f32 %v1278, %v1315
    %v1347 = vmul.f32 %v1279, %v1325
    %v1348 = vmul.f32 %v1280, %v1335
    %v1349 = vmul.f32 %v1281, %v1345
    %v1351 = vperm.slane %v1260, 0
    %v1353 = vmul.f32 %v1346, %v1351
    %v1354 = vmul.f32 %v1347, %v1351
    %v1355 = vmul.f32 %v1348, %v1351
    %v1356 = vmul.f32 %v1349, %v1351
    %v1358 = vperm.slane %v1261, 0
    %v1360 = vadd.f32 %v1353, %v1358
    %v1361 = vadd.f32 %v1354, %v1358
    %v1362 = vadd.f32 %v1355, %v1358
    %v1363 = vadd.f32 %v1356, %v1358
    %v1364 = vpack.c.bf16 %v1361, %v1360
    %v1365 = vpack.c.bf16 %v1363, %v1362
    %v1366 = vld [vmem:[%s45] sm:$0xf]
    %v1367 = vld [vmem:[%s45 + $0x4] sm:$0xf]
    %v1368 = vld [vmem:[%s45 + $0x8] sm:$0xf]
    %v1369 = vld [vmem:[%s45 + $0xc] sm:$0xf]
    %v1370 = vld [vmem:[#allocation30] sm:$0x1]
    %v1372 = vperm.slane %v1370, 0
    %v1378 = vunpack.c.l.b16 %v1366
    %v1379 = vunpack.c.l.b16 %v1367
    %v1380 = vunpack.c.l.b16 %v1368
    %v1381 = vunpack.c.l.b16 %v1369
    %v1382 = vpack.c.b16 %v1379, %v1378
    %v1383 = vpack.c.b16 %v1381, %v1380
    %v1387 = vsel %vm575, %v1364, 0
    %v1390 = vsel %vm575, %v1365, 0
    %1392 = vmatpush.bf16.msra.mxu0 0
    %1393 = vmatpush.bf16.msra.mxu0 0
    %1394 = vmatpush.bf16.msra.mxu0 0
    %1395 = vmatpush.bf16.msra.mxu0 0
    %1396 = vmatpush.bf16.msra.mxu0 0
    %1397 = vmatpush.bf16.msra.mxu0 0
    %1398 = vmatpush.bf16.msra.mxu0 %v1383
    %1399 = vmatpush.bf16.msra.mxu0 %v1382
    %1400 = vmatmul.bf16.gmra.mxu0 %v1387
    %v1401 = vpop.f32.mrf.mxu0
    %v1402 = vadd.f32 %v1372, %v1401
    %v1403 = vpop.f32.mrf.mxu0
    %v1404 = vadd.f32 %v1372, %v1403
    %1405 = vmatmul.bf16.gmra.mxu0 %v1390
    %v1406 = vpop.f32.mrf.mxu0
    %v1407 = vadd.f32 %v1372, %v1406
    %v1408 = vpop.f32.mrf.mxu0
    %v1409 = vadd.f32 %v1372, %v1408
    %1410 = vdwg.mxu0
    %v1411 = vld [vmem:[#allocation31] sm:$0xf]
    %v1412 = vld [vmem:[#allocation31 + $0x4] sm:$0xf]
    %v1413 = vld [vmem:[#allocation31 + $0x8] sm:$0xf]
    %v1414 = vld [vmem:[#allocation31 + $0xc] sm:$0xf]
    %v1415 = vld [vmem:[#allocation33] sm:$0x1]
    %v1417 = vperm.slane %v1415, 0
    %v1423 = vunpack.c.l.b16 %v1411
    %v1424 = vunpack.c.l.b16 %v1412
    %v1425 = vunpack.c.l.b16 %v1413
    %v1426 = vunpack.c.l.b16 %v1414
    %v1427 = vpack.c.b16 %v1424, %v1423
    %v1428 = vpack.c.b16 %v1426, %v1425
    %1431 = vmatpush.bf16.msra.mxu0 0
    %1432 = vmatpush.bf16.msra.mxu0 0
    %1433 = vmatpush.bf16.msra.mxu0 0
    %1434 = vmatpush.bf16.msra.mxu0 0
    %1435 = vmatpush.bf16.msra.mxu0 0
    %1436 = vmatpush.bf16.msra.mxu0 0
    %1437 = vmatpush.bf16.msra.mxu0 %v1428
    %1438 = vmatpush.bf16.msra.mxu0 %v1427
    %1439 = vmatmul.bf16.gmra.mxu0 %v1387
    %v1440 = vpop.f32.mrf.mxu0
    %v1441 = vadd.f32 %v1417, %v1440
    %v1442 = vpop.f32.mrf.mxu0
    %v1443 = vadd.f32 %v1417, %v1442
    %1444 = vmatmul.bf16.gmra.mxu0 %v1390
    %v1445 = vpop.f32.mrf.mxu0
    %v1446 = vadd.f32 %v1417, %v1445
    %v1447 = vpop.f32.mrf.mxu0
    %v1448 = vadd.f32 %v1417, %v1447
    %1449 = vdwg.mxu0
    %v1450 = vld [vmem:[#allocation34] sm:$0xf]
    %v1451 = vld [vmem:[#allocation34 + $0x4] sm:$0xf]
    %v1452 = vld [vmem:[#allocation34 + $0x8] sm:$0xf]
    %v1453 = vld [vmem:[#allocation34 + $0xc] sm:$0xf]
    %v1454 = vld [vmem:[#allocation36] sm:$0x1]
    %v1456 = vperm.slane %v1454, 0
    %v1462 = vunpack.c.l.b16 %v1450
    %v1463 = vunpack.c.l.b16 %v1451
    %v1464 = vunpack.c.l.b16 %v1452
    %v1465 = vunpack.c.l.b16 %v1453
    %v1466 = vpack.c.b16 %v1463, %v1462
    %v1467 = vpack.c.b16 %v1465, %v1464
    %1470 = vmatpush.bf16.msra.mxu0 0
    %1471 = vmatpush.bf16.msra.mxu0 0
    %1472 = vmatpush.bf16.msra.mxu0 0
    %1473 = vmatpush.bf16.msra.mxu0 0
    %1474 = vmatpush.bf16.msra.mxu0 0
    %1475 = vmatpush.bf16.msra.mxu0 0
    %1476 = vmatpush.bf16.msra.mxu0 %v1467
    %1477 = vmatpush.bf16.msra.mxu0 %v1466
    %1478 = vmatmul.bf16.gmra.mxu0 %v1387
    %v1479 = vpop.f32.mrf.mxu0
    %v1480 = vadd.f32 %v1456, %v1479
    %v1481 = vpop.f32.mrf.mxu0
    %v1482 = vadd.f32 %v1456, %v1481
    %1483 = vmatmul.bf16.gmra.mxu0 %v1390
    %v1484 = vpop.f32.mrf.mxu0
    %v1485 = vadd.f32 %v1456, %v1484
    %v1486 = vpop.f32.mrf.mxu0
    %v1487 = vadd.f32 %v1456, %v1486
    %1488 = vdwg.mxu0
    %v1489 = vlaneseq
    %v1490 = vand.u32 %v1489, 127
    %vm1491 = vcmp.le.s32.totalorder %v1490, %v1020
    %vm1492 = vcmp.le.s32.totalorder %v1490, %v1021
    %v1493 = vsub.s32 %v1020, %v1490
    %v1494 = vsub.s32 %v1021, %v1490
    %vm1495 = vcmp.le.s32.totalorder %v1493, 8
    %vm1496 = vcmp.le.s32.totalorder %v1494, 8
    %vm1497 = vmand %vm1491, %vm1495
    %vm1498 = vmand %vm1492, %vm1496
    %s1499 = smul.u32 0, 2
    %s1500 = sld [smem:[#allocation3 + %s1499]]
    %v1501 = vstv %s1500
    %vm1502 = vcmp.lt.s32.totalorder %v1490, %v1501
    %vm1503 = vmand %vm1497, %vm1502
    %vm1504 = vmand %vm1498, %vm1502
    %v1505 = vsel %vm1503, 0.0, -1e+30
    %v1506 = vsel %vm1504, 0.0, -1e+30
    %v1507 = vpack.c.bf16 %v1404, %v1402
    %v1508 = vpack.c.bf16 %v1443, %v1441
    %vm1509 = vcmask 64512
    %v1511 = vsel %vm1509, %v1507, 0
    %v1514 = vsel %vm1509, %v1508, 0
    %1516 = vmatpush.bf16.xpose.msra.mxu0 0
    %1517 = vmatpush.bf16.xpose.msra.mxu0 0
    %1518 = vmatpush.bf16.xpose.msra.mxu0 0
    %1519 = vmatpush.bf16.xpose.msra.mxu0 0
    %1520 = vmatpush.bf16.xpose.msra.mxu0 0
    %1521 = vmatpush.bf16.xpose.msra.mxu0 0
    %1522 = vmatpush.bf16.xpose.msra.mxu0 0
    %1523 = vmatpush.bf16.xpose.msra.mxu0 %v1514
    %1524 = vmatmul.bf16.gmra.mxu0 %v1511
    %v1525 = vpop.f32.mrf.mxu0
    %v1526 = vadd.f32 0.0, %v1525
    %v1527 = vpop.f32.mrf.mxu0
    %v1528 = vadd.f32 0.0, %v1527
    %1529 = vdwg.mxu0
    %v1530 = vmul.f32 %v1526, 0.35355338
    %v1531 = vmul.f32 %v1528, 0.35355338
    %v1532 = vadd.f32 %v1530, %v1505
    %v1533 = vadd.f32 %v1531, %v1506
    %vm1534 = vcmask 130048
    %v1535 = vsel %vm1534, %v1532, -inf
    %1536 = vmax.xlane.f32.xlu0 %v1535
    %v1537 = vpop.xlane.xlu0 %1536
    %v1538 = vsel %vm1534, %v1533, -inf
    %1539 = vmax.xlane.f32.xlu0 %v1538
    %v1540 = vpop.xlane.xlu0 %1539
    %v1541 = vsub.f32 %v1532, %v1537
    %v1542 = vsub.f32 %v1533, %v1540
    %v1543 = vmul.f32 %v1541, 1.442695
    %v1544 = vpow.pop %v1543
    %v1545 = vmul.f32 %v1542, 1.442695
    %v1546 = vpow.pop %v1545
    %v1547 = vsel %vm1534, %v1544, 0.0
    %1548 = vadd.xlane.f32.xlu0 %v1547
    %v1549 = vpop.xlane.xlu0 %1548
    %v1550 = vsel %vm1534, %v1546, 0.0
    %1551 = vadd.xlane.f32.xlu0 %v1550
    %v1552 = vpop.xlane.xlu0 %1551
    %v1553 = vrcp.pop %v1549
    %v1554 = vrcp.pop %v1552
    %v1555 = vmul.f32 %v1544, %v1553
    %v1556 = vmul.f32 %v1546, %v1554
    %v1557 = vpack.c.bf16 %v1556, %v1555
    %v1558 = vpack.c.bf16 %v1482, %v1480
    %v1560 = vsel %vm1534, %v1557, 0
    %1562 = vmatpush.bf16.msra.mxu0 0
    %1563 = vmatpush.bf16.msra.mxu0 0
    %1564 = vmatpush.bf16.msra.mxu0 0
    %1565 = vmatpush.bf16.msra.mxu0 0
    %1566 = vmatpush.bf16.msra.mxu0 0
    %1567 = vmatpush.bf16.msra.mxu0 0
    %1568 = vmatpush.bf16.msra.mxu0 0
    %1569 = vmatpush.bf16.msra.mxu0 %v1558
    %1570 = vmatmul.bf16.gmra.mxu0 %v1560
    %v1571 = vpop.f32.mrf.mxu0
    %v1572 = vadd.f32 0.0, %v1571
    %v1573 = vpop.f32.mrf.mxu0
    %v1574 = vadd.f32 0.0, %v1573
    %1575 = vdwg.mxu0
    %1577 = vrot.lane.b32.xlu0 %v1507, 120
    %v1578 = vpop.permute.xlu0 %1577
    %1580 = vrot.lane.b32.xlu0 %v1508, 120
    %v1581 = vpop.permute.xlu0 %1580
    %v1583 = vsel %vm1509, %v1578, 0
    %v1586 = vsel %vm1509, %v1581, 0
    %1588 = vmatpush.bf16.xpose.msra.mxu0 0
    %1589 = vmatpush.bf16.xpose.msra.mxu0 0
    %1590 = vmatpush.bf16.xpose.msra.mxu0 0
    %1591 = vmatpush.bf16.xpose.msra.mxu0 0
    %1592 = vmatpush.bf16.xpose.msra.mxu0 0
    %1593 = vmatpush.bf16.xpose.msra.mxu0 0
    %1594 = vmatpush.bf16.xpose.msra.mxu0 0
    %1595 = vmatpush.bf16.xpose.msra.mxu0 %v1586
    %1596 = vmatmul.bf16.gmra.mxu0 %v1583
    %v1597 = vpop.f32.mrf.mxu0
    %v1598 = vadd.f32 0.0, %v1597
    %v1599 = vpop.f32.mrf.mxu0
    %v1600 = vadd.f32 0.0, %v1599
    %1601 = vdwg.mxu0
    %v1602 = vmul.f32 %v1598, 0.35355338
    %v1603 = vmul.f32 %v1600, 0.35355338
    %v1604 = vadd.f32 %v1602, %v1505
    %v1605 = vadd.f32 %v1603, %v1506
    %v1606 = vsel %vm1534, %v1604, -inf
    %1607 = vmax.xlane.f32.xlu0 %v1606
    %v1608 = vpop.xlane.xlu0 %1607
    %v1609 = vsel %vm1534, %v1605, -inf
    %1610 = vmax.xlane.f32.xlu0 %v1609
    %v1611 = vpop.xlane.xlu0 %1610
    %v1612 = vsub.f32 %v1604, %v1608
    %v1613 = vsub.f32 %v1605, %v1611
    %v1614 = vmul.f32 %v1612, 1.442695
    %v1615 = vpow.pop %v1614
    %v1616 = vmul.f32 %v1613, 1.442695
    %v1617 = vpow.pop %v1616
    %v1618 = vsel %vm1534, %v1615, 0.0
    %1619 = vadd.xlane.f32.xlu0 %v1618
    %v1620 = vpop.xlane.xlu0 %1619
    %v1621 = vsel %vm1534, %v1617, 0.0
    %1622 = vadd.xlane.f32.xlu0 %v1621
    %v1623 = vpop.xlane.xlu0 %1622
    %v1624 = vrcp.pop %v1620
    %v1625 = vrcp.pop %v1623
    %v1626 = vmul.f32 %v1615, %v1624
    %v1627 = vmul.f32 %v1617, %v1625
    %v1628 = vpack.c.bf16 %v1627, %v1626
    %1630 = vrot.lane.b32.xlu0 %v1558, 120
    %v1631 = vpop.permute.xlu0 %1630
    %v1634 = vsel %vm1534, %v1628, 0
    %1636 = vmatpush.bf16.msra.mxu0 0
    %1637 = vmatpush.bf16.msra.mxu0 0
    %1638 = vmatpush.bf16.msra.mxu0 0
    %1639 = vmatpush.bf16.msra.mxu0 0
    %1640 = vmatpush.bf16.msra.mxu0 0
    %1641 = vmatpush.bf16.msra.mxu0 0
    %1642 = vmatpush.bf16.msra.mxu0 0
    %1643 = vmatpush.bf16.msra.mxu0 %v1631
    %1644 = vmatmul.bf16.gmra.mxu0 %v1634
    %v1645 = vpop.f32.mrf.mxu0
    %v1646 = vadd.f32 0.0, %v1645
    %v1647 = vpop.f32.mrf.mxu0
    %v1648 = vadd.f32 0.0, %v1647
    %1649 = vdwg.mxu0
    %1650 = vrot.lane.b32.xlu0 %v1507, 112
    %v1651 = vpop.permute.xlu0 %1650
    %1652 = vrot.lane.b32.xlu0 %v1508, 112
    %v1653 = vpop.permute.xlu0 %1652
    %v1655 = vsel %vm1509, %v1651, 0
    %v1658 = vsel %vm1509, %v1653, 0
    %1660 = vmatpush.bf16.xpose.msra.mxu0 0
    %1661 = vmatpush.bf16.xpose.msra.mxu0 0
    %1662 = vmatpush.bf16.xpose.msra.mxu0 0
    %1663 = vmatpush.bf16.xpose.msra.mxu0 0
    %1664 = vmatpush.bf16.xpose.msra.mxu0 0
    %1665 = vmatpush.bf16.xpose.msra.mxu0 0
    %1666 = vmatpush.bf16.xpose.msra.mxu0 0
    %1667 = vmatpush.bf16.xpose.msra.mxu0 %v1658
    %1668 = vmatmul.bf16.gmra.mxu0 %v1655
    %v1669 = vpop.f32.mrf.mxu0
    %v1670 = vadd.f32 0.0, %v1669
    %v1671 = vpop.f32.mrf.mxu0
    %v1672 = vadd.f32 0.0, %v1671
    %1673 = vdwg.mxu0
    %v1674 = vmul.f32 %v1670, 0.35355338
    %v1675 = vmul.f32 %v1672, 0.35355338
    %v1676 = vadd.f32 %v1674, %v1505
    %v1677 = vadd.f32 %v1675, %v1506
    %v1678 = vsel %vm1534, %v1676, -inf
    %1679 = vmax.xlane.f32.xlu0 %v1678
    %v1680 = vpop.xlane.xlu0 %1679
    %v1681 = vsel %vm1534, %v1677, -inf
    %1682 = vmax.xlane.f32.xlu0 %v1681
    %v1683 = vpop.xlane.xlu0 %1682
    %v1684 = vsub.f32 %v1676, %v1680
    %v1685 = vsub.f32 %v1677, %v1683
    %v1686 = vmul.f32 %v1684, 1.442695
    %v1687 = vpow.pop %v1686
    %v1688 = vmul.f32 %v1685, 1.442695
    %v1689 = vpow.pop %v1688
    %v1690 = vsel %vm1534, %v1687, 0.0
    %1691 = vadd.xlane.f32.xlu0 %v1690
    %v1692 = vpop.xlane.xlu0 %1691
    %v1693 = vsel %vm1534, %v1689, 0.0
    %1694 = vadd.xlane.f32.xlu0 %v1693
    %v1695 = vpop.xlane.xlu0 %1694
    %v1696 = vrcp.pop %v1692
    %v1697 = vrcp.pop %v1695
    %v1698 = vmul.f32 %v1687, %v1696
    %v1699 = vmul.f32 %v1689, %v1697
    %v1700 = vpack.c.bf16 %v1699, %v1698
    %1701 = vrot.lane.b32.xlu0 %v1558, 112
    %v1702 = vpop.permute.xlu0 %1701
    %v1705 = vsel %vm1534, %v1700, 0
    %1707 = vmatpush.bf16.msra.mxu0 0
    %1708 = vmatpush.bf16.msra.mxu0 0
    %1709 = vmatpush.bf16.msra.mxu0 0
    %1710 = vmatpush.bf16.msra.mxu0 0
    %1711 = vmatpush.bf16.msra.mxu0 0
    %1712 = vmatpush.bf16.msra.mxu0 0
    %1713 = vmatpush.bf16.msra.mxu0 0
    %1714 = vmatpush.bf16.msra.mxu0 %v1702
    %1715 = vmatmul.bf16.gmra.mxu0 %v1705
    %v1716 = vpop.f32.mrf.mxu0
    %v1717 = vadd.f32 0.0, %v1716
    %v1718 = vpop.f32.mrf.mxu0
    %v1719 = vadd.f32 0.0, %v1718
    %1720 = vdwg.mxu0
    %1721 = vrot.lane.b32.xlu0 %v1507, 104
    %v1722 = vpop.permute.xlu0 %1721
    %1723 = vrot.lane.b32.xlu0 %v1508, 104
    %v1724 = vpop.permute.xlu0 %1723
    %v1726 = vsel %vm1509, %v1722, 0
    %v1729 = vsel %vm1509, %v1724, 0
    %1731 = vmatpush.bf16.xpose.msra.mxu0 0
    %1732 = vmatpush.bf16.xpose.msra.mxu0 0
    %1733 = vmatpush.bf16.xpose.msra.mxu0 0
    %1734 = vmatpush.bf16.xpose.msra.mxu0 0
    %1735 = vmatpush.bf16.xpose.msra.mxu0 0
    %1736 = vmatpush.bf16.xpose.msra.mxu0 0
    %1737 = vmatpush.bf16.xpose.msra.mxu0 0
    %1738 = vmatpush.bf16.xpose.msra.mxu0 %v1729
    %1739 = vmatmul.bf16.gmra.mxu0 %v1726
    %v1740 = vpop.f32.mrf.mxu0
    %v1741 = vadd.f32 0.0, %v1740
    %v1742 = vpop.f32.mrf.mxu0
    %v1743 = vadd.f32 0.0, %v1742
    %1744 = vdwg.mxu0
    %v1745 = vmul.f32 %v1741, 0.35355338
    %v1746 = vmul.f32 %v1743, 0.35355338
    %v1747 = vadd.f32 %v1745, %v1505
    %v1748 = vadd.f32 %v1746, %v1506
    %v1749 = vsel %vm1534, %v1747, -inf
    %1750 = vmax.xlane.f32.xlu0 %v1749
    %v1751 = vpop.xlane.xlu0 %1750
    %v1752 = vsel %vm1534, %v1748, -inf
    %1753 = vmax.xlane.f32.xlu0 %v1752
    %v1754 = vpop.xlane.xlu0 %1753
    %v1755 = vsub.f32 %v1747, %v1751
    %v1756 = vsub.f32 %v1748, %v1754
    %v1757 = vmul.f32 %v1755, 1.442695
    %v1758 = vpow.pop %v1757
    %v1759 = vmul.f32 %v1756, 1.442695
    %v1760 = vpow.pop %v1759
    %v1761 = vsel %vm1534, %v1758, 0.0
    %1762 = vadd.xlane.f32.xlu0 %v1761
    %v1763 = vpop.xlane.xlu0 %1762
    %v1764 = vsel %vm1534, %v1760, 0.0
    %1765 = vadd.xlane.f32.xlu0 %v1764
    %v1766 = vpop.xlane.xlu0 %1765
    %v1767 = vrcp.pop %v1763
    %v1768 = vrcp.pop %v1766
    %v1769 = vmul.f32 %v1758, %v1767
    %v1770 = vmul.f32 %v1760, %v1768
    %v1771 = vpack.c.bf16 %v1770, %v1769
    %1772 = vrot.lane.b32.xlu0 %v1558, 104
    %v1773 = vpop.permute.xlu0 %1772
    %v1776 = vsel %vm1534, %v1771, 0
    %1778 = vmatpush.bf16.msra.mxu0 0
    %1779 = vmatpush.bf16.msra.mxu0 0
    %1780 = vmatpush.bf16.msra.mxu0 0
    %1781 = vmatpush.bf16.msra.mxu0 0
    %1782 = vmatpush.bf16.msra.mxu0 0
    %1783 = vmatpush.bf16.msra.mxu0 0
    %1784 = vmatpush.bf16.msra.mxu0 0
    %1785 = vmatpush.bf16.msra.mxu0 %v1773
    %1786 = vmatmul.bf16.gmra.mxu0 %v1776
    %v1787 = vpop.f32.mrf.mxu0
    %v1788 = vadd.f32 0.0, %v1787
    %v1789 = vpop.f32.mrf.mxu0
    %v1790 = vadd.f32 0.0, %v1789
    %1791 = vdwg.mxu0
    %1794 = vrot.lane.b32.xlu0 %v1646, 8
    %v1795 = vpop.permute.xlu0 %1794
    %1796 = vrot.lane.b32.xlu0 %v1648, 8
    %v1797 = vpop.permute.xlu0 %1796
    %1802 = vrot.lane.b32.xlu0 %v1717, 16
    %v1803 = vpop.permute.xlu0 %1802
    %1804 = vrot.lane.b32.xlu0 %v1719, 16
    %v1805 = vpop.permute.xlu0 %1804
    %1810 = vrot.lane.b32.xlu0 %v1788, 24
    %v1811 = vpop.permute.xlu0 %1810
    %1812 = vrot.lane.b32.xlu0 %v1790, 24
    %v1813 = vpop.permute.xlu0 %1812
    %v1816 = vsel %vm1509, %v1572, %v1795
    %v1817 = vsel %vm1509, %v1574, %v1797
    %v1818 = vsel %vm1534, %v1816, %v1803
    %v1819 = vsel %vm1534, %v1817, %v1805
    %vm1820 = vcmask 195584
    %v1821 = vsel %vm1820, %v1818, %v1811
    %v1822 = vsel %vm1820, %v1819, %v1813
    %s1823 = sadd.s32 %s1499, 1
    %s1824 = sld [smem:[#allocation3 + %s1823]]
    %v1825 = vstv %s1824
    %vm1826 = vcmp.lt.s32.totalorder %v1490, %v1825
    %vm1827 = vmand %vm1497, %vm1826
    %vm1828 = vmand %vm1498, %vm1826
    %v1829 = vsel %vm1827, 0.0, -1e+30
    %v1830 = vsel %vm1828, 0.0, -1e+30
    %v1831 = vpack.c.bf16 %v1409, %v1407
    %v1832 = vpack.c.bf16 %v1448, %v1446
    %v1834 = vsel %vm1509, %v1831, 0
    %v1837 = vsel %vm1509, %v1832, 0
    %1839 = vmatpush.bf16.xpose.msra.mxu0 0
    %1840 = vmatpush.bf16.xpose.msra.mxu0 0
    %1841 = vmatpush.bf16.xpose.msra.mxu0 0
    %1842 = vmatpush.bf16.xpose.msra.mxu0 0
    %1843 = vmatpush.bf16.xpose.msra.mxu0 0
    %1844 = vmatpush.bf16.xpose.msra.mxu0 0
    %1845 = vmatpush.bf16.xpose.msra.mxu0 0
    %1846 = vmatpush.bf16.xpose.msra.mxu0 %v1837
    %1847 = vmatmul.bf16.gmra.mxu0 %v1834
    %v1848 = vpop.f32.mrf.mxu0
    %v1849 = vadd.f32 0.0, %v1848
    %v1850 = vpop.f32.mrf.mxu0
    %v1851 = vadd.f32 0.0, %v1850
    %1852 = vdwg.mxu0
    %v1853 = vmul.f32 %v1849, 0.35355338
    %v1854 = vmul.f32 %v1851, 0.35355338
    %v1855 = vadd.f32 %v1853, %v1829
    %v1856 = vadd.f32 %v1854, %v1830
    %v1857 = vsel %vm1534, %v1855, -inf
    %1858 = vmax.xlane.f32.xlu0 %v1857
    %v1859 = vpop.xlane.xlu0 %1858
    %v1860 = vsel %vm1534, %v1856, -inf
    %1861 = vmax.xlane.f32.xlu0 %v1860
    %v1862 = vpop.xlane.xlu0 %1861
    %v1863 = vsub.f32 %v1855, %v1859
    %v1864 = vsub.f32 %v1856, %v1862
    %v1865 = vmul.f32 %v1863, 1.442695
    %v1866 = vpow.pop %v1865
    %v1867 = vmul.f32 %v1864, 1.442695
    %v1868 = vpow.pop %v1867
    %v1869 = vsel %vm1534, %v1866, 0.0
    %1870 = vadd.xlane.f32.xlu0 %v1869
    %v1871 = vpop.xlane.xlu0 %1870
    %v1872 = vsel %vm1534, %v1868, 0.0
    %1873 = vadd.xlane.f32.xlu0 %v1872
    %v1874 = vpop.xlane.xlu0 %1873
    %v1875 = vrcp.pop %v1871
    %v1876 = vrcp.pop %v1874
    %v1877 = vmul.f32 %v1866, %v1875
    %v1878 = vmul.f32 %v1868, %v1876
    %v1879 = vpack.c.bf16 %v1878, %v1877
    %v1880 = vpack.c.bf16 %v1487, %v1485
    %v1882 = vsel %vm1534, %v1879, 0
    %1884 = vmatpush.bf16.msra.mxu0 0
    %1885 = vmatpush.bf16.msra.mxu0 0
    %1886 = vmatpush.bf16.msra.mxu0 0
    %1887 = vmatpush.bf16.msra.mxu0 0
    %1888 = vmatpush.bf16.msra.mxu0 0
    %1889 = vmatpush.bf16.msra.mxu0 0
    %1890 = vmatpush.bf16.msra.mxu0 0
    %1891 = vmatpush.bf16.msra.mxu0 %v1880
    %1892 = vmatmul.bf16.gmra.mxu0 %v1882
    %v1893 = vpop.f32.mrf.mxu0
    %v1894 = vadd.f32 0.0, %v1893
    %v1895 = vpop.f32.mrf.mxu0
    %v1896 = vadd.f32 0.0, %v1895
    %1897 = vdwg.mxu0
    %1899 = vrot.lane.b32.xlu0 %v1831, 120
    %v1900 = vpop.permute.xlu0 %1899
    %1902 = vrot.lane.b32.xlu0 %v1832, 120
    %v1903 = vpop.permute.xlu0 %1902
    %v1905 = vsel %vm1509, %v1900, 0
    %v1908 = vsel %vm1509, %v1903, 0
    %1910 = vmatpush.bf16.xpose.msra.mxu0 0
    %1911 = vmatpush.bf16.xpose.msra.mxu0 0
    %1912 = vmatpush.bf16.xpose.msra.mxu0 0
    %1913 = vmatpush.bf16.xpose.msra.mxu0 0
    %1914 = vmatpush.bf16.xpose.msra.mxu0 0
    %1915 = vmatpush.bf16.xpose.msra.mxu0 0
    %1916 = vmatpush.bf16.xpose.msra.mxu0 0
    %1917 = vmatpush.bf16.xpose.msra.mxu0 %v1908
    %1918 = vmatmul.bf16.gmra.mxu0 %v1905
    %v1919 = vpop.f32.mrf.mxu0
    %v1920 = vadd.f32 0.0, %v1919
    %v1921 = vpop.f32.mrf.mxu0
    %v1922 = vadd.f32 0.0, %v1921
    %1923 = vdwg.mxu0
    %v1924 = vmul.f32 %v1920, 0.35355338
    %v1925 = vmul.f32 %v1922, 0.35355338
    %v1926 = vadd.f32 %v1924, %v1829
    %v1927 = vadd.f32 %v1925, %v1830
    %v1928 = vsel %vm1534, %v1926, -inf
    %1929 = vmax.xlane.f32.xlu0 %v1928
    %v1930 = vpop.xlane.xlu0 %1929
    %v1931 = vsel %vm1534, %v1927, -inf
    %1932 = vmax.xlane.f32.xlu0 %v1931
    %v1933 = vpop.xlane.xlu0 %1932
    %v1934 = vsub.f32 %v1926, %v1930
    %v1935 = vsub.f32 %v1927, %v1933
    %v1936 = vmul.f32 %v1934, 1.442695
    %v1937 = vpow.pop %v1936
    %v1938 = vmul.f32 %v1935, 1.442695
    %v1939 = vpow.pop %v1938
    %v1940 = vsel %vm1534, %v1937, 0.0
    %1941 = vadd.xlane.f32.xlu0 %v1940
    %v1942 = vpop.xlane.xlu0 %1941
    %v1943 = vsel %vm1534, %v1939, 0.0
    %1944 = vadd.xlane.f32.xlu0 %v1943
    %v1945 = vpop.xlane.xlu0 %1944
    %v1946 = vrcp.pop %v1942
    %v1947 = vrcp.pop %v1945
    %v1948 = vmul.f32 %v1937, %v1946
    %v1949 = vmul.f32 %v1939, %v1947
    %v1950 = vpack.c.bf16 %v1949, %v1948
    %1952 = vrot.lane.b32.xlu0 %v1880, 120
    %v1953 = vpop.permute.xlu0 %1952
    %v1956 = vsel %vm1534, %v1950, 0
    %1958 = vmatpush.bf16.msra.mxu0 0
    %1959 = vmatpush.bf16.msra.mxu0 0
    %1960 = vmatpush.bf16.msra.mxu0 0
    %1961 = vmatpush.bf16.msra.mxu0 0
    %1962 = vmatpush.bf16.msra.mxu0 0
    %1963 = vmatpush.bf16.msra.mxu0 0
    %1964 = vmatpush.bf16.msra.mxu0 0
    %1965 = vmatpush.bf16.msra.mxu0 %v1953
    %1966 = vmatmul.bf16.gmra.mxu0 %v1956
    %v1967 = vpop.f32.mrf.mxu0
    %v1968 = vadd.f32 0.0, %v1967
    %v1969 = vpop.f32.mrf.mxu0
    %v1970 = vadd.f32 0.0, %v1969
    %1971 = vdwg.mxu0
    %1972 = vrot.lane.b32.xlu0 %v1831, 112
    %v1973 = vpop.permute.xlu0 %1972
    %1974 = vrot.lane.b32.xlu0 %v1832, 112
    %v1975 = vpop.permute.xlu0 %1974
    %v1977 = vsel %vm1509, %v1973, 0
    %v1980 = vsel %vm1509, %v1975, 0
    %1982 = vmatpush.bf16.xpose.msra.mxu0 0
    %1983 = vmatpush.bf16.xpose.msra.mxu0 0
    %1984 = vmatpush.bf16.xpose.msra.mxu0 0
    %1985 = vmatpush.bf16.xpose.msra.mxu0 0
    %1986 = vmatpush.bf16.xpose.msra.mxu0 0
    %1987 = vmatpush.bf16.xpose.msra.mxu0 0
    %1988 = vmatpush.bf16.xpose.msra.mxu0 0
    %1989 = vmatpush.bf16.xpose.msra.mxu0 %v1980
    %1990 = vmatmul.bf16.gmra.mxu0 %v1977
    %v1991 = vpop.f32.mrf.mxu0
    %v1992 = vadd.f32 0.0, %v1991
    %v1993 = vpop.f32.mrf.mxu0
    %v1994 = vadd.f32 0.0, %v1993
    %1995 = vdwg.mxu0
    %v1996 = vmul.f32 %v1992, 0.35355338
    %v1997 = vmul.f32 %v1994, 0.35355338
    %v1998 = vadd.f32 %v1996, %v1829
    %v1999 = vadd.f32 %v1997, %v1830
    %v2000 = vsel %vm1534, %v1998, -inf
    %2001 = vmax.xlane.f32.xlu0 %v2000
    %v2002 = vpop.xlane.xlu0 %2001
    %v2003 = vsel %vm1534, %v1999, -inf
    %2004 = vmax.xlane.f32.xlu0 %v2003
    %v2005 = vpop.xlane.xlu0 %2004
    %v2006 = vsub.f32 %v1998, %v2002
    %v2007 = vsub.f32 %v1999, %v2005
    %v2008 = vmul.f32 %v2006, 1.442695
    %v2009 = vpow.pop %v2008
    %v2010 = vmul.f32 %v2007, 1.442695
    %v2011 = vpow.pop %v2010
    %v2012 = vsel %vm1534, %v2009, 0.0
    %2013 = vadd.xlane.f32.xlu0 %v2012
    %v2014 = vpop.xlane.xlu0 %2013
    %v2015 = vsel %vm1534, %v2011, 0.0
    %2016 = vadd.xlane.f32.xlu0 %v2015
    %v2017 = vpop.xlane.xlu0 %2016
    %v2018 = vrcp.pop %v2014
    %v2019 = vrcp.pop %v2017
    %v2020 = vmul.f32 %v2009, %v2018
    %v2021 = vmul.f32 %v2011, %v2019
    %v2022 = vpack.c.bf16 %v2021, %v2020
    %2023 = vrot.lane.b32.xlu0 %v1880, 112
    %v2024 = vpop.permute.xlu0 %2023
    %v2027 = vsel %vm1534, %v2022, 0
    %2029 = vmatpush.bf16.msra.mxu0 0
    %2030 = vmatpush.bf16.msra.mxu0 0
    %2031 = vmatpush.bf16.msra.mxu0 0
    %2032 = vmatpush.bf16.msra.mxu0 0
    %2033 = vmatpush.bf16.msra.mxu0 0
    %2034 = vmatpush.bf16.msra.mxu0 0
    %2035 = vmatpush.bf16.msra.mxu0 0
    %2036 = vmatpush.bf16.msra.mxu0 %v2024
    %2037 = vmatmul.bf16.gmra.mxu0 %v2027
    %v2038 = vpop.f32.mrf.mxu0
    %v2039 = vadd.f32 0.0, %v2038
    %v2040 = vpop.f32.mrf.mxu0
    %v2041 = vadd.f32 0.0, %v2040
    %2042 = vdwg.mxu0
    %2043 = vrot.lane.b32.xlu0 %v1831, 104
    %v2044 = vpop.permute.xlu0 %2043
    %2045 = vrot.lane.b32.xlu0 %v1832, 104
    %v2046 = vpop.permute.xlu0 %2045
    %v2048 = vsel %vm1509, %v2044, 0
    %v2051 = vsel %vm1509, %v2046, 0
    %2053 = vmatpush.bf16.xpose.msra.mxu0 0
    %2054 = vmatpush.bf16.xpose.msra.mxu0 0
    %2055 = vmatpush.bf16.xpose.msra.mxu0 0
    %2056 = vmatpush.bf16.xpose.msra.mxu0 0
    %2057 = vmatpush.bf16.xpose.msra.mxu0 0
    %2058 = vmatpush.bf16.xpose.msra.mxu0 0
    %2059 = vmatpush.bf16.xpose.msra.mxu0 0
    %2060 = vmatpush.bf16.xpose.msra.mxu0 %v2051
    %2061 = vmatmul.bf16.gmra.mxu0 %v2048
    %v2062 = vpop.f32.mrf.mxu0
    %v2063 = vadd.f32 0.0, %v2062
    %v2064 = vpop.f32.mrf.mxu0
    %v2065 = vadd.f32 0.0, %v2064
    %2066 = vdwg.mxu0
    %v2067 = vmul.f32 %v2063, 0.35355338
    %v2068 = vmul.f32 %v2065, 0.35355338
    %v2069 = vadd.f32 %v2067, %v1829
    %v2070 = vadd.f32 %v2068, %v1830
    %v2071 = vsel %vm1534, %v2069, -inf
    %2072 = vmax.xlane.f32.xlu0 %v2071
    %v2073 = vpop.xlane.xlu0 %2072
    %v2074 = vsel %vm1534, %v2070, -inf
    %2075 = vmax.xlane.f32.xlu0 %v2074
    %v2076 = vpop.xlane.xlu0 %2075
    %v2077 = vsub.f32 %v2069, %v2073
    %v2078 = vsub.f32 %v2070, %v2076
    %v2079 = vmul.f32 %v2077, 1.442695
    %v2080 = vpow.pop %v2079
    %v2081 = vmul.f32 %v2078, 1.442695
    %v2082 = vpow.pop %v2081
    %v2083 = vsel %vm1534, %v2080, 0.0
    %2084 = vadd.xlane.f32.xlu0 %v2083
    %v2085 = vpop.xlane.xlu0 %2084
    %v2086 = vsel %vm1534, %v2082, 0.0
    %2087 = vadd.xlane.f32.xlu0 %v2086
    %v2088 = vpop.xlane.xlu0 %2087
    %v2089 = vrcp.pop %v2085
    %v2090 = vrcp.pop %v2088
    %v2091 = vmul.f32 %v2080, %v2089
    %v2092 = vmul.f32 %v2082, %v2090
    %v2093 = vpack.c.bf16 %v2092, %v2091
    %2094 = vrot.lane.b32.xlu0 %v1880, 104
    %v2095 = vpop.permute.xlu0 %2094
    %v2098 = vsel %vm1534, %v2093, 0
    %2100 = vmatpush.bf16.msra.mxu0 0
    %2101 = vmatpush.bf16.msra.mxu0 0
    %2102 = vmatpush.bf16.msra.mxu0 0
    %2103 = vmatpush.bf16.msra.mxu0 0
    %2104 = vmatpush.bf16.msra.mxu0 0
    %2105 = vmatpush.bf16.msra.mxu0 0
    %2106 = vmatpush.bf16.msra.mxu0 0
    %2107 = vmatpush.bf16.msra.mxu0 %v2095
    %2108 = vmatmul.bf16.gmra.mxu0 %v2098
    %v2109 = vpop.f32.mrf.mxu0
    %v2110 = vadd.f32 0.0, %v2109
    %v2111 = vpop.f32.mrf.mxu0
    %v2112 = vadd.f32 0.0, %v2111
    %2113 = vdwg.mxu0
    %2116 = vrot.lane.b32.xlu0 %v1968, 8
    %v2117 = vpop.permute.xlu0 %2116
    %2118 = vrot.lane.b32.xlu0 %v1970, 8
    %v2119 = vpop.permute.xlu0 %2118
    %2124 = vrot.lane.b32.xlu0 %v2039, 16
    %v2125 = vpop.permute.xlu0 %2124
    %2126 = vrot.lane.b32.xlu0 %v2041, 16
    %v2127 = vpop.permute.xlu0 %2126
    %2132 = vrot.lane.b32.xlu0 %v2110, 24
    %v2133 = vpop.permute.xlu0 %2132
    %2134 = vrot.lane.b32.xlu0 %v2112, 24
    %v2135 = vpop.permute.xlu0 %2134
    %v2138 = vsel %vm1509, %v1894, %v2117
    %v2139 = vsel %vm1509, %v1896, %v2119
    %v2140 = vsel %vm1534, %v2138, %v2125
    %v2141 = vsel %vm1534, %v2139, %v2127
    %v2142 = vsel %vm1820, %v2140, %v2133
    %v2143 = vsel %vm1820, %v2141, %v2135
    %v2144 = vpack.c.bf16 %v1822, %v1821
    %v2145 = vpack.c.bf16 %v2143, %v2142
    %v2146 = vld [vmem:[#allocation37] sm:$0xf]
    %v2147 = vld [vmem:[#allocation37 + $0x4] sm:$0xf]
    %v2148 = vld [vmem:[#allocation37 + $0x8] sm:$0xf]
    %v2149 = vld [vmem:[#allocation37 + $0xc] sm:$0xf]
    %v2150 = vld [vmem:[#allocation39] sm:$0x1]
    %v2152 = vperm.slane %v2150, 0
    %v2158 = vunpack.c.l.b16 %v2146
    %v2159 = vunpack.c.l.b16 %v2147
    %v2160 = vunpack.c.l.b16 %v2148
    %v2161 = vunpack.c.l.b16 %v2149
    %v2162 = vpack.c.b16 %v2159, %v2158
    %v2163 = vpack.c.b16 %v2161, %v2160
    %v2167 = vsel %vm575, %v2144, 0
    %v2170 = vsel %vm575, %v2145, 0
    %2172 = vmatpush.bf16.msra.mxu0 0
    %2173 = vmatpush.bf16.msra.mxu0 0
    %2174 = vmatpush.bf16.msra.mxu0 0
    %2175 = vmatpush.bf16.msra.mxu0 0
    %2176 = vmatpush.bf16.msra.mxu0 0
    %2177 = vmatpush.bf16.msra.mxu0 0
    %2178 = vmatpush.bf16.msra.mxu0 %v2163
    %2179 = vmatpush.bf16.msra.mxu0 %v2162
    %2180 = vmatmul.bf16.gmra.mxu0 %v2167
    %v2181 = vpop.f32.mrf.mxu0
    %v2182 = vadd.f32 %v2152, %v2181
    %v2183 = vpop.f32.mrf.mxu0
    %v2184 = vadd.f32 %v2152, %v2183
    %2185 = vmatmul.bf16.gmra.mxu0 %v2170
    %v2186 = vpop.f32.mrf.mxu0
    %v2187 = vadd.f32 %v2152, %v2186
    %v2188 = vpop.f32.mrf.mxu0
    %v2189 = vadd.f32 %v2152, %v2188
    %2190 = vdwg.mxu0
    %v2191 = vpack.c.bf16 %v2184, %v2182
    %v2192 = vpack.c.bf16 %v2189, %v2187
    %v2193 = vld [vmem:[%s61] sm:$0xf]
    %v2194 = vld [vmem:[%s61 + $0x4] sm:$0xf]
    %v2195 = vld [vmem:[%s61 + $0x8] sm:$0xf]
    %v2196 = vld [vmem:[%s61 + $0xc] sm:$0xf]
    %v2197 = vld [vmem:[#allocation40] sm:$0x1]
    %v2199 = vperm.slane %v2197, 0
    %v2205 = vunpack.c.l.b16 %v2193
    %v2206 = vunpack.c.l.b16 %v2194
    %v2207 = vunpack.c.l.b16 %v2195
    %v2208 = vunpack.c.l.b16 %v2196
    %v2209 = vpack.c.b16 %v2206, %v2205
    %v2210 = vpack.c.b16 %v2208, %v2207
    %v2214 = vsel %vm575, %v2191, 0
    %v2217 = vsel %vm575, %v2192, 0
    %2219 = vmatpush.bf16.msra.mxu0 0
    %2220 = vmatpush.bf16.msra.mxu0 0
    %2221 = vmatpush.bf16.msra.mxu0 0
    %2222 = vmatpush.bf16.msra.mxu0 0
    %2223 = vmatpush.bf16.msra.mxu0 0
    %2224 = vmatpush.bf16.msra.mxu0 0
    %2225 = vmatpush.bf16.msra.mxu0 %v2210
    %2226 = vmatpush.bf16.msra.mxu0 %v2209
    %2227 = vmatmul.bf16.gmra.mxu0 %v2214
    %v2228 = vpop.f32.mrf.mxu0
    %v2229 = vadd.f32 %v2199, %v2228
    %v2230 = vpop.f32.mrf.mxu0
    %v2231 = vadd.f32 %v2199, %v2230
    %2232 = vmatmul.bf16.gmra.mxu0 %v2217
    %v2233 = vpop.f32.mrf.mxu0
    %v2234 = vadd.f32 %v2199, %v2233
    %v2235 = vpop.f32.mrf.mxu0
    %v2236 = vadd.f32 %v2199, %v2235
    %2237 = vdwg.mxu0
    %v2238 = vmax.f32 %v2229, 0.0
    %v2239 = vmax.f32 %v2231, 0.0
    %v2240 = vmax.f32 %v2234, 0.0
    %v2241 = vmax.f32 %v2236, 0.0
    %v2242 = vpack.c.bf16 %v2239, %v2238
    %v2243 = vpack.c.bf16 %v2241, %v2240
    %v2244 = vld [vmem:[#allocation42] sm:$0xf]
    %v2245 = vld [vmem:[#allocation42 + $0x4] sm:$0xf]
    %v2246 = vld [vmem:[#allocation43] sm:$0x1]
    %v2248 = vperm.slane %v2246, 0
    %v2252 = vunpack.c.l.b16 %v2244
    %v2253 = vunpack.c.l.b16 %v2245
    %v2254 = vpack.c.b16 %v2253, %v2252
    %v2257 = vsel %vm1534, %v2242, 0
    %v2260 = vsel %vm1534, %v2243, 0
    %2262 = vmatpush.bf16.msra.mxu0 0
    %2263 = vmatpush.bf16.msra.mxu0 0
    %2264 = vmatpush.bf16.msra.mxu0 0
    %2265 = vmatpush.bf16.msra.mxu0 0
    %2266 = vmatpush.bf16.msra.mxu0 0
    %2267 = vmatpush.bf16.msra.mxu0 0
    %2268 = vmatpush.bf16.msra.mxu0 0
    %2269 = vmatpush.bf16.msra.mxu0 %v2254
    %2270 = vmatmul.bf16.gmra.mxu0 %v2257
    %v2271 = vpop.f32.mrf.mxu0
    %v2272 = vadd.f32 %v2248, %v2271
    %v2273 = vpop.f32.mrf.mxu0
    %v2274 = vadd.f32 %v2248, %v2273
    %2275 = vmatmul.bf16.gmra.mxu0 %v2260
    %v2276 = vpop.f32.mrf.mxu0
    %v2277 = vadd.f32 %v2248, %v2276
    %v2278 = vpop.f32.mrf.mxu0
    %v2279 = vadd.f32 %v2248, %v2278
    %2280 = vdwg.mxu0
    %v2281 = vadd.f32 %v2272, %v2182
    %v2282 = vadd.f32 %v2274, %v2184
    %v2283 = vadd.f32 %v2277, %v2187
    %v2284 = vadd.f32 %v2279, %v2189
    %v2285 = vadd.f32 %v2281, %v1256
    %v2286 = vadd.f32 %v2282, %v1257
    %v2287 = vadd.f32 %v2283, %v1258
    %v2288 = vadd.f32 %v2284, %v1259
    %v2289 = vld [vmem:[#allocation45] sm:$0x1]
    %v2290 = vld [vmem:[#allocation46] sm:$0x1]
    %v2291 = vsel %vm575, %v2285, 0.0
    %2292 = vadd.xlane.f32.xlu0 %v2291
    %v2293 = vpop.xlane.xlu0 %2292
    %v2294 = vsel %vm575, %v2286, 0.0
    %2295 = vadd.xlane.f32.xlu0 %v2294
    %v2296 = vpop.xlane.xlu0 %2295
    %v2297 = vsel %vm575, %v2287, 0.0
    %2298 = vadd.xlane.f32.xlu0 %v2297
    %v2299 = vpop.xlane.xlu0 %2298
    %v2300 = vsel %vm575, %v2288, 0.0
    %2301 = vadd.xlane.f32.xlu0 %v2300
    %v2302 = vpop.xlane.xlu0 %2301
    %v2303 = vmul.f32 %v2293, %v594
    %v2304 = vmul.f32 %v2296, %v594
    %v2305 = vmul.f32 %v2299, %v594
    %v2306 = vmul.f32 %v2302, %v594
    %v2307 = vsub.f32 %v2285, %v2303
    %v2308 = vsub.f32 %v2286, %v2304
    %v2309 = vsub.f32 %v2287, %v2305
    %v2310 = vsub.f32 %v2288, %v2306
    %v2311 = vmul.f32 %v2307, %v2307
    %v2312 = vmul.f32 %v2308, %v2308
    %v2313 = vmul.f32 %v2309, %v2309
    %v2314 = vmul.f32 %v2310, %v2310
    %v2315 = vsel %vm575, %v2311, 0.0
    %2316 = vadd.xlane.f32.xlu0 %v2315
    %v2317 = vpop.xlane.xlu0 %2316
    %v2318 = vsel %vm575, %v2312, 0.0
    %2319 = vadd.xlane.f32.xlu0 %v2318
    %v2320 = vpop.xlane.xlu0 %2319
    %v2321 = vsel %vm575, %v2313, 0.0
    %2322 = vadd.xlane.f32.xlu0 %v2321
    %v2323 = vpop.xlane.xlu0 %2322
    %v2324 = vsel %vm575, %v2314, 0.0
    %2325 = vadd.xlane.f32.xlu0 %v2324
    %v2326 = vpop.xlane.xlu0 %2325
    %v2327 = vmul.f32 %v2317, %v594
    %v2328 = vmul.f32 %v2320, %v594
    %v2329 = vmul.f32 %v2323, %v594
    %v2330 = vmul.f32 %v2326, %v594
    %v2331 = vadd.f32 %v2327, 1e-05
    %v2332 = vadd.f32 %v2328, 1e-05
    %v2333 = vadd.f32 %v2329, 1e-05
    %v2334 = vadd.f32 %v2330, 1e-05
    %v2335 = vrsqrt.pop %v2331
    %v2336 = vmul.f32 %v2335, %v2331
    %v2337 = vmul.f32 %v2336, %v2335
    %v2338 = vmul.f32 0.5, %v2337
    %v2339 = vsub.f32 1.5, %v2338
    %v2340 = vmul.f32 %v2335, %v2339
    %vm2341 = vweird.f32 %v2331
    %vm2342 = vweird.f32 %v2335
    %vm2343 = vmor %vm2341, %vm2342
    %v2344 = vsel %vm2343, %v2335, %v2340
    %v2345 = vrsqrt.pop %v2332
    %v2346 = vmul.f32 %v2345, %v2332
    %v2347 = vmul.f32 %v2346, %v2345
    %v2348 = vmul.f32 0.5, %v2347
    %v2349 = vsub.f32 1.5, %v2348
    %v2350 = vmul.f32 %v2345, %v2349
    %vm2351 = vweird.f32 %v2332
    %vm2352 = vweird.f32 %v2345
    %vm2353 = vmor %vm2351, %vm2352
    %v2354 = vsel %vm2353, %v2345, %v2350
    %v2355 = vrsqrt.pop %v2333
    %v2356 = vmul.f32 %v2355, %v2333
    %v2357 = vmul.f32 %v2356, %v2355
    %v2358 = vmul.f32 0.5, %v2357
    %v2359 = vsub.f32 1.5, %v2358
    %v2360 = vmul.f32 %v2355, %v2359
    %vm2361 = vweird.f32 %v2333
    %vm2362 = vweird.f32 %v2355
    %vm2363 = vmor %vm2361, %vm2362
    %v2364 = vsel %vm2363, %v2355, %v2360
    %v2365 = vrsqrt.pop %v2334
    %v2366 = vmul.f32 %v2365, %v2334
    %v2367 = vmul.f32 %v2366, %v2365
    %v2368 = vmul.f32 0.5, %v2367
    %v2369 = vsub.f32 1.5, %v2368
    %v2370 = vmul.f32 %v2365, %v2369
    %vm2371 = vweird.f32 %v2334
    %vm2372 = vweird.f32 %v2365
    %vm2373 = vmor %vm2371, %vm2372
    %v2374 = vsel %vm2373, %v2365, %v2370
    %v2375 = vmul.f32 %v2307, %v2344
    %v2376 = vmul.f32 %v2308, %v2354
    %v2377 = vmul.f32 %v2309, %v2364
    %v2378 = vmul.f32 %v2310, %v2374
    %v2380 = vperm.slane %v2289, 0
    %v2382 = vmul.f32 %v2375, %v2380
    %v2383 = vmul.f32 %v2376, %v2380
    %v2384 = vmul.f32 %v2377, %v2380
    %v2385 = vmul.f32 %v2378, %v2380
    %v2387 = vperm.slane %v2290, 0
    %v2389 = vadd.f32 %v2382, %v2387
    %v2390 = vadd.f32 %v2383, %v2387
    %v2391 = vadd.f32 %v2384, %v2387
    %v2392 = vadd.f32 %v2385, %v2387
    %v2393 = vpack.c.bf16 %v2390, %v2389
    %v2394 = vpack.c.bf16 %v2392, %v2391
    %v2395 = vld [vmem:[%s73] sm:$0xf]
    %v2396 = vld [vmem:[%s73 + $0x4] sm:$0xf]
    %v2397 = vld [vmem:[%s73 + $0x8] sm:$0xf]
    %v2398 = vld [vmem:[%s73 + $0xc] sm:$0xf]
    %v2399 = vld [vmem:[%s75] sm:$0x1]
    %v2401 = vperm.slane %v2399, 0
    %v2407 = vunpack.c.l.b16 %v2395
    %v2408 = vunpack.c.l.b16 %v2396
    %v2409 = vunpack.c.l.b16 %v2397
    %v2410 = vunpack.c.l.b16 %v2398
    %v2411 = vpack.c.b16 %v2408, %v2407
    %v2412 = vpack.c.b16 %v2410, %v2409
    %v2416 = vsel %vm575, %v2393, 0
    %v2419 = vsel %vm575, %v2394, 0
    %2421 = vmatpush.bf16.msra.mxu0 0
    %2422 = vmatpush.bf16.msra.mxu0 0
    %2423 = vmatpush.bf16.msra.mxu0 0
    %2424 = vmatpush.bf16.msra.mxu0 0
    %2425 = vmatpush.bf16.msra.mxu0 0
    %2426 = vmatpush.bf16.msra.mxu0 0
    %2427 = vmatpush.bf16.msra.mxu0 %v2412
    %2428 = vmatpush.bf16.msra.mxu0 %v2411
    %2429 = vmatmul.bf16.gmra.mxu0 %v2416
    %v2430 = vpop.f32.mrf.mxu0
    %v2431 = vadd.f32 %v2401, %v2430
    %v2432 = vpop.f32.mrf.mxu0
    %v2433 = vadd.f32 %v2401, %v2432
    %2434 = vmatmul.bf16.gmra.mxu0 %v2419
    %v2435 = vpop.f32.mrf.mxu0
    %v2436 = vadd.f32 %v2401, %v2435
    %v2437 = vpop.f32.mrf.mxu0
    %v2438 = vadd.f32 %v2401, %v2437
    %2439 = vdwg.mxu0
    %v2440 = vsub.f32 0.0, %v2431
    %v2441 = vsub.f32 0.0, %v2433
    %v2442 = vsub.f32 0.0, %v2436
    %v2443 = vsub.f32 0.0, %v2438
    %v2444 = vmul.f32 %v2440, 1.442695
    %v2445 = vpow.pop %v2444
    %v2446 = vmul.f32 %v2441, 1.442695
    %v2447 = vpow.pop %v2446
    %v2448 = vmul.f32 %v2442, 1.442695
    %v2449 = vpow.pop %v2448
    %v2450 = vmul.f32 %v2443, 1.442695
    %v2451 = vpow.pop %v2450
    %v2452 = vadd.f32 %v2445, 1.0
    %v2453 = vadd.f32 %v2447, 1.0
    %v2454 = vadd.f32 %v2449, 1.0
    %v2455 = vadd.f32 %v2451, 1.0
    %v2456 = vrcp.pop %v2452
    %v2457 = vrcp.pop %v2453
    %v2458 = vrcp.pop %v2454
    %v2459 = vrcp.pop %v2455
    %v2460 = vmul.f32 %v2431, %v2456
    %v2461 = vmul.f32 %v2433, %v2457
    %v2462 = vmul.f32 %v2436, %v2458
    %v2463 = vmul.f32 %v2438, %v2459
    %v2464 = vpack.c.bf16 %v2461, %v2460
    %v2465 = vpack.c.bf16 %v2463, %v2462
    %v2466 = vld [vmem:[%s77] sm:$0xf]
    %v2467 = vld [vmem:[%s77 + $0x4] sm:$0xf]
    %v2468 = vld [vmem:[%s77 + $0x8] sm:$0xf]
    %v2469 = vld [vmem:[%s77 + $0xc] sm:$0xf]
    %v2470 = vld [vmem:[%s77 + $0x10] sm:$0xf]
    %v2471 = vld [vmem:[%s77 + $0x14] sm:$0xf]
    %v2472 = vld [vmem:[%s77 + $0x18] sm:$0xf]
    %v2473 = vld [vmem:[%s77 + $0x1c] sm:$0xf]
    %v2474 = vld [vmem:[%s79] sm:$0x1]
    %v2476 = vperm.slane %v2474, 0
    %v2486 = vunpack.c.l.b16 %v2466
    %v2487 = vunpack.c.l.b16 %v2467
    %v2488 = vunpack.c.l.b16 %v2468
    %v2489 = vunpack.c.l.b16 %v2469
    %v2490 = vunpack.c.l.b16 %v2470
    %v2491 = vunpack.c.l.b16 %v2471
    %v2492 = vunpack.c.l.b16 %v2472
    %v2493 = vunpack.c.l.b16 %v2473
    %v2494 = vpack.c.b16 %v2487, %v2486
    %v2495 = vpack.c.b16 %v2489, %v2488
    %v2496 = vpack.c.b16 %v2491, %v2490
    %v2497 = vpack.c.b16 %v2493, %v2492
    %v2503 = vsel %vm794, %v2464, 0
    %v2506 = vsel %vm794, %v2465, 0
    %2508 = vmatpush.bf16.msra.mxu0 0
    %2509 = vmatpush.bf16.msra.mxu0 0
    %2510 = vmatpush.bf16.msra.mxu0 0
    %2511 = vmatpush.bf16.msra.mxu0 0
    %2512 = vmatpush.bf16.msra.mxu0 %v2497
    %2513 = vmatpush.bf16.msra.mxu0 %v2496
    %2514 = vmatpush.bf16.msra.mxu0 %v2495
    %2515 = vmatpush.bf16.msra.mxu0 %v2494
    %2516 = vmatmul.bf16.gmra.mxu0 %v2503
    %v2517 = vpop.f32.mrf.mxu0
    %v2518 = vadd.f32 %v2476, %v2517
    %v2519 = vpop.f32.mrf.mxu0
    %v2520 = vadd.f32 %v2476, %v2519
    %2521 = vmatmul.bf16.gmra.mxu0 %v2506
    %v2522 = vpop.f32.mrf.mxu0
    %v2523 = vadd.f32 %v2476, %v2522
    %v2524 = vpop.f32.mrf.mxu0
    %v2525 = vadd.f32 %v2476, %v2524
    %2526 = vdwg.mxu0
    %v2527 = vmul.f32 %v2518, 0.5
    %v2528 = vmul.f32 %v2520, 0.5
    %v2529 = vmul.f32 %v2523, 0.5
    %v2530 = vmul.f32 %v2525, 0.5
    %v2531 = vadd.f32 %v2527, %v2285
    %v2532 = vadd.f32 %v2528, %v2286
    %v2533 = vadd.f32 %v2529, %v2287
    %v2534 = vadd.f32 %v2530, %v2288
    %v2535 = vld [vmem:[%s81] sm:$0x1]
    %v2536 = vld [vmem:[%s83] sm:$0x1]
    %v2537 = vsel %vm575, %v2531, 0.0
    %2538 = vadd.xlane.f32.xlu0 %v2537
    %v2539 = vpop.xlane.xlu0 %2538
    %v2540 = vsel %vm575, %v2532, 0.0
    %2541 = vadd.xlane.f32.xlu0 %v2540
    %v2542 = vpop.xlane.xlu0 %2541
    %v2543 = vsel %vm575, %v2533, 0.0
    %2544 = vadd.xlane.f32.xlu0 %v2543
    %v2545 = vpop.xlane.xlu0 %2544
    %v2546 = vsel %vm575, %v2534, 0.0
    %2547 = vadd.xlane.f32.xlu0 %v2546
    %v2548 = vpop.xlane.xlu0 %2547
    %v2549 = vmul.f32 %v2539, %v594
    %v2550 = vmul.f32 %v2542, %v594
    %v2551 = vmul.f32 %v2545, %v594
    %v2552 = vmul.f32 %v2548, %v594
    %v2553 = vsub.f32 %v2531, %v2549
    %v2554 = vsub.f32 %v2532, %v2550
    %v2555 = vsub.f32 %v2533, %v2551
    %v2556 = vsub.f32 %v2534, %v2552
    %v2557 = vmul.f32 %v2553, %v2553
    %v2558 = vmul.f32 %v2554, %v2554
    %v2559 = vmul.f32 %v2555, %v2555
    %v2560 = vmul.f32 %v2556, %v2556
    %v2561 = vsel %vm575, %v2557, 0.0
    %2562 = vadd.xlane.f32.xlu0 %v2561
    %v2563 = vpop.xlane.xlu0 %2562
    %v2564 = vsel %vm575, %v2558, 0.0
    %2565 = vadd.xlane.f32.xlu0 %v2564
    %v2566 = vpop.xlane.xlu0 %2565
    %v2567 = vsel %vm575, %v2559, 0.0
    %2568 = vadd.xlane.f32.xlu0 %v2567
    %v2569 = vpop.xlane.xlu0 %2568
    %v2570 = vsel %vm575, %v2560, 0.0
    %2571 = vadd.xlane.f32.xlu0 %v2570
    %v2572 = vpop.xlane.xlu0 %2571
    %v2573 = vmul.f32 %v2563, %v594
    %v2574 = vmul.f32 %v2566, %v594
    %v2575 = vmul.f32 %v2569, %v594
    %v2576 = vmul.f32 %v2572, %v594
    %v2577 = vadd.f32 %v2573, 1e-05
    %v2578 = vadd.f32 %v2574, 1e-05
    %v2579 = vadd.f32 %v2575, 1e-05
    %v2580 = vadd.f32 %v2576, 1e-05
    %v2581 = vrsqrt.pop %v2577
    %v2582 = vmul.f32 %v2581, %v2577
    %v2583 = vmul.f32 %v2582, %v2581
    %v2584 = vmul.f32 0.5, %v2583
    %v2585 = vsub.f32 1.5, %v2584
    %v2586 = vmul.f32 %v2581, %v2585
    %vm2587 = vweird.f32 %v2577
    %vm2588 = vweird.f32 %v2581
    %vm2589 = vmor %vm2587, %vm2588
    %v2590 = vsel %vm2589, %v2581, %v2586
    %v2591 = vrsqrt.pop %v2578
    %v2592 = vmul.f32 %v2591, %v2578
    %v2593 = vmul.f32 %v2592, %v2591
    %v2594 = vmul.f32 0.5, %v2593
    %v2595 = vsub.f32 1.5, %v2594
    %v2596 = vmul.f32 %v2591, %v2595
    %vm2597 = vweird.f32 %v2578
    %vm2598 = vweird.f32 %v2591
    %vm2599 = vmor %vm2597, %vm2598
    %v2600 = vsel %vm2599, %v2591, %v2596
    %v2601 = vrsqrt.pop %v2579
    %v2602 = vmul.f32 %v2601, %v2579
    %v2603 = vmul.f32 %v2602, %v2601
    %v2604 = vmul.f32 0.5, %v2603
    %v2605 = vsub.f32 1.5, %v2604
    %v2606 = vmul.f32 %v2601, %v2605
    %vm2607 = vweird.f32 %v2579
    %vm2608 = vweird.f32 %v2601
    %vm2609 = vmor %vm2607, %vm2608
    %v2610 = vsel %vm2609, %v2601, %v2606
    %v2611 = vrsqrt.pop %v2580
    %v2612 = vmul.f32 %v2611, %v2580
    %v2613 = vmul.f32 %v2612, %v2611
    %v2614 = vmul.f32 0.5, %v2613
    %v2615 = vsub.f32 1.5, %v2614
    %v2616 = vmul.f32 %v2611, %v2615
    %vm2617 = vweird.f32 %v2580
    %vm2618 = vweird.f32 %v2611
    %vm2619 = vmor %vm2617, %vm2618
    %v2620 = vsel %vm2619, %v2611, %v2616
    %v2621 = vmul.f32 %v2553, %v2590
    %v2622 = vmul.f32 %v2554, %v2600
    %v2623 = vmul.f32 %v2555, %v2610
    %v2624 = vmul.f32 %v2556, %v2620
    %v2626 = vperm.slane %v2535, 0
    %v2628 = vmul.f32 %v2621, %v2626
    %v2629 = vmul.f32 %v2622, %v2626
    %v2630 = vmul.f32 %v2623, %v2626
    %v2631 = vmul.f32 %v2624, %v2626
    %v2633 = vperm.slane %v2536, 0
    %v2635 = vadd.f32 %v2628, %v2633
    %v2636 = vadd.f32 %v2629, %v2633
    %v2637 = vadd.f32 %v2630, %v2633
    %v2638 = vadd.f32 %v2631, %v2633
    %2639 = vst.msk [vmem:[#allocation48] sm:$0xff] %vm575, %v2635
    %2640 = vst.msk [vmem:[#allocation48 + $0x8] sm:$0xff] %vm575, %v2636
    %2641 = vst.msk [vmem:[#allocation48 + $0x10] sm:$0xff] %vm575, %v2637
    %2642 = vst.msk [vmem:[#allocation48 + $0x18] sm:$0xff] %vm575, %v2638
    // Predicated region
    $region278: #{tpu_custom_call.1} parent=1 // pred_check
      _
    $region279: #{tpu_custom_call.1} parent=1 // pred_check_branch
      %2644 = sbr.rel (0) target = $region281
    $region280: #{tpu_custom_call.1} parent=1 // pred_region
      %2646 = vsyncadd [#allocation6], 0
      %s2647 = sshll.u32 [#allocation48], 4
      %s2648 = int_to_ptr.vmem [resolvable:$true] %s2647
      %s2649 = sshll.u32 %s85, 4
      %s2650 = int_to_ptr.hbm [resolvable:$true] %s2649
      %2655 = dma.vmem_to_hbm [thread:$0]  %s2648, 512, %s2650, [#allocation6], 128, 128, 8
    $region281: #{tpu_custom_call.1} parent=1 // pred_fallthru
      _
    // Predicated region
    $region282: #{tpu_custom_call.1} parent=1 // pred_check
      _
    $region283: #{tpu_custom_call.1} parent=1 // pred_check_branch
      %2657 = sbr.rel (0) target = $region285
    $region284: #{tpu_custom_call.1} parent=1 // pred_region
      %2659 = dma.done [#allocation6], 512
    $region285: #{tpu_custom_call.1} parent=1 // pred_fallthru
      _
    %2660 = vsyncpa [#allocation5], 1
    %2661 = vsyncpa [#allocation8], 1
    %2662 = vsyncpa [#allocation11], 1
    %2663 = vsyncpa [#allocation14], 1
    %2664 = vsyncpa [#allocation17], 1
    %2665 = vsyncpa [#allocation20], 1
    %2666 = vsyncpa [#allocation23], 1
    %2667 = vsyncpa [#allocation26], 1
    %2668 = vsyncpa [#allocation29], 1
    %2669 = vsyncpa [#allocation32], 1
    %2670 = vsyncpa [#allocation35], 1
    %2671 = vsyncpa [#allocation38], 1
    %2672 = vsyncpa [#allocation41], 1
    %2673 = vsyncpa [#allocation44], 1
    %2674 = vsyncpa [#allocation47], 1
    %2675 = vsyncpa [#allocation6], 1

</llo_original>
